<compile_context>
chip_gen: v5e
topology: v5e:2x2
jax: 0.10.0
libtpu: 0.0.40
codegen_flags: <defaults>
</compile_context>

<pallas_src>
import functools
import math

import jax
import jax.numpy as jnp
from jax.experimental import pallas as pl
from jax.experimental.pallas import tpu as pltpu

STEM_K = 32                              # stem im2col K padded 27 -> 32 (8-aligned)


def _default_vmem_limit():
    # v4/v5e/v6e have 128 MiB of VMEM per TensorCore, v7x only 64 MiB.
    try:
        kind = jax.devices()[0].device_kind.lower()
    except Exception:
        kind = ""
    if any(tag in kind for tag in ("v4", "v5", "v6")):
        return 96 * 1024 * 1024
    return 44 * 1024 * 1024               # conservative for v7x / unknown chips


_VMEM_LIMIT = _default_vmem_limit()


def _cparams(sem):
    return pltpu.CompilerParams(dimension_semantics=sem,
                                vmem_limit_bytes=_VMEM_LIMIT)


def _pick_tile(n, cap, align=1):
    """Largest divisor of n that is <= cap and a multiple of `align`; n if none."""
    if n <= cap:
        return n
    best = 0
    for d in range(align, cap + 1, align):
        if n % d == 0:
            best = d
    return best if best else n


def _apply_act(y, act):
    if act == "silu":
        return y * jax.nn.sigmoid(y)
    if act == "relu":
        return jnp.maximum(y, 0.0)
    if act == "sigmoid":
        return jax.nn.sigmoid(y)
    return y


# ----------------------------- Pallas kernels -----------------------------

def _matmul_kernel(x_ref, w_ref, s_ref, b_ref, o_ref, *, act):
    # bf16 x bf16 -> f32 accumulate on the MXU, folded-BN scale/bias + act in f32.
    y = jnp.dot(x_ref[...], w_ref[...], preferred_element_type=jnp.float32)
    y = y * s_ref[...] + b_ref[...]
    o_ref[...] = _apply_act(y, act).astype(o_ref.dtype)


@functools.partial(jax.jit, static_argnames=("act",))
def matmul_bias_act(x, w, scale, bias, act="none"):
    """y = act((x @ w) * scale + bias); rows AND columns tiled (1x1 convs, stem)."""
    M, K = x.shape
    N = w.shape[1]
    TM = _pick_tile(M, 1024, 8)
    TN = _pick_tile(N, 2048, 128)
    grid = (M // TM, N // TN)
    return pl.pallas_call(
        functools.partial(_matmul_kernel, act=act),
        out_shape=jax.ShapeDtypeStruct((M, N), jnp.bfloat16),
        grid=grid,
        in_specs=[
            pl.BlockSpec((TM, K), lambda i, j: (i, 0)),
            pl.BlockSpec((K, TN), lambda i, j: (0, j)),
            pl.BlockSpec((1, TN), lambda i, j: (0, j)),
            pl.BlockSpec((1, TN), lambda i, j: (0, j)),
        ],
        out_specs=pl.BlockSpec((TM, TN), lambda i, j: (i, j)),
        compiler_params=_cparams(("parallel", "parallel")),
        cost_estimate=pl.CostEstimate(
            flops=int(2 * M * K * N),
            transcendentals=int(M * N) if act in ("silu", "sigmoid") else 0,
            bytes_accessed=int(2 * (M * K + K * N + M * N) + 8 * N)),
    )(x, w, scale, bias)


def _dw_kernel(*refs, k, stride, act, n_planes):
    """Depthwise KxK conv + folded BN + act for one (batch, row-tile) grid step.

    stride==1: one padded plane ref; taps are contiguous (R, Wo, C) slices.
    stride==2: four 2x2 spatial phase planes; tap (i, j) is a contiguous slice of
               phase plane (i%2, j%2) -> no strided access, no k^2 HBM taps.
    Also accumulates the SE squeeze channel-sum of the activated output.
    """
    x_refs = refs[:n_planes]
    w_ref, s_ref, b_ref, o_ref, sum_ref = refs[n_planes:]
    _, R, Wo, C = o_ref.shape
    r = pl.program_id(1)
    oh0 = r * R

    @pl.when(r == 0)
    def _init():
        sum_ref[...] = jnp.zeros_like(sum_ref)

    w = w_ref[...]                                    # (k*k, C) f32, hoisted
    acc = jnp.zeros((R, Wo, C), jnp.float32)
    for i in range(k):
        for j in range(k):
            if stride == 1:
                tap = x_refs[0][0, pl.ds(oh0 + i, R), pl.ds(j, Wo), :]
            else:
                ph = x_refs[2 * (i % 2) + (j % 2)]
                tap = ph[0, pl.ds(oh0 + i // 2, R), pl.ds(j // 2, Wo), :]
            acc = acc + tap.astype(jnp.float32) * w[i * k + j]
    y = _apply_act(acc * s_ref[...] + b_ref[...], act)
    o_ref[0] = y.astype(o_ref.dtype)
    # fused SE global-pool partial sum (f32 accumulator across the row-tile axis)
    sum_ref[0] += jnp.sum(jnp.sum(y, axis=1), axis=0, keepdims=True)


@functools.partial(jax.jit, static_argnames=("k", "stride", "ho", "wo", "act"))
def depthwise_conv(planes, w, scale, bias, *, k, stride, ho, wo, act="silu"):
    """Returns (activated depthwise output (B, ho, wo, C) bf16,
                per-image channel sums (B, 1, C) f32 for the SE squeeze)."""
    B = planes[0].shape[0]
    C = planes[0].shape[-1]
    n_planes = len(planes)
    R = _pick_tile(ho, 16, 1)                          # row tile (divides ho)
    grid = (B, ho // R)
    # TODO(synk): at native 456x456 resolution the resident full plane per batch
    # element should be replaced by halo row-tiles (manual DMA) to bound VMEM.
    in_specs = [pl.BlockSpec((1,) + p.shape[1:], lambda b, r: (b, 0, 0, 0))
                for p in planes]
    in_specs += [
        pl.BlockSpec((k * k, C), lambda b, r: (0, 0)),
        pl.BlockSpec((1, C), lambda b, r: (0, 0)),
        pl.BlockSpec((1, C), lambda b, r: (0, 0)),
    ]
    return pl.pallas_call(
        functools.partial(_dw_kernel, k=k, stride=stride, act=act,
                          n_planes=n_planes),
        out_shape=(jax.ShapeDtypeStruct((B, ho, wo, C), jnp.bfloat16),
                   jax.ShapeDtypeStruct((B, 1, C), jnp.float32)),
        grid=grid,
        in_specs=in_specs,
        out_specs=(pl.BlockSpec((1, R, wo, C), lambda b, r: (b, r, 0, 0)),
                   pl.BlockSpec((1, 1, C), lambda b, r: (b, 0, 0))),
        compiler_params=_cparams(("parallel", "arbitrary")),
    )(*planes, w, scale, bias)


def _se_gate_kernel(ps_ref, w1_ref, b1_ref, w2_ref, b2_ref, g_ref, *, inv_count):
    # Works on the pre-reduced channel sums only; the full activation never
    # re-enters this kernel.
    pooled = ps_ref[...][:, 0, :] * inv_count                      # (B, C) mean, f32
    h = jnp.dot(pooled.astype(jnp.bfloat16), w1_ref[...],
                preferred_element_type=jnp.float32) + b1_ref[...]
    h = h * jax.nn.sigmoid(h)                                      # SiLU
    g = jnp.dot(h.astype(jnp.bfloat16), w2_ref[...],
                preferred_element_type=jnp.float32) + b2_ref[...]
    g_ref[...] = jax.nn.sigmoid(g)[:, None, :].astype(g_ref.dtype)


@functools.partial(jax.jit, static_argnames=("count",))
def se_gate(ch_sums, w1, b1, w2, b2, count):
    B, _, C = ch_sums.shape
    c_se = w1.shape[1]
    return pl.pallas_call(
        functools.partial(_se_gate_kernel, inv_count=1.0 / count),
        out_shape=jax.ShapeDtypeStruct((B, 1, C), jnp.bfloat16),
        grid=(1,),
        in_specs=[
            pl.BlockSpec((B, 1, C), lambda i: (0, 0, 0)),
            pl.BlockSpec((C, c_se), lambda i: (0, 0)),
            pl.BlockSpec((1, c_se), lambda i: (0, 0)),
            pl.BlockSpec((c_se, C), lambda i: (0, 0)),
            pl.BlockSpec((1, C), lambda i: (0, 0)),
        ],
        out_specs=pl.BlockSpec((B, 1, C), lambda i: (0, 0, 0)),
        compiler_params=_cparams(("arbitrary",)),
    )(ch_sums, w1, b1, w2, b2)


def _proj_kernel(x_ref, g_ref, w_ref, s_ref, b_ref, *rest, has_res):
    # fused: SE gating * x -> 1x1 projection (MXU) -> folded BN -> (+ residual)
    if has_res:
        sc_ref, o_ref = rest
    else:
        (o_ref,) = rest
    xg = x_ref[0] * g_ref[0]                                  # (TP, C) bf16
    y = jnp.dot(xg, w_ref[...], preferred_element_type=jnp.float32)
    y = y * s_ref[...] + b_ref[...]
    if has_res:
        y = y + sc_ref[0].astype(jnp.float32)
    o_ref[0] = y.astype(o_ref.dtype)


@jax.jit
def project_fused(x, gate, w, scale, bias, shortcut=None):
    B, P, C = x.shape
    N = w.shape[1]
    TP = _pick_tile(P, 512, 8)
    grid = (B, P // TP)
    has_res = shortcut is not None
    in_specs = [
        pl.BlockSpec((1, TP, C), lambda b, p: (b, p, 0)),
        pl.BlockSpec((1, 1, C), lambda b, p: (b, 0, 0)),
        pl.BlockSpec((C, N), lambda b, p: (0, 0)),
        pl.BlockSpec((1, N), lambda b, p: (0, 0)),
        pl.BlockSpec((1, N), lambda b, p: (0, 0)),
    ]
    args = [x, gate, w, scale, bias]
    if has_res:
        in_specs.append(pl.BlockSpec((1, TP, N), lambda b, p: (b, p, 0)))
        args.append(shortcut)
    return pl.pallas_call(
        functools.partial(_proj_kernel, has_res=has_res),
        out_shape=jax.ShapeDtypeStruct((B, P, N), jnp.bfloat16),
        grid=grid,
        in_specs=in_specs,
        out_specs=pl.BlockSpec((1, TP, N), lambda b, p: (b, p, 0)),
        compiler_params=_cparams(("parallel", "parallel")),
        cost_estimate=pl.CostEstimate(
            flops=int(2 * B * P * C * N),
            transcendentals=0,
            bytes_accessed=int(2 * (B * P * C + C * N
                                    + (2 if has_res else 1) * B * P * N))),
    )(*args)


def _head_pool_kernel(x_ref, w_ref, s_ref, b_ref, o_ref):
    # fused head 1x1 conv + folded BN + SiLU + global average pool
    B = x_ref.shape[0]
    w = w_ref[...]
    scale = s_ref[...]
    bias = b_ref[...]
    for b in range(B):                                # static loop, B is tiny
        y = jnp.dot(x_ref[b], w, preferred_element_type=jnp.float32)
        y = y * scale + bias
        y = y * jax.nn.sigmoid(y)
        o_ref[pl.ds(b, 1), :] = jnp.mean(y, axis=0, keepdims=True).astype(o_ref.dtype)


@jax.jit
def head_pool(x, w, scale, bias):
    B, P, C = x.shape
    N = w.shape[1]
    TN = _pick_tile(N, 1024, 128)
    grid = (N // TN,)
    return pl.pallas_call(
        _head_pool_kernel,
        out_shape=jax.ShapeDtypeStruct((B, N), jnp.bfloat16),
        grid=grid,
        in_specs=[
            pl.BlockSpec((B, P, C), lambda j: (0, 0, 0)),
            pl.BlockSpec((C, TN), lambda j: (0, j)),
            pl.BlockSpec((1, TN), lambda j: (0, j)),
            pl.BlockSpec((1, TN), lambda j: (0, j)),
        ],
        out_specs=pl.BlockSpec((B, TN), lambda j: (0, j)),
        compiler_params=_cparams(("parallel",)),
        cost_estimate=pl.CostEstimate(
            flops=int(2 * B * P * C * N),
            transcendentals=int(B * P * N),
            bytes_accessed=int(2 * (B * P * C + C * N + B * N))),
    )(x, w, scale, bias)


def _mlp_kernel(x_ref, w1, b1, w2, b2, w3, b3, w4, b4, o_ref):
    h = jnp.dot(x_ref[...], w1[...], preferred_element_type=jnp.float32) + b1[...]
    h = jnp.maximum(h, 0.0).astype(jnp.bfloat16)
    h = jnp.dot(h, w2[...], preferred_element_type=jnp.float32) + b2[...]
    h = jnp.maximum(h, 0.0).astype(jnp.bfloat16)
    h = jnp.dot(h, w3[...], preferred_element_type=jnp.float32) + b3[...]
    h = jnp.maximum(h, 0.0).astype(jnp.bfloat16)
    o_ref[...] = jnp.dot(h, w4[...], preferred_element_type=jnp.float32) + b4[...]


@jax.jit
def classifier_head(x, cls_params):
    (w1, b1), (w2, b2), (w3, b3), (w4, b4) = cls_params
    B = x.shape[0]
    n_out = w4.shape[1]

    def spec2(a):
        return pl.BlockSpec(a.shape, lambda i: (0, 0))

    flops = 2 * B * sum(int(w.shape[0]) * int(w.shape[1]) for w in (w1, w2, w3, w4))
    return pl.pallas_call(
        _mlp_kernel,
        out_shape=jax.ShapeDtypeStruct((B, n_out), jnp.float32),
        grid=(1,),
        in_specs=[spec2(x), spec2(w1), spec2(b1), spec2(w2), spec2(b2),
                  spec2(w3), spec2(b3), spec2(w4), spec2(b4)],
        out_specs=pl.BlockSpec((B, n_out), lambda i: (0, 0)),
        compiler_params=_cparams(("arbitrary",)),
        cost_estimate=pl.CostEstimate(flops=int(flops), transcendentals=0,
                                      bytes_accessed=int(12 * 1024 * 1024)),
    )(x, w1, b1, w2, b2, w3, b3, w4, b4)


# ----------------------------- glue (plain JAX) -----------------------------

def tf_same_pad(x, k, s):
    # TF "SAME" padding (asymmetric: more on bottom/right), NHWC.
    _, H, W, _ = x.shape

    def amt(n):
        out = -(-n // s)
        pad = max((out - 1) * s + k - n, 0)
        return (pad // 2, pad - pad // 2)

    return jnp.pad(x, ((0, 0), amt(H), amt(W), (0, 0)))


def pad_and_split(x, k, stride):
    """TF-SAME pad; for stride 2 additionally split into 2x2 spatial phase planes
    so the depthwise kernel only needs contiguous in-VMEM slices."""
    xp = tf_same_pad(x, k, stride)
    if stride == 1:
        return (xp,)
    B, Hp, Wp, C = xp.shape
    xp = jnp.pad(xp, ((0, 0), (0, Hp % 2), (0, Wp % 2), (0, 0)))
    return tuple(xp[:, di::2, dj::2, :] for di in (0, 1) for dj in (0, 1))


# ----------------------------- model definition -----------------------------

class KeyGen:
    def __init__(self, seed=0):
        self._root = jax.random.PRNGKey(seed)
        self._i = 0

    def __call__(self):
        self._i += 1
        return jax.random.fold_in(self._root, self._i)


def round_filters(c, mult=1.6, divisor=8):
    c = c * mult
    new_c = max(divisor, int(c + divisor / 2) // divisor * divisor)
    if new_c < 0.9 * c:
        new_c += divisor
    return int(new_c)


def round_repeats(r, mult=2.2):
    return int(math.ceil(mult * r))


# EfficientNet base stage config: (kernel, stride, expand, base_out_channels, base_repeats)
BASE_STAGES = [
    (3, 1, 1, 16, 1),
    (3, 2, 6, 24, 2),
    (5, 2, 6, 40, 2),
    (3, 2, 6, 80, 3),
    (5, 1, 6, 112, 3),
    (5, 2, 6, 192, 4),
    (3, 1, 6, 320, 1),
]


def conv_params(kg, k_in, k_out):
    # conv weight (bf16, MXU path) with BatchNorm (eval) folded into scale/bias (f32).
    return {
        "w": (jax.random.normal(kg(), (k_in, k_out), jnp.float32)
              / math.sqrt(k_in)).astype(jnp.bfloat16),
        "scale": 1.0 + 0.02 * jax.random.normal(kg(), (1, k_out), jnp.float32),
        "bias": 0.02 * jax.random.normal(kg(), (1, k_out), jnp.float32),
    }


def dw_params(kg, k, c):
    return {
        "w": jax.random.normal(kg(), (k * k, c), jnp.float32) / float(k),
        "scale": 1.0 + 0.02 * jax.random.normal(kg(), (1, c), jnp.float32),
        "bias": 0.02 * jax.random.normal(kg(), (1, c), jnp.float32),
    }


def se_params(kg, c, c_se):
    return {
        "w1": (jax.random.normal(kg(), (c, c_se), jnp.float32)
               / math.sqrt(c)).astype(jnp.bfloat16),
        "b1": jnp.zeros((1, c_se), jnp.float32),
        "w2": (jax.random.normal(kg(), (c_se, c), jnp.float32)
               / math.sqrt(c_se)).astype(jnp.bfloat16),
        "b2": jnp.zeros((1, c), jnp.float32),
    }


def build_params(num_classes, seed=0):
    # TODO(synk): original module loads pretrained ImageNet weights via timm; here
    # parameters are deterministic synthetic values with the exact B5 shapes.
    kg = KeyGen(seed)
    params = {}
    stem_out = round_filters(32)                       # 48
    params["stem"] = conv_params(kg, STEM_K, stem_out)  # K padded 27 -> 32
    c_in = stem_out
    stages = []
    for (k, s, e, c_base, r_base) in BASE_STAGES:
        c_out = round_filters(c_base)
        blocks = []
        for bi in range(round_repeats(r_base)):
            stride = s if bi == 0 else 1
            c_mid = c_in * e
            bp = {"k": k, "stride": stride, "in": c_in, "out": c_out}
            if e != 1:
                bp["expand"] = conv_params(kg, c_in, c_mid)
            bp["dw"] = dw_params(kg, k, c_mid)
            bp["se"] = se_params(kg, c_mid, max(1, int(c_in * 0.25)))
            bp["proj"] = conv_params(kg, c_mid, c_out)
            blocks.append(bp)
            c_in = c_out
        stages.append(blocks)
    params["stages"] = stages
    head_out = round_filters(1280)                     # 2048
    params["head"] = conv_params(kg, c_in, head_out)
    # custom classifier of NsEfnB5: 2048 -> 1024 -> 512 -> 256 -> num_classes
    dims = [head_out, 1024, 512, 256, num_classes]
    cls = []
    for i in range(4):
        w = (jax.random.normal(kg(), (dims[i], dims[i + 1]), jnp.float32)
             / math.sqrt(dims[i])).astype(jnp.bfloat16)
        b = jnp.zeros((1, dims[i + 1]), jnp.float32)
        cls.append((w, b))
    params["classifier"] = cls
    return params


def mbconv_block(x, bp):
    B, H, W, C_in = x.shape
    k, stride = bp["k"], bp["stride"]
    shortcut = x
    if "expand" in bp:                                  # 1x1 expand + BN + SiLU
        e = bp["expand"]
        C_mid = e["w"].shape[1]
        h = matmul_bias_act(x.reshape(B * H * W, C_in), e["w"], e["scale"],
                            e["bias"], "silu")
        h = h.reshape(B, H, W, C_mid)
    else:                                               # depthwise-separable block
        h, C_mid = x, C_in
    # depthwise KxK conv (TF-SAME pad) + BN + SiLU, SE squeeze-sum fused inside
    Ho = -(-H // stride)
    Wo = -(-W // stride)
    planes = pad_and_split(h, k, stride)
    d = bp["dw"]
    h, ch_sums = depthwise_conv(planes, d["w"], d["scale"], d["bias"],
                                k=k, stride=stride, ho=Ho, wo=Wo, act="silu")
    # squeeze-and-excite gate from the fused channel sums (tiny FCs only)
    s = bp["se"]
    gate = se_gate(ch_sums, s["w1"], s["b1"], s["w2"], s["b2"],
                   count=float(Ho * Wo))
    # fused: gate * x -> 1x1 projection + BN (+ residual)
    p = bp["proj"]
    C_out = p["w"].shape[1]
    use_res = (stride == 1 and C_in == C_out)
    sc = shortcut.reshape(B, H * W, C_out) if use_res else None
    out3 = project_fused(h.reshape(B, Ho * Wo, C_mid), gate,
                         p["w"], p["scale"], p["bias"], sc)
    return out3.reshape(B, Ho, Wo, C_out)


def efficientnet_forward(x_nchw, params):
    # layout: NCHW (PyTorch) -> NHWC, bf16 activations end-to-end
    x = jnp.transpose(x_nchw, (0, 2, 3, 1)).astype(jnp.bfloat16)
    B, H, W, C = x.shape
    # stem: 3x3 stride-2 conv via im2col (K padded to 32) + Pallas matmul (+BN+SiLU)
    xp = tf_same_pad(x, 3, 2)
    _, Hp, Wp, _ = xp.shape
    Ho = (Hp - 3) // 2 + 1
    Wo = (Wp - 3) // 2 + 1
    cols = []
    for i in range(3):
        for j in range(3):
            cols.append(xp[:, i:i + 2 * Ho:2, j:j + 2 * Wo:2, :])
    patches = jnp.stack(cols, axis=3).reshape(B * Ho * Wo, 9 * C)
    patches = jnp.pad(patches, ((0, 0), (0, STEM_K - 9 * C)))
    st = params["stem"]
    h = matmul_bias_act(patches, st["w"], st["scale"], st["bias"],
                        "silu").reshape(B, Ho, Wo, -1)
    # 39 MBConv / DS blocks
    for blocks in params["stages"]:
        for bp in blocks:
            h = mbconv_block(h, bp)
    # fused head: 1x1 conv to 2048 + BN + SiLU + global average pool
    Bh, Hh, Wh, Ch = h.shape
    hd = params["head"]
    pooled = head_pool(h.reshape(Bh, Hh * Wh, Ch), hd["w"], hd["scale"], hd["bias"])
    # custom classifier MLP (2048 -> 1024 -> 512 -> 256 -> num_classes)
    return classifier_head(pooled, params["classifier"])


if __name__ == "__main__":
    NUM_CLASSES = 10
    params = build_params(NUM_CLASSES, seed=0)
    key = jax.random.PRNGKey(0)
    # Small ImageNet-style NCHW batch (B5 natively uses 456x456; 64x64 keeps shapes
    # small while still surviving the /32 spatial reduction).
    x = jax.random.normal(key, (2, 3, 64, 64), jnp.float32)
    out = efficientnet_forward(x, params)
    out = jax.block_until_ready(out)
    assert out.shape == (2, NUM_CLASSES), out.shape
    assert bool(jnp.all(jnp.isfinite(out)))
    print("KERNEL_OK")
</pallas_src>

<mosaic_0001>
module attributes {stable_mosaic.version = 11 : i64} {
  func.func @_matmul_kernel(%arg0: i32, %arg1: i32, %arg2: memref<1024x32xbf16, #tpu.memory_space<vmem>>, %arg3: memref<32x48xbf16, #tpu.memory_space<vmem>>, %arg4: memref<1x48xf32, #tpu.memory_space<vmem>>, %arg5: memref<1x48xf32, #tpu.memory_space<vmem>>, %arg6: memref<1024x48xbf16, #tpu.memory_space<vmem>>) attributes {dimension_semantics = [#tpu.dimension_semantics<parallel>, #tpu.dimension_semantics<parallel>], iteration_bounds = array<i64: 2, 1>, scalar_prefetch = 0 : i64, scratch_operands = 0 : i64, tpu.core_type = #tpu.core_type<tc>, window_params = [{transform_indices = @transform_0, window_bounds = array<i64: 1024, 32>}, {transform_indices = @transform_1, window_bounds = array<i64: 32, 48>}, {transform_indices = @transform_2, window_bounds = array<i64: 1, 48>}, {transform_indices = @transform_3, window_bounds = array<i64: 1, 48>}, {transform_indices = @transform_4, window_bounds = array<i64: 1024, 48>}]} {
    %c0 = arith.constant 0 : index
    %c0_0 = arith.constant 0 : index
    %0 = vector.load %arg2[%c0, %c0_0] : memref<1024x32xbf16, #tpu.memory_space<vmem>>, vector<1024x32xbf16>
    %c0_1 = arith.constant 0 : index
    %c0_2 = arith.constant 0 : index
    %1 = vector.load %arg3[%c0_1, %c0_2] : memref<32x48xbf16, #tpu.memory_space<vmem>>, vector<32x48xbf16>
    %cst = arith.constant dense<0.000000e+00> : vector<1024x48xf32>
    %2 = tpu.matmul %0, %1, %cst {dimension_numbers = #tpu.dot_dimension_numbers<[1], [0], [0], [1], [0, 0, 1, 1], [], []>} : vector<1024x32xbf16>, vector<32x48xbf16>, vector<1024x48xf32> -> vector<1024x48xf32>
    %c0_3 = arith.constant 0 : index
    %c0_4 = arith.constant 0 : index
    %3 = vector.load %arg4[%c0_3, %c0_4] : memref<1x48xf32, #tpu.memory_space<vmem>>, vector<1x48xf32>
    %4 = vector.broadcast %3 : vector<1x48xf32> to vector<1024x48xf32>
    %5 = arith.mulf %2, %4 : vector<1024x48xf32>
    %c0_5 = arith.constant 0 : index
    %c0_6 = arith.constant 0 : index
    %6 = vector.load %arg5[%c0_5, %c0_6] : memref<1x48xf32, #tpu.memory_space<vmem>>, vector<1x48xf32>
    %7 = vector.broadcast %6 : vector<1x48xf32> to vector<1024x48xf32>
    %8 = arith.addf %5, %7 : vector<1024x48xf32>
    %9 = arith.negf %8 : vector<1024x48xf32>
    %10 = math.exp %9 : vector<1024x48xf32>
    %cst_7 = arith.constant 1.000000e+00 : f32
    %11 = vector.broadcast %cst_7 : f32 to vector<1024x48xf32>
    %12 = arith.addf %11, %10 : vector<1024x48xf32>
    %13 = arith.divf %11, %12 : vector<1024x48xf32>
    %14 = arith.mulf %8, %13 : vector<1024x48xf32>
    %15 = arith.truncf %14 : vector<1024x48xf32> to vector<1024x48xbf16>
    %c0_8 = arith.constant 0 : index
    %c0_9 = arith.constant 0 : index
    %16 = vector.load %arg6[%c0_8, %c0_9] : memref<1024x48xbf16, #tpu.memory_space<vmem>>, vector<1024x48xbf16>
    tpu.vector_store %arg6[%c0_8, %c0_9], %15 {strides = array<i32>} : memref<1024x48xbf16, #tpu.memory_space<vmem>>, vector<1024x48xbf16>,
    return
  }
  func.func @transform_0(%arg0: i32, %arg1: i32) -> (i32, i32) {
    %c0_i32 = arith.constant 0 : i32
    %c0_i32_0 = arith.constant 0 : i32
    return %arg0, %c0_i32 : i32, i32
  }
  func.func @transform_1(%arg0: i32, %arg1: i32) -> (i32, i32) {
    %c0_i32 = arith.constant 0 : i32
    %c0_i32_0 = arith.constant 0 : i32
    return %c0_i32, %arg1 : i32, i32
  }
  func.func @transform_2(%arg0: i32, %arg1: i32) -> (i32, i32) {
    %c0_i32 = arith.constant 0 : i32
    %c0_i32_0 = arith.constant 0 : i32
    return %c0_i32, %arg1 : i32, i32
  }
  func.func @transform_3(%arg0: i32, %arg1: i32) -> (i32, i32) {
    %c0_i32 = arith.constant 0 : i32
    %c0_i32_0 = arith.constant 0 : i32
    return %c0_i32, %arg1 : i32, i32
  }
  func.func @transform_4(%arg0: i32, %arg1: i32) -> (i32, i32) {
    %c0_i32 = arith.constant 0 : i32
    return %arg0, %arg1 : i32, i32
  }
}

</mosaic_0001>

<llo_original>
// kernel: matmul_bias_act.1
$region0: #{matmul_bias_act.1}
  #allocation0 [shape = 'u32[]', space=smem, size = 0x4, offset = 0x4, fixed_abs, tag = 'smem constant byte address 0x4 - core index']
  #allocation1 [shape = 'u32[72,128]{1,0:T(1,128)}', space=vmem, size = 0x9000, scoped, tag = 'internal scratch']
  %s0 = inlined_call_operand.vmem [shape: bf16[2048,32], index: 0, kind: input, shape index: {}]
  %s1 = inlined_call_operand.vmem [shape: bf16[32,48], index: 1, kind: input, shape index: {}]
  %s2 = inlined_call_operand.vmem [shape: f32[1,48], index: 2, kind: input, shape index: {}]
  %s3 = inlined_call_operand.vmem [shape: f32[1,48], index: 3, kind: input, shape index: {}]
  %s4 = inlined_call_operand.vmem [shape: bf16[2048,48], index: 4, kind: output, shape index: {}]
  %s5 = sld [smem:[#allocation0]]
  $region49: #{matmul_bias_act.1} parent=0
    _
  %s7 = ssub.s32 1, %s5
  %s8 = scalar_select 0, %s7, %s5
  loop: start=0, step=1, limit=4
  $region2: #{matmul_bias_act.1} parent=0 // loop_pre_header
    _
  $region3: #{matmul_bias_act.1} parent=0 // loop_header
    %s10 = sphi 0, %s14
    %p11 = scmp.ge.s32.totalorder %s10, 4
    %s17 = sphi 0, %s29
    %s18 = sphi 0, %s25
    %s19 = sphi 0, %s17
    %s20 = sphi 0, %s18
    %s21 = sphi 0, %s19
    %s22 = sphi 0, %s20
    %s32 = sphi 0, %s34
    %s35 = sphi 0, %s32
    %s36 = sphi 0, %s35
    %s52 = sphi 0, %s36
    %s58 = sphi 0, %s60
    %s61 = sphi 0, %s58
    %s62 = sphi 0, %s61
    %s78 = sphi 0, %s62
    %s84 = sphi 0, %s86
    %s87 = sphi 0, %s84
    %s88 = sphi 0, %s87
    %s104 = sphi 0, %s88
    %s110 = sphi 0, %s112
    %s113 = sphi 0, %s110
    %s114 = sphi 0, %s113
    %s130 = sphi 0, %s114
    %s138 = sphi 0, %s140
    %s141 = sphi 0, %s138
    %s142 = sphi 0, %s141
    %s158 = sphi 0, %s142
  $region4: #{matmul_bias_act.1} parent=0 // loop_header_branch
    %13 = sbr.rel (%p11) target = $region8
  $region5: #{matmul_bias_act.1} parent=0 // loop_body
    %s15 = ssub.s32 %s10, 1
    %s16 = ssub.s32 %s10, 2
    %s23 = sadd.s32 1, %s18
    %p24 = scmp.ge.s32.totalorder %s23, 1
    %s25 = scalar_select %p24, 0, %s23
    %s26 = sadd.s32 1, %s17
    %s27 = scalar_select %p24, %s26, %s17
    %p28 = scmp.ge.s32.totalorder %s27, 2
    %s29 = scalar_select %p28, 0, %s27
    %s30 = ssub.s32 %s17, %s29
    %p31 = scmp.eq.s32.totalorder %s30, 0
    %s33 = sadd.s32 %s32, 1
    %s34 = scalar_select %p31, %s32, %s33
    %p37 = pneg %p31
    %p38 = scmp.eq.s32.totalorder %s10, 1
    %p39 = por %p37, %p38
    %p40 = scmp.ne.s32.totalorder %s32, %s35
    %p41 = scmp.eq.s32.totalorder %s10, 0
    %p42 = por %p40, %p41
    %p43 = scmp.ne.s32.totalorder %s32, %s35
    %p44 = scmp.eq.s32.totalorder %s15, 1
    %p45 = por %p43, %p44
    %p46 = scmp.ne.s32.totalorder %s35, %s36
    %p47 = scmp.eq.s32.totalorder %s15, 0
    %p48 = por %p46, %p47
    %p49 = scmp.ne.s32.totalorder %s35, %s36
    %p50 = scmp.eq.s32.totalorder %s16, 1
    %p51 = por %p49, %p50
    %p53 = scmp.ne.s32.totalorder %s36, %s52
    %p54 = scmp.eq.s32.totalorder %s16, 0
    %p55 = por %p53, %p54
    %s56 = ssub.s32 %s18, %s25
    %p57 = scmp.eq.s32.totalorder %s56, 0
    %s59 = sadd.s32 %s58, 1
    %s60 = scalar_select %p57, %s58, %s59
    %p63 = pneg %p57
    %p64 = scmp.eq.s32.totalorder %s10, 1
    %p65 = por %p63, %p64
    %p66 = scmp.ne.s32.totalorder %s58, %s61
    %p67 = scmp.eq.s32.totalorder %s10, 0
    %p68 = por %p66, %p67
    %p69 = scmp.ne.s32.totalorder %s58, %s61
    %p70 = scmp.eq.s32.totalorder %s15, 1
    %p71 = por %p69, %p70
    %p72 = scmp.ne.s32.totalorder %s61, %s62
    %p73 = scmp.eq.s32.totalorder %s15, 0
    %p74 = por %p72, %p73
    %p75 = scmp.ne.s32.totalorder %s61, %s62
    %p76 = scmp.eq.s32.totalorder %s16, 1
    %p77 = por %p75, %p76
    %p79 = scmp.ne.s32.totalorder %s62, %s78
    %p80 = scmp.eq.s32.totalorder %s16, 0
    %p81 = por %p79, %p80
    %s82 = ssub.s32 %s18, %s25
    %p83 = scmp.eq.s32.totalorder %s82, 0
    %s85 = sadd.s32 %s84, 1
    %s86 = scalar_select %p83, %s84, %s85
    %p89 = pneg %p83
    %p90 = scmp.eq.s32.totalorder %s10, 1
    %p91 = por %p89, %p90
    %p92 = scmp.ne.s32.totalorder %s84, %s87
    %p93 = scmp.eq.s32.totalorder %s10, 0
    %p94 = por %p92, %p93
    %p95 = scmp.ne.s32.totalorder %s84, %s87
    %p96 = scmp.eq.s32.totalorder %s15, 1
    %p97 = por %p95, %p96
    %p98 = scmp.ne.s32.totalorder %s87, %s88
    %p99 = scmp.eq.s32.totalorder %s15, 0
    %p100 = por %p98, %p99
    %p101 = scmp.ne.s32.totalorder %s87, %s88
    %p102 = scmp.eq.s32.totalorder %s16, 1
    %p103 = por %p101, %p102
    %p105 = scmp.ne.s32.totalorder %s88, %s104
    %p106 = scmp.eq.s32.totalorder %s16, 0
    %p107 = por %p105, %p106
    %s108 = ssub.s32 %s18, %s25
    %p109 = scmp.eq.s32.totalorder %s108, 0
    %s111 = sadd.s32 %s110, 1
    %s112 = scalar_select %p109, %s110, %s111
    %p115 = pneg %p109
    %p116 = scmp.eq.s32.totalorder %s10, 1
    %p117 = por %p115, %p116
    %p118 = scmp.ne.s32.totalorder %s110, %s113
    %p119 = scmp.eq.s32.totalorder %s10, 0
    %p120 = por %p118, %p119
    %p121 = scmp.ne.s32.totalorder %s110, %s113
    %p122 = scmp.eq.s32.totalorder %s15, 1
    %p123 = por %p121, %p122
    %p124 = scmp.ne.s32.totalorder %s113, %s114
    %p125 = scmp.eq.s32.totalorder %s15, 0
    %p126 = por %p124, %p125
    %p127 = scmp.ne.s32.totalorder %s113, %s114
    %p128 = scmp.eq.s32.totalorder %s16, 1
    %p129 = por %p127, %p128
    %p131 = scmp.ne.s32.totalorder %s114, %s130
    %p132 = scmp.eq.s32.totalorder %s16, 0
    %p133 = por %p131, %p132
    %s134 = ssub.s32 %s17, %s29
    %s135 = ssub.s32 %s18, %s25
    %s136 = sor.u32 %s134, %s135
    %p137 = scmp.eq.s32.totalorder %s136, 0
    %s139 = sadd.s32 %s138, 1
    %s140 = scalar_select %p137, %s138, %s139
    %p143 = pneg %p137
    %p144 = scmp.eq.s32.totalorder %s10, 1
    %p145 = por %p143, %p144
    %p146 = scmp.ne.s32.totalorder %s138, %s141
    %p147 = scmp.eq.s32.totalorder %s10, 0
    %p148 = por %p146, %p147
    %p149 = scmp.ne.s32.totalorder %s138, %s141
    %p150 = scmp.eq.s32.totalorder %s15, 1
    %p151 = por %p149, %p150
    %p152 = scmp.ne.s32.totalorder %s141, %s142
    %p153 = scmp.eq.s32.totalorder %s15, 0
    %p154 = por %p152, %p153
    %p155 = scmp.ne.s32.totalorder %s141, %s142
    %p156 = scmp.eq.s32.totalorder %s16, 1
    %p157 = por %p155, %p156
    %p159 = scmp.ne.s32.totalorder %s142, %s158
    %p160 = scmp.eq.s32.totalorder %s16, 0
    %p161 = por %p159, %p160
    %p162 = scmp.le.s32.totalorder 1, %s10
    %p163 = scmp.lt.s32.totalorder %s10, 3
    %p164 = pnand %p162, %p163
    %p165 = pneg %p164
    // Predicated region
    $region9: #{matmul_bias_act.1} parent=5 // pred_check
      _
    $region10: #{matmul_bias_act.1} parent=5 // pred_check_branch
      %167 = sbr.rel (%p164) target = $region12
    $region11: #{matmul_bias_act.1} parent=5 // pred_region
      %s168 = ssub.s32 %s10, 1
      // Predicated region
      $region13: #{matmul_bias_act.1} parent=11 // pred_check
        %p169 = pneg %p74
      $region14: #{matmul_bias_act.1} parent=11 // pred_check_branch
        %171 = sbr.rel (%p169) target = $region16
      $region15: #{matmul_bias_act.1} parent=11 // pred_region
        %p172 = scmp.lt.s32.totalorder %s20, 0
        %s173 = scalar_select %p172, %s20, 0
        %s174 = smul.addr %s173, 4
        %s175 = scalar_lea.vmem %s1, %s174
      $region16: #{matmul_bias_act.1} parent=11 // pred_fallthru
        _
      // Predicated region
      $region17: #{matmul_bias_act.1} parent=11 // pred_check
        %p176 = pneg %p100
      $region18: #{matmul_bias_act.1} parent=11 // pred_check_branch
        %178 = sbr.rel (%p176) target = $region20
      $region19: #{matmul_bias_act.1} parent=11 // pred_region
        %p179 = scmp.lt.s32.totalorder %s20, 0
        %s180 = scalar_select %p179, %s20, 0
        %s181 = scalar_lea.vmem %s2, %s180
      $region20: #{matmul_bias_act.1} parent=11 // pred_fallthru
        _
      // Predicated region
      $region21: #{matmul_bias_act.1} parent=11 // pred_check
        %p182 = pneg %p126
      $region22: #{matmul_bias_act.1} parent=11 // pred_check_branch
        %184 = sbr.rel (%p182) target = $region24
      $region23: #{matmul_bias_act.1} parent=11 // pred_region
        %p185 = scmp.lt.s32.totalorder %s20, 0
        %s186 = scalar_select %p185, %s20, 0
        %s187 = scalar_lea.vmem %s3, %s186
      $region24: #{matmul_bias_act.1} parent=11 // pred_fallthru
        _
    $region12: #{matmul_bias_act.1} parent=5 // pred_fallthru
      _
    %p188 = scmp.lt.s32.totalorder %s10, 2
    // Predicated region
    $region25: #{matmul_bias_act.1} parent=5 // pred_check
      %p189 = pneg %p188
    $region26: #{matmul_bias_act.1} parent=5 // pred_check_branch
      %191 = sbr.rel (%p189) target = $region28
    $region27: #{matmul_bias_act.1} parent=5 // pred_region
      // Predicated region
      $region29: #{matmul_bias_act.1} parent=27 // pred_check
        %p192 = pneg %p42
      $region30: #{matmul_bias_act.1} parent=27 // pred_check_branch
        %194 = sbr.rel (%p192) target = $region32
      $region31: #{matmul_bias_act.1} parent=27 // pred_region
        %s195 = smul.u32 128, %s17
        %p196 = scmp.lt.s32.totalorder %s195, 255
        %s197 = scalar_select %p196, %s195, 255
        %s198 = smul.addr %s197, 4
        %s199 = scalar_lea.vmem %s0, %s198
        %s200 = smul.u32 128, %s17
      $region32: #{matmul_bias_act.1} parent=27 // pred_fallthru
        _
    $region28: #{matmul_bias_act.1} parent=5 // pred_fallthru
      _
    %p201 = scmp.le.s32.totalorder 1, %s10
    %p202 = scmp.lt.s32.totalorder %s10, 3
    %p203 = pnand %p201, %p202
    %p204 = pneg %p203
    // Predicated region
    $region33: #{matmul_bias_act.1} parent=5 // pred_check
      _
    $region34: #{matmul_bias_act.1} parent=5 // pred_check_branch
      %206 = sbr.rel (%p203) target = $region36
    $region35: #{matmul_bias_act.1} parent=5 // pred_region
      %s207 = ssub.s32 %s10, 1
      %s208 = smul.u32 128, %s19
      %p209 = scmp.lt.s32.totalorder %s208, 255
      %s210 = scalar_select %p209, %s208, 255
      %s211 = smul.addr %s210, 4
      %s212 = scalar_lea.vmem %s0, %s211
      %p213 = pneg %p48
      %p214 = pneg %p45
      %p215 = scmp.lt.s32.totalorder %s20, 0
      %s216 = scalar_select %p215, %s20, 0
      %s217 = smul.addr %s216, 4
      %s218 = scalar_lea.vmem %s1, %s217
      %p219 = pneg %p74
      %p220 = pneg %p71
      %p221 = scmp.lt.s32.totalorder %s20, 0
      %s222 = scalar_select %p221, %s20, 0
      %s223 = scalar_lea.vmem %s2, %s222
      %p224 = pneg %p100
      %p225 = pneg %p97
      %p226 = scmp.lt.s32.totalorder %s20, 0
      %s227 = scalar_select %p226, %s20, 0
      %s228 = scalar_lea.vmem %s3, %s227
      %p229 = pneg %p126
      %p230 = pneg %p123
      %p231 = pneg %p154
      %p232 = pneg %p151
      %s233 = smul.u32 128, %s19
      %p234 = scmp.lt.s32.totalorder %s233, 255
      %s235 = scalar_select %p234, %s233, 255
      %p236 = scmp.lt.s32.totalorder %s20, 0
      %s237 = scalar_select %p236, %s20, 0
      %s238 = sadd.s32 %s237, %s235
      %s239 = smul.addr %s238, 4
      %s240 = scalar_lea.vmem %s4, %s239
      %s241 = smul.u32 128, %s19
      %p242 = scmp.lt.s32.totalorder %s241, 255
      %s243 = scalar_select %p242, %s241, 255
      %s244 = smul.addr %s243, 4
      %s245 = scalar_lea.vmem %s0, %s244
      %s246 = smul.u32 128, %s19
      %p247 = scmp.lt.s32.totalorder %s20, 0
      %s248 = scalar_select %p247, %s20, 0
      %s249 = smul.addr %s248, 4
      %s250 = scalar_lea.vmem %s1, %s249
      %p251 = scmp.lt.s32.totalorder %s20, 0
      %s252 = scalar_select %p251, %s20, 0
      %s253 = scalar_lea.vmem %s2, %s252
      %p254 = scmp.lt.s32.totalorder %s20, 0
      %s255 = scalar_select %p254, %s20, 0
      %s256 = scalar_lea.vmem %s3, %s255
      %s257 = smul.u32 128, %s19
      %p258 = scmp.lt.s32.totalorder %s257, 255
      %s259 = scalar_select %p258, %s257, 255
      %p260 = scmp.lt.s32.totalorder %s20, 0
      %s261 = scalar_select %p260, %s20, 0
      %s262 = sadd.s32 %s261, %s259
      %s263 = smul.addr %s262, 4
      %s264 = scalar_lea.vmem %s4, %s263
      %s265 = smul.u32 128, %s19
      %v267 = vld [vmem:[%s245] sm:$0xf]
      %v268 = vld [vmem:[%s245 + $0x4] sm:$0xf]
      %v269 = vld [vmem:[%s245 + $0x8] sm:$0xf]
      %v270 = vld [vmem:[%s245 + $0xc] sm:$0xf]
      %v271 = vld [vmem:[%s245 + $0x10] sm:$0xf]
      %v272 = vld [vmem:[%s245 + $0x14] sm:$0xf]
      %v273 = vld [vmem:[%s245 + $0x18] sm:$0xf]
      %v274 = vld [vmem:[%s245 + $0x1c] sm:$0xf]
      %v275 = vld [vmem:[%s245 + $0x20] sm:$0xf]
      %v276 = vld [vmem:[%s245 + $0x24] sm:$0xf]
      %v277 = vld [vmem:[%s245 + $0x28] sm:$0xf]
      %v278 = vld [vmem:[%s245 + $0x2c] sm:$0xf]
      %v279 = vld [vmem:[%s245 + $0x30] sm:$0xf]
      %v280 = vld [vmem:[%s245 + $0x34] sm:$0xf]
      %v281 = vld [vmem:[%s245 + $0x38] sm:$0xf]
      %v282 = vld [vmem:[%s245 + $0x3c] sm:$0xf]
      %v283 = vld [vmem:[%s245 + $0x40] sm:$0xf]
      %v284 = vld [vmem:[%s245 + $0x44] sm:$0xf]
      %v285 = vld [vmem:[%s245 + $0x48] sm:$0xf]
      %v286 = vld [vmem:[%s245 + $0x4c] sm:$0xf]
      %v287 = vld [vmem:[%s245 + $0x50] sm:$0xf]
      %v288 = vld [vmem:[%s245 + $0x54] sm:$0xf]
      %v289 = vld [vmem:[%s245 + $0x58] sm:$0xf]
      %v290 = vld [vmem:[%s245 + $0x5c] sm:$0xf]
      %v291 = vld [vmem:[%s245 + $0x60] sm:$0xf]
      %v292 = vld [vmem:[%s245 + $0x64] sm:$0xf]
      %v293 = vld [vmem:[%s245 + $0x68] sm:$0xf]
      %v294 = vld [vmem:[%s245 + $0x6c] sm:$0xf]
      %v295 = vld [vmem:[%s245 + $0x70] sm:$0xf]
      %v296 = vld [vmem:[%s245 + $0x74] sm:$0xf]
      %v297 = vld [vmem:[%s245 + $0x78] sm:$0xf]
      %v298 = vld [vmem:[%s245 + $0x7c] sm:$0xf]
      %v299 = vld [vmem:[%s245 + $0x80] sm:$0xf]
      %v300 = vld [vmem:[%s245 + $0x84] sm:$0xf]
      %v301 = vld [vmem:[%s245 + $0x88] sm:$0xf]
      %v302 = vld [vmem:[%s245 + $0x8c] sm:$0xf]
      %v303 = vld [vmem:[%s245 + $0x90] sm:$0xf]
      %v304 = vld [vmem:[%s245 + $0x94] sm:$0xf]
      %v305 = vld [vmem:[%s245 + $0x98] sm:$0xf]
      %v306 = vld [vmem:[%s245 + $0x9c] sm:$0xf]
      %v307 = vld [vmem:[%s245 + $0xa0] sm:$0xf]
      %v308 = vld [vmem:[%s245 + $0xa4] sm:$0xf]
      %v309 = vld [vmem:[%s245 + $0xa8] sm:$0xf]
      %v310 = vld [vmem:[%s245 + $0xac] sm:$0xf]
      %v311 = vld [vmem:[%s245 + $0xb0] sm:$0xf]
      %v312 = vld [vmem:[%s245 + $0xb4] sm:$0xf]
      %v313 = vld [vmem:[%s245 + $0xb8] sm:$0xf]
      %v314 = vld [vmem:[%s245 + $0xbc] sm:$0xf]
      %v315 = vld [vmem:[%s245 + $0xc0] sm:$0xf]
      %v316 = vld [vmem:[%s245 + $0xc4] sm:$0xf]
      %v317 = vld [vmem:[%s245 + $0xc8] sm:$0xf]
      %v318 = vld [vmem:[%s245 + $0xcc] sm:$0xf]
      %v319 = vld [vmem:[%s245 + $0xd0] sm:$0xf]
      %v320 = vld [vmem:[%s245 + $0xd4] sm:$0xf]
      %v321 = vld [vmem:[%s245 + $0xd8] sm:$0xf]
      %v322 = vld [vmem:[%s245 + $0xdc] sm:$0xf]
      %v323 = vld [vmem:[%s245 + $0xe0] sm:$0xf]
      %v324 = vld [vmem:[%s245 + $0xe4] sm:$0xf]
      %v325 = vld [vmem:[%s245 + $0xe8] sm:$0xf]
      %v326 = vld [vmem:[%s245 + $0xec] sm:$0xf]
      %v327 = vld [vmem:[%s245 + $0xf0] sm:$0xf]
      %v328 = vld [vmem:[%s245 + $0xf4] sm:$0xf]
      %v329 = vld [vmem:[%s245 + $0xf8] sm:$0xf]
      %v330 = vld [vmem:[%s245 + $0xfc] sm:$0xf]
      %v331 = vld [vmem:[%s245 + $0x100] sm:$0xf]
      %v332 = vld [vmem:[%s245 + $0x104] sm:$0xf]
      %v333 = vld [vmem:[%s245 + $0x108] sm:$0xf]
      %v334 = vld [vmem:[%s245 + $0x10c] sm:$0xf]
      %v335 = vld [vmem:[%s245 + $0x110] sm:$0xf]
      %v336 = vld [vmem:[%s245 + $0x114] sm:$0xf]
      %v337 = vld [vmem:[%s245 + $0x118] sm:$0xf]
      %v338 = vld [vmem:[%s245 + $0x11c] sm:$0xf]
      %v339 = vld [vmem:[%s245 + $0x120] sm:$0xf]
      %v340 = vld [vmem:[%s245 + $0x124] sm:$0xf]
      %v341 = vld [vmem:[%s245 + $0x128] sm:$0xf]
      %v342 = vld [vmem:[%s245 + $0x12c] sm:$0xf]
      %v343 = vld [vmem:[%s245 + $0x130] sm:$0xf]
      %v344 = vld [vmem:[%s245 + $0x134] sm:$0xf]
      %v345 = vld [vmem:[%s245 + $0x138] sm:$0xf]
      %v346 = vld [vmem:[%s245 + $0x13c] sm:$0xf]
      %v347 = vld [vmem:[%s245 + $0x140] sm:$0xf]
      %v348 = vld [vmem:[%s245 + $0x144] sm:$0xf]
      %v349 = vld [vmem:[%s245 + $0x148] sm:$0xf]
      %v350 = vld [vmem:[%s245 + $0x14c] sm:$0xf]
      %v351 = vld [vmem:[%s245 + $0x150] sm:$0xf]
      %v352 = vld [vmem:[%s245 + $0x154] sm:$0xf]
      %v353 = vld [vmem:[%s245 + $0x158] sm:$0xf]
      %v354 = vld [vmem:[%s245 + $0x15c] sm:$0xf]
      %v355 = vld [vmem:[%s245 + $0x160] sm:$0xf]
      %v356 = vld [vmem:[%s245 + $0x164] sm:$0xf]
      %v357 = vld [vmem:[%s245 + $0x168] sm:$0xf]
      %v358 = vld [vmem:[%s245 + $0x16c] sm:$0xf]
      %v359 = vld [vmem:[%s245 + $0x170] sm:$0xf]
      %v360 = vld [vmem:[%s245 + $0x174] sm:$0xf]
      %v361 = vld [vmem:[%s245 + $0x178] sm:$0xf]
      %v362 = vld [vmem:[%s245 + $0x17c] sm:$0xf]
      %v363 = vld [vmem:[%s245 + $0x180] sm:$0xf]
      %v364 = vld [vmem:[%s245 + $0x184] sm:$0xf]
      %v365 = vld [vmem:[%s245 + $0x188] sm:$0xf]
      %v366 = vld [vmem:[%s245 + $0x18c] sm:$0xf]
      %v367 = vld [vmem:[%s245 + $0x190] sm:$0xf]
      %v368 = vld [vmem:[%s245 + $0x194] sm:$0xf]
      %v369 = vld [vmem:[%s245 + $0x198] sm:$0xf]
      %v370 = vld [vmem:[%s245 + $0x19c] sm:$0xf]
      %v371 = vld [vmem:[%s245 + $0x1a0] sm:$0xf]
      %v372 = vld [vmem:[%s245 + $0x1a4] sm:$0xf]
      %v373 = vld [vmem:[%s245 + $0x1a8] sm:$0xf]
      %v374 = vld [vmem:[%s245 + $0x1ac] sm:$0xf]
      %v375 = vld [vmem:[%s245 + $0x1b0] sm:$0xf]
      %v376 = vld [vmem:[%s245 + $0x1b4] sm:$0xf]
      %v377 = vld [vmem:[%s245 + $0x1b8] sm:$0xf]
      %v378 = vld [vmem:[%s245 + $0x1bc] sm:$0xf]
      %v379 = vld [vmem:[%s245 + $0x1c0] sm:$0xf]
      %v380 = vld [vmem:[%s245 + $0x1c4] sm:$0xf]
      %v381 = vld [vmem:[%s245 + $0x1c8] sm:$0xf]
      %v382 = vld [vmem:[%s245 + $0x1cc] sm:$0xf]
      %v383 = vld [vmem:[%s245 + $0x1d0] sm:$0xf]
      %v384 = vld [vmem:[%s245 + $0x1d4] sm:$0xf]
      %v385 = vld [vmem:[%s245 + $0x1d8] sm:$0xf]
      %v386 = vld [vmem:[%s245 + $0x1dc] sm:$0xf]
      %v387 = vld [vmem:[%s245 + $0x1e0] sm:$0xf]
      %v388 = vld [vmem:[%s245 + $0x1e4] sm:$0xf]
      %v389 = vld [vmem:[%s245 + $0x1e8] sm:$0xf]
      %v390 = vld [vmem:[%s245 + $0x1ec] sm:$0xf]
      %v391 = vld [vmem:[%s245 + $0x1f0] sm:$0xf]
      %v392 = vld [vmem:[%s245 + $0x1f4] sm:$0xf]
      %v393 = vld [vmem:[%s245 + $0x1f8] sm:$0xf]
      %v394 = vld [vmem:[%s245 + $0x1fc] sm:$0xf]
      %v395 = vld [vmem:[%s250] sm:$0xf]
      %v396 = vld [vmem:[%s250 + $0x4] sm:$0xf]
      %v397 = vld [vmem:[%s250 + $0x8] sm:$0xf]
      %v398 = vld [vmem:[%s250 + $0xc] sm:$0xf]
      %v527 = vunpack.c.l.b16 %v267
      %v528 = vunpack.c.l.b16 %v268
      %v529 = vunpack.c.l.b16 %v269
      %v530 = vunpack.c.l.b16 %v270
      %v531 = vunpack.c.l.b16 %v271
      %v532 = vunpack.c.l.b16 %v272
      %v533 = vunpack.c.l.b16 %v273
      %v534 = vunpack.c.l.b16 %v274
      %v535 = vunpack.c.l.b16 %v275
      %v536 = vunpack.c.l.b16 %v276
      %v537 = vunpack.c.l.b16 %v277
      %v538 = vunpack.c.l.b16 %v278
      %v539 = vunpack.c.l.b16 %v279
      %v540 = vunpack.c.l.b16 %v280
      %v541 = vunpack.c.l.b16 %v281
      %v542 = vunpack.c.l.b16 %v282
      %v543 = vunpack.c.l.b16 %v283
      %v544 = vunpack.c.l.b16 %v284
      %v545 = vunpack.c.l.b16 %v285
      %v546 = vunpack.c.l.b16 %v286
      %v547 = vunpack.c.l.b16 %v287
      %v548 = vunpack.c.l.b16 %v288
      %v549 = vunpack.c.l.b16 %v289
      %v550 = vunpack.c.l.b16 %v290
      %v551 = vunpack.c.l.b16 %v291
      %v552 = vunpack.c.l.b16 %v292
      %v553 = vunpack.c.l.b16 %v293
      %v554 = vunpack.c.l.b16 %v294
      %v555 = vunpack.c.l.b16 %v295
      %v556 = vunpack.c.l.b16 %v296
      %v557 = vunpack.c.l.b16 %v297
      %v558 = vunpack.c.l.b16 %v298
      %v559 = vunpack.c.l.b16 %v299
      %v560 = vunpack.c.l.b16 %v300
      %v561 = vunpack.c.l.b16 %v301
      %v562 = vunpack.c.l.b16 %v302
      %v563 = vunpack.c.l.b16 %v303
      %v564 = vunpack.c.l.b16 %v304
      %v565 = vunpack.c.l.b16 %v305
      %v566 = vunpack.c.l.b16 %v306
      %v567 = vunpack.c.l.b16 %v307
      %v568 = vunpack.c.l.b16 %v308
      %v569 = vunpack.c.l.b16 %v309
      %v570 = vunpack.c.l.b16 %v310
      %v571 = vunpack.c.l.b16 %v311
      %v572 = vunpack.c.l.b16 %v312
      %v573 = vunpack.c.l.b16 %v313
      %v574 = vunpack.c.l.b16 %v314
      %v575 = vunpack.c.l.b16 %v315
      %v576 = vunpack.c.l.b16 %v316
      %v577 = vunpack.c.l.b16 %v317
      %v578 = vunpack.c.l.b16 %v318
      %v579 = vunpack.c.l.b16 %v319
      %v580 = vunpack.c.l.b16 %v320
      %v581 = vunpack.c.l.b16 %v321
      %v582 = vunpack.c.l.b16 %v322
      %v583 = vunpack.c.l.b16 %v323
      %v584 = vunpack.c.l.b16 %v324
      %v585 = vunpack.c.l.b16 %v325
      %v586 = vunpack.c.l.b16 %v326
      %v587 = vunpack.c.l.b16 %v327
      %v588 = vunpack.c.l.b16 %v328
      %v589 = vunpack.c.l.b16 %v329
      %v590 = vunpack.c.l.b16 %v330
      %v591 = vunpack.c.l.b16 %v331
      %v592 = vunpack.c.l.b16 %v332
      %v593 = vunpack.c.l.b16 %v333
      %v594 = vunpack.c.l.b16 %v334
      %v595 = vunpack.c.l.b16 %v335
      %v596 = vunpack.c.l.b16 %v336
      %v597 = vunpack.c.l.b16 %v337
      %v598 = vunpack.c.l.b16 %v338
      %v599 = vunpack.c.l.b16 %v339
      %v600 = vunpack.c.l.b16 %v340
      %v601 = vunpack.c.l.b16 %v341
      %v602 = vunpack.c.l.b16 %v342
      %v603 = vunpack.c.l.b16 %v343
      %v604 = vunpack.c.l.b16 %v344
      %v605 = vunpack.c.l.b16 %v345
      %v606 = vunpack.c.l.b16 %v346
      %v607 = vunpack.c.l.b16 %v347
      %v608 = vunpack.c.l.b16 %v348
      %v609 = vunpack.c.l.b16 %v349
      %v610 = vunpack.c.l.b16 %v350
      %v611 = vunpack.c.l.b16 %v351
      %v612 = vunpack.c.l.b16 %v352
      %v613 = vunpack.c.l.b16 %v353
      %v614 = vunpack.c.l.b16 %v354
      %v615 = vunpack.c.l.b16 %v355
      %v616 = vunpack.c.l.b16 %v356
      %v617 = vunpack.c.l.b16 %v357
      %v618 = vunpack.c.l.b16 %v358
      %v619 = vunpack.c.l.b16 %v359
      %v620 = vunpack.c.l.b16 %v360
      %v621 = vunpack.c.l.b16 %v361
      %v622 = vunpack.c.l.b16 %v362
      %v623 = vunpack.c.l.b16 %v363
      %v624 = vunpack.c.l.b16 %v364
      %v625 = vunpack.c.l.b16 %v365
      %v626 = vunpack.c.l.b16 %v366
      %v627 = vunpack.c.l.b16 %v367
      %v628 = vunpack.c.l.b16 %v368
      %v629 = vunpack.c.l.b16 %v369
      %v630 = vunpack.c.l.b16 %v370
      %v631 = vunpack.c.l.b16 %v371
      %v632 = vunpack.c.l.b16 %v372
      %v633 = vunpack.c.l.b16 %v373
      %v634 = vunpack.c.l.b16 %v374
      %v635 = vunpack.c.l.b16 %v375
      %v636 = vunpack.c.l.b16 %v376
      %v637 = vunpack.c.l.b16 %v377
      %v638 = vunpack.c.l.b16 %v378
      %v639 = vunpack.c.l.b16 %v379
      %v640 = vunpack.c.l.b16 %v380
      %v641 = vunpack.c.l.b16 %v381
      %v642 = vunpack.c.l.b16 %v382
      %v643 = vunpack.c.l.b16 %v383
      %v644 = vunpack.c.l.b16 %v384
      %v645 = vunpack.c.l.b16 %v385
      %v646 = vunpack.c.l.b16 %v386
      %v647 = vunpack.c.l.b16 %v387
      %v648 = vunpack.c.l.b16 %v388
      %v649 = vunpack.c.l.b16 %v389
      %v650 = vunpack.c.l.b16 %v390
      %v651 = vunpack.c.l.b16 %v391
      %v652 = vunpack.c.l.b16 %v392
      %v653 = vunpack.c.l.b16 %v393
      %v654 = vunpack.c.l.b16 %v394
      %v655 = vpack.c.b16 %v528, %v527
      %v656 = vpack.c.b16 %v530, %v529
      %v657 = vpack.c.b16 %v532, %v531
      %v658 = vpack.c.b16 %v534, %v533
      %v659 = vpack.c.b16 %v536, %v535
      %v660 = vpack.c.b16 %v538, %v537
      %v661 = vpack.c.b16 %v540, %v539
      %v662 = vpack.c.b16 %v542, %v541
      %v663 = vpack.c.b16 %v544, %v543
      %v664 = vpack.c.b16 %v546, %v545
      %v665 = vpack.c.b16 %v548, %v547
      %v666 = vpack.c.b16 %v550, %v549
      %v667 = vpack.c.b16 %v552, %v551
      %v668 = vpack.c.b16 %v554, %v553
      %v669 = vpack.c.b16 %v556, %v555
      %v670 = vpack.c.b16 %v558, %v557
      %v671 = vpack.c.b16 %v560, %v559
      %v672 = vpack.c.b16 %v562, %v561
      %v673 = vpack.c.b16 %v564, %v563
      %v674 = vpack.c.b16 %v566, %v565
      %v675 = vpack.c.b16 %v568, %v567
      %v676 = vpack.c.b16 %v570, %v569
      %v677 = vpack.c.b16 %v572, %v571
      %v678 = vpack.c.b16 %v574, %v573
      %v679 = vpack.c.b16 %v576, %v575
      %v680 = vpack.c.b16 %v578, %v577
      %v681 = vpack.c.b16 %v580, %v579
      %v682 = vpack.c.b16 %v582, %v581
      %v683 = vpack.c.b16 %v584, %v583
      %v684 = vpack.c.b16 %v586, %v585
      %v685 = vpack.c.b16 %v588, %v587
      %v686 = vpack.c.b16 %v590, %v589
      %v687 = vpack.c.b16 %v592, %v591
      %v688 = vpack.c.b16 %v594, %v593
      %v689 = vpack.c.b16 %v596, %v595
      %v690 = vpack.c.b16 %v598, %v597
      %v691 = vpack.c.b16 %v600, %v599
      %v692 = vpack.c.b16 %v602, %v601
      %v693 = vpack.c.b16 %v604, %v603
      %v694 = vpack.c.b16 %v606, %v605
      %v695 = vpack.c.b16 %v608, %v607
      %v696 = vpack.c.b16 %v610, %v609
      %v697 = vpack.c.b16 %v612, %v611
      %v698 = vpack.c.b16 %v614, %v613
      %v699 = vpack.c.b16 %v616, %v615
      %v700 = vpack.c.b16 %v618, %v617
      %v701 = vpack.c.b16 %v620, %v619
      %v702 = vpack.c.b16 %v622, %v621
      %v703 = vpack.c.b16 %v624, %v623
      %v704 = vpack.c.b16 %v626, %v625
      %v705 = vpack.c.b16 %v628, %v627
      %v706 = vpack.c.b16 %v630, %v629
      %v707 = vpack.c.b16 %v632, %v631
      %v708 = vpack.c.b16 %v634, %v633
      %v709 = vpack.c.b16 %v636, %v635
      %v710 = vpack.c.b16 %v638, %v637
      %v711 = vpack.c.b16 %v640, %v639
      %v712 = vpack.c.b16 %v642, %v641
      %v713 = vpack.c.b16 %v644, %v643
      %v714 = vpack.c.b16 %v646, %v645
      %v715 = vpack.c.b16 %v648, %v647
      %v716 = vpack.c.b16 %v650, %v649
      %v717 = vpack.c.b16 %v652, %v651
      %v718 = vpack.c.b16 %v654, %v653
      %v723 = vunpack.c.l.b16 %v395
      %v724 = vunpack.c.l.b16 %v396
      %v725 = vunpack.c.l.b16 %v397
      %v726 = vunpack.c.l.b16 %v398
      %v727 = vpack.c.b16 %v724, %v723
      %v728 = vpack.c.b16 %v726, %v725
      %vm731 = vcmask 261120
      %v733 = vsel %vm731, %v655, 0
      %v736 = vsel %vm731, %v656, 0
      %v739 = vsel %vm731, %v657, 0
      %v742 = vsel %vm731, %v658, 0
      %v745 = vsel %vm731, %v659, 0
      %v748 = vsel %vm731, %v660, 0
      %v751 = vsel %vm731, %v661, 0
      %v754 = vsel %vm731, %v662, 0
      %v757 = vsel %vm731, %v663, 0
      %v760 = vsel %vm731, %v664, 0
      %v763 = vsel %vm731, %v665, 0
      %v766 = vsel %vm731, %v666, 0
      %v769 = vsel %vm731, %v667, 0
      %v772 = vsel %vm731, %v668, 0
      %v775 = vsel %vm731, %v669, 0
      %v778 = vsel %vm731, %v670, 0
      %v781 = vsel %vm731, %v671, 0
      %v784 = vsel %vm731, %v672, 0
      %v787 = vsel %vm731, %v673, 0
      %v790 = vsel %vm731, %v674, 0
      %v793 = vsel %vm731, %v675, 0
      %v796 = vsel %vm731, %v676, 0
      %v799 = vsel %vm731, %v677, 0
      %v802 = vsel %vm731, %v678, 0
      %v805 = vsel %vm731, %v679, 0
      %v808 = vsel %vm731, %v680, 0
      %v811 = vsel %vm731, %v681, 0
      %v814 = vsel %vm731, %v682, 0
      %v817 = vsel %vm731, %v683, 0
      %v820 = vsel %vm731, %v684, 0
      %v823 = vsel %vm731, %v685, 0
      %v826 = vsel %vm731, %v686, 0
      %v829 = vsel %vm731, %v687, 0
      %v832 = vsel %vm731, %v688, 0
      %v835 = vsel %vm731, %v689, 0
      %v838 = vsel %vm731, %v690, 0
      %v841 = vsel %vm731, %v691, 0
      %v844 = vsel %vm731, %v692, 0
      %v847 = vsel %vm731, %v693, 0
      %v850 = vsel %vm731, %v694, 0
      %v853 = vsel %vm731, %v695, 0
      %v856 = vsel %vm731, %v696, 0
      %v859 = vsel %vm731, %v697, 0
      %v862 = vsel %vm731, %v698, 0
      %v865 = vsel %vm731, %v699, 0
      %v868 = vsel %vm731, %v700, 0
      %v871 = vsel %vm731, %v701, 0
      %v874 = vsel %vm731, %v702, 0
      %v877 = vsel %vm731, %v703, 0
      %v880 = vsel %vm731, %v704, 0
      %v883 = vsel %vm731, %v705, 0
      %v886 = vsel %vm731, %v706, 0
      %v889 = vsel %vm731, %v707, 0
      %v892 = vsel %vm731, %v708, 0
      %v895 = vsel %vm731, %v709, 0
      %v898 = vsel %vm731, %v710, 0
      %v901 = vsel %vm731, %v711, 0
      %v904 = vsel %vm731, %v712, 0
      %v907 = vsel %vm731, %v713, 0
      %v910 = vsel %vm731, %v714, 0
      %v913 = vsel %vm731, %v715, 0
      %v916 = vsel %vm731, %v716, 0
      %v919 = vsel %vm731, %v717, 0
      %v922 = vsel %vm731, %v718, 0
      %924 = vmatpush.bf16.msra.mxu0 0
      %925 = vmatpush.bf16.msra.mxu0 0
      %926 = vmatpush.bf16.msra.mxu0 0
      %927 = vmatpush.bf16.msra.mxu0 0
      %928 = vmatpush.bf16.msra.mxu0 0
      %929 = vmatpush.bf16.msra.mxu0 0
      %930 = vmatpush.bf16.msra.mxu0 %v728
      %931 = vmatpush.bf16.msra.mxu0 %v727
      %932 = vmatmul.bf16.gmra.mxu0 %v733
      %v933 = vpop.f32.mrf.mxu0
      %v934 = vadd.f32 0.0, %v933
      %v935 = vpop.f32.mrf.mxu0
      %v936 = vadd.f32 0.0, %v935
      %937 = vmatmul.bf16.gmra.mxu0 %v736
      %v938 = vpop.f32.mrf.mxu0
      %v939 = vadd.f32 0.0, %v938
      %v940 = vpop.f32.mrf.mxu0
      %v941 = vadd.f32 0.0, %v940
      %942 = vmatmul.bf16.gmra.mxu0 %v739
      %v943 = vpop.f32.mrf.mxu0
      %v944 = vadd.f32 0.0, %v943
      %v945 = vpop.f32.mrf.mxu0
      %v946 = vadd.f32 0.0, %v945
      %947 = vmatmul.bf16.gmra.mxu0 %v742
      %v948 = vpop.f32.mrf.mxu0
      %v949 = vadd.f32 0.0, %v948
      %v950 = vpop.f32.mrf.mxu0
      %v951 = vadd.f32 0.0, %v950
      %952 = vmatmul.bf16.gmra.mxu0 %v745
      %v953 = vpop.f32.mrf.mxu0
      %v954 = vadd.f32 0.0, %v953
      %v955 = vpop.f32.mrf.mxu0
      %v956 = vadd.f32 0.0, %v955
      %957 = vmatmul.bf16.gmra.mxu0 %v748
      %v958 = vpop.f32.mrf.mxu0
      %v959 = vadd.f32 0.0, %v958
      %v960 = vpop.f32.mrf.mxu0
      %v961 = vadd.f32 0.0, %v960
      %962 = vmatmul.bf16.gmra.mxu0 %v751
      %v963 = vpop.f32.mrf.mxu0
      %v964 = vadd.f32 0.0, %v963
      %v965 = vpop.f32.mrf.mxu0
      %v966 = vadd.f32 0.0, %v965
      %967 = vmatmul.bf16.gmra.mxu0 %v754
      %v968 = vpop.f32.mrf.mxu0
      %v969 = vadd.f32 0.0, %v968
      %v970 = vpop.f32.mrf.mxu0
      %v971 = vadd.f32 0.0, %v970
      %972 = vmatmul.bf16.gmra.mxu0 %v757
      %v973 = vpop.f32.mrf.mxu0
      %v974 = vadd.f32 0.0, %v973
      %v975 = vpop.f32.mrf.mxu0
      %v976 = vadd.f32 0.0, %v975
      %977 = vmatmul.bf16.gmra.mxu0 %v760
      %v978 = vpop.f32.mrf.mxu0
      %v979 = vadd.f32 0.0, %v978
      %v980 = vpop.f32.mrf.mxu0
      %v981 = vadd.f32 0.0, %v980
      %982 = vmatmul.bf16.gmra.mxu0 %v763
      %v983 = vpop.f32.mrf.mxu0
      %v984 = vadd.f32 0.0, %v983
      %v985 = vpop.f32.mrf.mxu0
      %v986 = vadd.f32 0.0, %v985
      %987 = vmatmul.bf16.gmra.mxu0 %v766
      %v988 = vpop.f32.mrf.mxu0
      %v989 = vadd.f32 0.0, %v988
      %v990 = vpop.f32.mrf.mxu0
      %v991 = vadd.f32 0.0, %v990
      %992 = vmatmul.bf16.gmra.mxu0 %v769
      %v993 = vpop.f32.mrf.mxu0
      %v994 = vadd.f32 0.0, %v993
      %v995 = vpop.f32.mrf.mxu0
      %v996 = vadd.f32 0.0, %v995
      %997 = vmatmul.bf16.gmra.mxu0 %v772
      %v998 = vpop.f32.mrf.mxu0
      %v999 = vadd.f32 0.0, %v998
      %v1000 = vpop.f32.mrf.mxu0
      %v1001 = vadd.f32 0.0, %v1000
      %1002 = vmatmul.bf16.gmra.mxu0 %v775
      %v1003 = vpop.f32.mrf.mxu0
      %v1004 = vadd.f32 0.0, %v1003
      %v1005 = vpop.f32.mrf.mxu0
      %v1006 = vadd.f32 0.0, %v1005
      %1007 = vmatmul.bf16.gmra.mxu0 %v778
      %v1008 = vpop.f32.mrf.mxu0
      %v1009 = vadd.f32 0.0, %v1008
      %v1010 = vpop.f32.mrf.mxu0
      %v1011 = vadd.f32 0.0, %v1010
      %1012 = vmatmul.bf16.gmra.mxu0 %v781
      %v1013 = vpop.f32.mrf.mxu0
      %v1014 = vadd.f32 0.0, %v1013
      %v1015 = vpop.f32.mrf.mxu0
      %v1016 = vadd.f32 0.0, %v1015
      %1017 = vmatmul.bf16.gmra.mxu0 %v784
      %v1018 = vpop.f32.mrf.mxu0
      %v1019 = vadd.f32 0.0, %v1018
      %v1020 = vpop.f32.mrf.mxu0
      %v1021 = vadd.f32 0.0, %v1020
      %1022 = vmatmul.bf16.gmra.mxu0 %v787
      %v1023 = vpop.f32.mrf.mxu0
      %v1024 = vadd.f32 0.0, %v1023
      %v1025 = vpop.f32.mrf.mxu0
      %v1026 = vadd.f32 0.0, %v1025
      %1027 = vmatmul.bf16.gmra.mxu0 %v790
      %v1028 = vpop.f32.mrf.mxu0
      %v1029 = vadd.f32 0.0, %v1028
      %v1030 = vpop.f32.mrf.mxu0
      %v1031 = vadd.f32 0.0, %v1030
      %1032 = vmatmul.bf16.gmra.mxu0 %v793
      %v1033 = vpop.f32.mrf.mxu0
      %v1034 = vadd.f32 0.0, %v1033
      %v1035 = vpop.f32.mrf.mxu0
      %v1036 = vadd.f32 0.0, %v1035
      %1037 = vmatmul.bf16.gmra.mxu0 %v796
      %v1038 = vpop.f32.mrf.mxu0
      %v1039 = vadd.f32 0.0, %v1038
      %v1040 = vpop.f32.mrf.mxu0
      %v1041 = vadd.f32 0.0, %v1040
      %1042 = vmatmul.bf16.gmra.mxu0 %v799
      %v1043 = vpop.f32.mrf.mxu0
      %v1044 = vadd.f32 0.0, %v1043
      %v1045 = vpop.f32.mrf.mxu0
      %v1046 = vadd.f32 0.0, %v1045
      %1047 = vmatmul.bf16.gmra.mxu0 %v802
      %v1048 = vpop.f32.mrf.mxu0
      %v1049 = vadd.f32 0.0, %v1048
      %v1050 = vpop.f32.mrf.mxu0
      %v1051 = vadd.f32 0.0, %v1050
      %1052 = vmatmul.bf16.gmra.mxu0 %v805
      %v1053 = vpop.f32.mrf.mxu0
      %v1054 = vadd.f32 0.0, %v1053
      %v1055 = vpop.f32.mrf.mxu0
      %v1056 = vadd.f32 0.0, %v1055
      %1057 = vmatmul.bf16.gmra.mxu0 %v808
      %v1058 = vpop.f32.mrf.mxu0
      %v1059 = vadd.f32 0.0, %v1058
      %v1060 = vpop.f32.mrf.mxu0
      %v1061 = vadd.f32 0.0, %v1060
      %1062 = vmatmul.bf16.gmra.mxu0 %v811
      %v1063 = vpop.f32.mrf.mxu0
      %v1064 = vadd.f32 0.0, %v1063
      %v1065 = vpop.f32.mrf.mxu0
      %v1066 = vadd.f32 0.0, %v1065
      %1067 = vmatmul.bf16.gmra.mxu0 %v814
      %v1068 = vpop.f32.mrf.mxu0
      %v1069 = vadd.f32 0.0, %v1068
      %v1070 = vpop.f32.mrf.mxu0
      %v1071 = vadd.f32 0.0, %v1070
      %1072 = vmatmul.bf16.gmra.mxu0 %v817
      %v1073 = vpop.f32.mrf.mxu0
      %v1074 = vadd.f32 0.0, %v1073
      %v1075 = vpop.f32.mrf.mxu0
      %v1076 = vadd.f32 0.0, %v1075
      %1077 = vmatmul.bf16.gmra.mxu0 %v820
      %v1078 = vpop.f32.mrf.mxu0
      %v1079 = vadd.f32 0.0, %v1078
      %v1080 = vpop.f32.mrf.mxu0
      %v1081 = vadd.f32 0.0, %v1080
      %1082 = vmatmul.bf16.gmra.mxu0 %v823
      %v1083 = vpop.f32.mrf.mxu0
      %v1084 = vadd.f32 0.0, %v1083
      %v1085 = vpop.f32.mrf.mxu0
      %v1086 = vadd.f32 0.0, %v1085
      %1087 = vmatmul.bf16.gmra.mxu0 %v826
      %v1088 = vpop.f32.mrf.mxu0
      %v1089 = vadd.f32 0.0, %v1088
      %v1090 = vpop.f32.mrf.mxu0
      %v1091 = vadd.f32 0.0, %v1090
      %1092 = vmatmul.bf16.gmra.mxu0 %v829
      %v1093 = vpop.f32.mrf.mxu0
      %v1094 = vadd.f32 0.0, %v1093
      %v1095 = vpop.f32.mrf.mxu0
      %v1096 = vadd.f32 0.0, %v1095
      %1097 = vmatmul.bf16.gmra.mxu0 %v832
      %v1098 = vpop.f32.mrf.mxu0
      %v1099 = vadd.f32 0.0, %v1098
      %v1100 = vpop.f32.mrf.mxu0
      %v1101 = vadd.f32 0.0, %v1100
      %1102 = vmatmul.bf16.gmra.mxu0 %v835
      %v1103 = vpop.f32.mrf.mxu0
      %v1104 = vadd.f32 0.0, %v1103
      %v1105 = vpop.f32.mrf.mxu0
      %v1106 = vadd.f32 0.0, %v1105
      %1107 = vmatmul.bf16.gmra.mxu0 %v838
      %v1108 = vpop.f32.mrf.mxu0
      %v1109 = vadd.f32 0.0, %v1108
      %v1110 = vpop.f32.mrf.mxu0
      %v1111 = vadd.f32 0.0, %v1110
      %1112 = vmatmul.bf16.gmra.mxu0 %v841
      %v1113 = vpop.f32.mrf.mxu0
      %v1114 = vadd.f32 0.0, %v1113
      %v1115 = vpop.f32.mrf.mxu0
      %v1116 = vadd.f32 0.0, %v1115
      %1117 = vmatmul.bf16.gmra.mxu0 %v844
      %v1118 = vpop.f32.mrf.mxu0
      %v1119 = vadd.f32 0.0, %v1118
      %v1120 = vpop.f32.mrf.mxu0
      %v1121 = vadd.f32 0.0, %v1120
      %1122 = vmatmul.bf16.gmra.mxu0 %v847
      %v1123 = vpop.f32.mrf.mxu0
      %v1124 = vadd.f32 0.0, %v1123
      %v1125 = vpop.f32.mrf.mxu0
      %v1126 = vadd.f32 0.0, %v1125
      %1127 = vmatmul.bf16.gmra.mxu0 %v850
      %v1128 = vpop.f32.mrf.mxu0
      %v1129 = vadd.f32 0.0, %v1128
      %v1130 = vpop.f32.mrf.mxu0
      %v1131 = vadd.f32 0.0, %v1130
      %1132 = vmatmul.bf16.gmra.mxu0 %v853
      %v1133 = vpop.f32.mrf.mxu0
      %v1134 = vadd.f32 0.0, %v1133
      %v1135 = vpop.f32.mrf.mxu0
      %v1136 = vadd.f32 0.0, %v1135
      %1137 = vmatmul.bf16.gmra.mxu0 %v856
      %v1138 = vpop.f32.mrf.mxu0
      %v1139 = vadd.f32 0.0, %v1138
      %v1140 = vpop.f32.mrf.mxu0
      %v1141 = vadd.f32 0.0, %v1140
      %1142 = vmatmul.bf16.gmra.mxu0 %v859
      %v1143 = vpop.f32.mrf.mxu0
      %v1144 = vadd.f32 0.0, %v1143
      %v1145 = vpop.f32.mrf.mxu0
      %v1146 = vadd.f32 0.0, %v1145
      %1147 = vmatmul.bf16.gmra.mxu0 %v862
      %v1148 = vpop.f32.mrf.mxu0
      %v1149 = vadd.f32 0.0, %v1148
      %v1150 = vpop.f32.mrf.mxu0
      %v1151 = vadd.f32 0.0, %v1150
      %1152 = vmatmul.bf16.gmra.mxu0 %v865
      %v1153 = vpop.f32.mrf.mxu0
      %v1154 = vadd.f32 0.0, %v1153
      %v1155 = vpop.f32.mrf.mxu0
      %v1156 = vadd.f32 0.0, %v1155
      %1157 = vmatmul.bf16.gmra.mxu0 %v868
      %v1158 = vpop.f32.mrf.mxu0
      %v1159 = vadd.f32 0.0, %v1158
      %v1160 = vpop.f32.mrf.mxu0
      %v1161 = vadd.f32 0.0, %v1160
      %1162 = vmatmul.bf16.gmra.mxu0 %v871
      %v1163 = vpop.f32.mrf.mxu0
      %v1164 = vadd.f32 0.0, %v1163
      %v1165 = vpop.f32.mrf.mxu0
      %v1166 = vadd.f32 0.0, %v1165
      %1167 = vmatmul.bf16.gmra.mxu0 %v874
      %v1168 = vpop.f32.mrf.mxu0
      %v1169 = vadd.f32 0.0, %v1168
      %v1170 = vpop.f32.mrf.mxu0
      %v1171 = vadd.f32 0.0, %v1170
      %1172 = vmatmul.bf16.gmra.mxu0 %v877
      %v1173 = vpop.f32.mrf.mxu0
      %v1174 = vadd.f32 0.0, %v1173
      %v1175 = vpop.f32.mrf.mxu0
      %v1176 = vadd.f32 0.0, %v1175
      %1177 = vmatmul.bf16.gmra.mxu0 %v880
      %v1178 = vpop.f32.mrf.mxu0
      %v1179 = vadd.f32 0.0, %v1178
      %v1180 = vpop.f32.mrf.mxu0
      %v1181 = vadd.f32 0.0, %v1180
      %1182 = vmatmul.bf16.gmra.mxu0 %v883
      %v1183 = vpop.f32.mrf.mxu0
      %v1184 = vadd.f32 0.0, %v1183
      %v1185 = vpop.f32.mrf.mxu0
      %v1186 = vadd.f32 0.0, %v1185
      %1187 = vmatmul.bf16.gmra.mxu0 %v886
      %v1188 = vpop.f32.mrf.mxu0
      %v1189 = vadd.f32 0.0, %v1188
      %v1190 = vpop.f32.mrf.mxu0
      %v1191 = vadd.f32 0.0, %v1190
      %1192 = vmatmul.bf16.gmra.mxu0 %v889
      %v1193 = vpop.f32.mrf.mxu0
      %v1194 = vadd.f32 0.0, %v1193
      %v1195 = vpop.f32.mrf.mxu0
      %v1196 = vadd.f32 0.0, %v1195
      %1197 = vmatmul.bf16.gmra.mxu0 %v892
      %v1198 = vpop.f32.mrf.mxu0
      %v1199 = vadd.f32 0.0, %v1198
      %v1200 = vpop.f32.mrf.mxu0
      %v1201 = vadd.f32 0.0, %v1200
      %1202 = vmatmul.bf16.gmra.mxu0 %v895
      %v1203 = vpop.f32.mrf.mxu0
      %v1204 = vadd.f32 0.0, %v1203
      %v1205 = vpop.f32.mrf.mxu0
      %v1206 = vadd.f32 0.0, %v1205
      %1207 = vmatmul.bf16.gmra.mxu0 %v898
      %v1208 = vpop.f32.mrf.mxu0
      %v1209 = vadd.f32 0.0, %v1208
      %v1210 = vpop.f32.mrf.mxu0
      %v1211 = vadd.f32 0.0, %v1210
      %1212 = vmatmul.bf16.gmra.mxu0 %v901
      %v1213 = vpop.f32.mrf.mxu0
      %v1214 = vadd.f32 0.0, %v1213
      %v1215 = vpop.f32.mrf.mxu0
      %v1216 = vadd.f32 0.0, %v1215
      %1217 = vmatmul.bf16.gmra.mxu0 %v904
      %v1218 = vpop.f32.mrf.mxu0
      %v1219 = vadd.f32 0.0, %v1218
      %v1220 = vpop.f32.mrf.mxu0
      %v1221 = vadd.f32 0.0, %v1220
      %1222 = vmatmul.bf16.gmra.mxu0 %v907
      %v1223 = vpop.f32.mrf.mxu0
      %v1224 = vadd.f32 0.0, %v1223
      %v1225 = vpop.f32.mrf.mxu0
      %v1226 = vadd.f32 0.0, %v1225
      %1227 = vmatmul.bf16.gmra.mxu0 %v910
      %v1228 = vpop.f32.mrf.mxu0
      %v1229 = vadd.f32 0.0, %v1228
      %v1230 = vpop.f32.mrf.mxu0
      %v1231 = vadd.f32 0.0, %v1230
      %1232 = vmatmul.bf16.gmra.mxu0 %v913
      %v1233 = vpop.f32.mrf.mxu0
      %v1234 = vadd.f32 0.0, %v1233
      %v1235 = vpop.f32.mrf.mxu0
      %v1236 = vadd.f32 0.0, %v1235
      %1237 = vmatmul.bf16.gmra.mxu0 %v916
      %v1238 = vpop.f32.mrf.mxu0
      %v1239 = vadd.f32 0.0, %v1238
      %v1240 = vpop.f32.mrf.mxu0
      %v1241 = vadd.f32 0.0, %v1240
      %1242 = vmatmul.bf16.gmra.mxu0 %v919
      %v1243 = vpop.f32.mrf.mxu0
      %v1244 = vadd.f32 0.0, %v1243
      %v1245 = vpop.f32.mrf.mxu0
      %v1246 = vadd.f32 0.0, %v1245
      %1247 = vmatmul.bf16.gmra.mxu0 %v922
      %v1248 = vpop.f32.mrf.mxu0
      %v1249 = vadd.f32 0.0, %v1248
      %v1250 = vpop.f32.mrf.mxu0
      %v1251 = vadd.f32 0.0, %v1250
      %1252 = vdwg.mxu0
      %v1253 = vld [vmem:[%s253] sm:$0x1]
      %v1255 = vperm.slane %v1253, 0
      %v1257 = vmul.f32 %v934, %v1255
      %v1258 = vmul.f32 %v936, %v1255
      %v1259 = vmul.f32 %v939, %v1255
      %v1260 = vmul.f32 %v941, %v1255
      %v1261 = vmul.f32 %v944, %v1255
      %v1262 = vmul.f32 %v946, %v1255
      %v1263 = vmul.f32 %v949, %v1255
      %v1264 = vmul.f32 %v951, %v1255
      %v1265 = vmul.f32 %v954, %v1255
      %v1266 = vmul.f32 %v956, %v1255
      %v1267 = vmul.f32 %v959, %v1255
      %v1268 = vmul.f32 %v961, %v1255
      %v1269 = vmul.f32 %v964, %v1255
      %v1270 = vmul.f32 %v966, %v1255
      %v1271 = vmul.f32 %v969, %v1255
      %v1272 = vmul.f32 %v971, %v1255
      %v1273 = vmul.f32 %v974, %v1255
      %v1274 = vmul.f32 %v976, %v1255
      %v1275 = vmul.f32 %v979, %v1255
      %v1276 = vmul.f32 %v981, %v1255
      %v1277 = vmul.f32 %v984, %v1255
      %v1278 = vmul.f32 %v986, %v1255
      %v1279 = vmul.f32 %v989, %v1255
      %v1280 = vmul.f32 %v991, %v1255
      %v1281 = vmul.f32 %v994, %v1255
      %v1282 = vmul.f32 %v996, %v1255
      %v1283 = vmul.f32 %v999, %v1255
      %v1284 = vmul.f32 %v1001, %v1255
      %v1285 = vmul.f32 %v1004, %v1255
      %v1286 = vmul.f32 %v1006, %v1255
      %v1287 = vmul.f32 %v1009, %v1255
      %v1288 = vmul.f32 %v1011, %v1255
      %v1289 = vmul.f32 %v1014, %v1255
      %v1290 = vmul.f32 %v1016, %v1255
      %v1291 = vmul.f32 %v1019, %v1255
      %v1292 = vmul.f32 %v1021, %v1255
      %v1293 = vmul.f32 %v1024, %v1255
      %v1294 = vmul.f32 %v1026, %v1255
      %v1295 = vmul.f32 %v1029, %v1255
      %v1296 = vmul.f32 %v1031, %v1255
      %v1297 = vmul.f32 %v1034, %v1255
      %v1298 = vmul.f32 %v1036, %v1255
      %v1299 = vmul.f32 %v1039, %v1255
      %v1300 = vmul.f32 %v1041, %v1255
      %v1301 = vmul.f32 %v1044, %v1255
      %v1302 = vmul.f32 %v1046, %v1255
      %v1303 = vmul.f32 %v1049, %v1255
      %v1304 = vmul.f32 %v1051, %v1255
      %v1305 = vmul.f32 %v1054, %v1255
      %v1306 = vmul.f32 %v1056, %v1255
      %v1307 = vmul.f32 %v1059, %v1255
      %v1308 = vmul.f32 %v1061, %v1255
      %v1309 = vmul.f32 %v1064, %v1255
      %v1310 = vmul.f32 %v1066, %v1255
      %v1311 = vmul.f32 %v1069, %v1255
      %v1312 = vmul.f32 %v1071, %v1255
      %v1313 = vmul.f32 %v1074, %v1255
      %v1314 = vmul.f32 %v1076, %v1255
      %v1315 = vmul.f32 %v1079, %v1255
      %v1316 = vmul.f32 %v1081, %v1255
      %v1317 = vmul.f32 %v1084, %v1255
      %v1318 = vmul.f32 %v1086, %v1255
      %v1319 = vmul.f32 %v1089, %v1255
      %v1320 = vmul.f32 %v1091, %v1255
      %v1321 = vmul.f32 %v1094, %v1255
      %v1322 = vmul.f32 %v1096, %v1255
      %v1323 = vmul.f32 %v1099, %v1255
      %v1324 = vmul.f32 %v1101, %v1255
      %v1325 = vmul.f32 %v1104, %v1255
      %v1326 = vmul.f32 %v1106, %v1255
      %v1327 = vmul.f32 %v1109, %v1255
      %v1328 = vmul.f32 %v1111, %v1255
      %v1329 = vmul.f32 %v1114, %v1255
      %v1330 = vmul.f32 %v1116, %v1255
      %v1331 = vmul.f32 %v1119, %v1255
      %v1332 = vmul.f32 %v1121, %v1255
      %v1333 = vmul.f32 %v1124, %v1255
      %v1334 = vmul.f32 %v1126, %v1255
      %v1335 = vmul.f32 %v1129, %v1255
      %v1336 = vmul.f32 %v1131, %v1255
      %v1337 = vmul.f32 %v1134, %v1255
      %v1338 = vmul.f32 %v1136, %v1255
      %v1339 = vmul.f32 %v1139, %v1255
      %v1340 = vmul.f32 %v1141, %v1255
      %v1341 = vmul.f32 %v1144, %v1255
      %v1342 = vmul.f32 %v1146, %v1255
      %v1343 = vmul.f32 %v1149, %v1255
      %v1344 = vmul.f32 %v1151, %v1255
      %v1345 = vmul.f32 %v1154, %v1255
      %v1346 = vmul.f32 %v1156, %v1255
      %v1347 = vmul.f32 %v1159, %v1255
      %v1348 = vmul.f32 %v1161, %v1255
      %v1349 = vmul.f32 %v1164, %v1255
      %v1350 = vmul.f32 %v1166, %v1255
      %v1351 = vmul.f32 %v1169, %v1255
      %v1352 = vmul.f32 %v1171, %v1255
      %v1353 = vmul.f32 %v1174, %v1255
      %v1354 = vmul.f32 %v1176, %v1255
      %v1355 = vmul.f32 %v1179, %v1255
      %v1356 = vmul.f32 %v1181, %v1255
      %v1357 = vmul.f32 %v1184, %v1255
      %v1358 = vmul.f32 %v1186, %v1255
      %v1359 = vmul.f32 %v1189, %v1255
      %v1360 = vmul.f32 %v1191, %v1255
      %v1361 = vmul.f32 %v1194, %v1255
      %v1362 = vmul.f32 %v1196, %v1255
      %v1363 = vmul.f32 %v1199, %v1255
      %v1364 = vmul.f32 %v1201, %v1255
      %v1365 = vmul.f32 %v1204, %v1255
      %v1366 = vmul.f32 %v1206, %v1255
      %v1367 = vmul.f32 %v1209, %v1255
      %v1368 = vmul.f32 %v1211, %v1255
      %v1369 = vmul.f32 %v1214, %v1255
      %v1370 = vmul.f32 %v1216, %v1255
      %v1371 = vmul.f32 %v1219, %v1255
      %v1372 = vmul.f32 %v1221, %v1255
      %v1373 = vmul.f32 %v1224, %v1255
      %v1374 = vmul.f32 %v1226, %v1255
      %v1375 = vmul.f32 %v1229, %v1255
      %v1376 = vmul.f32 %v1231, %v1255
      %v1377 = vmul.f32 %v1234, %v1255
      %v1378 = vmul.f32 %v1236, %v1255
      %v1379 = vmul.f32 %v1239, %v1255
      %v1380 = vmul.f32 %v1241, %v1255
      %v1381 = vmul.f32 %v1244, %v1255
      %v1382 = vmul.f32 %v1246, %v1255
      %v1383 = vmul.f32 %v1249, %v1255
      %v1384 = vmul.f32 %v1251, %v1255
      %v1385 = vld [vmem:[%s256] sm:$0x1]
      %v1387 = vperm.slane %v1385, 0
      %v1389 = vadd.f32 %v1257, %v1387
      %v1390 = vadd.f32 %v1258, %v1387
      %v1391 = vadd.f32 %v1259, %v1387
      %v1392 = vadd.f32 %v1260, %v1387
      %v1393 = vadd.f32 %v1261, %v1387
      %v1394 = vadd.f32 %v1262, %v1387
      %v1395 = vadd.f32 %v1263, %v1387
      %v1396 = vadd.f32 %v1264, %v1387
      %v1397 = vadd.f32 %v1265, %v1387
      %v1398 = vadd.f32 %v1266, %v1387
      %v1399 = vadd.f32 %v1267, %v1387
      %v1400 = vadd.f32 %v1268, %v1387
      %v1401 = vadd.f32 %v1269, %v1387
      %v1402 = vadd.f32 %v1270, %v1387
      %v1403 = vadd.f32 %v1271, %v1387
      %v1404 = vadd.f32 %v1272, %v1387
      %v1405 = vadd.f32 %v1273, %v1387
      %v1406 = vadd.f32 %v1274, %v1387
      %v1407 = vadd.f32 %v1275, %v1387
      %v1408 = vadd.f32 %v1276, %v1387
      %v1409 = vadd.f32 %v1277, %v1387
      %v1410 = vadd.f32 %v1278, %v1387
      %v1411 = vadd.f32 %v1279, %v1387
      %v1412 = vadd.f32 %v1280, %v1387
      %v1413 = vadd.f32 %v1281, %v1387
      %v1414 = vadd.f32 %v1282, %v1387
      %v1415 = vadd.f32 %v1283, %v1387
      %v1416 = vadd.f32 %v1284, %v1387
      %v1417 = vadd.f32 %v1285, %v1387
      %v1418 = vadd.f32 %v1286, %v1387
      %v1419 = vadd.f32 %v1287, %v1387
      %v1420 = vadd.f32 %v1288, %v1387
      %v1421 = vadd.f32 %v1289, %v1387
      %v1422 = vadd.f32 %v1290, %v1387
      %v1423 = vadd.f32 %v1291, %v1387
      %v1424 = vadd.f32 %v1292, %v1387
      %v1425 = vadd.f32 %v1293, %v1387
      %v1426 = vadd.f32 %v1294, %v1387
      %v1427 = vadd.f32 %v1295, %v1387
      %v1428 = vadd.f32 %v1296, %v1387
      %v1429 = vadd.f32 %v1297, %v1387
      %v1430 = vadd.f32 %v1298, %v1387
      %v1431 = vadd.f32 %v1299, %v1387
      %v1432 = vadd.f32 %v1300, %v1387
      %v1433 = vadd.f32 %v1301, %v1387
      %v1434 = vadd.f32 %v1302, %v1387
      %v1435 = vadd.f32 %v1303, %v1387
      %v1436 = vadd.f32 %v1304, %v1387
      %v1437 = vadd.f32 %v1305, %v1387
      %v1438 = vadd.f32 %v1306, %v1387
      %v1439 = vadd.f32 %v1307, %v1387
      %v1440 = vadd.f32 %v1308, %v1387
      %v1441 = vadd.f32 %v1309, %v1387
      %v1442 = vadd.f32 %v1310, %v1387
      %v1443 = vadd.f32 %v1311, %v1387
      %v1444 = vadd.f32 %v1312, %v1387
      %v1445 = vadd.f32 %v1313, %v1387
      %v1446 = vadd.f32 %v1314, %v1387
      %v1447 = vadd.f32 %v1315, %v1387
      %v1448 = vadd.f32 %v1316, %v1387
      %v1449 = vadd.f32 %v1317, %v1387
      %v1450 = vadd.f32 %v1318, %v1387
      %v1451 = vadd.f32 %v1319, %v1387
      %v1452 = vadd.f32 %v1320, %v1387
      %v1453 = vadd.f32 %v1321, %v1387
      %v1454 = vadd.f32 %v1322, %v1387
      %v1455 = vadd.f32 %v1323, %v1387
      %v1456 = vadd.f32 %v1324, %v1387
      %v1457 = vadd.f32 %v1325, %v1387
      %v1458 = vadd.f32 %v1326, %v1387
      %v1459 = vadd.f32 %v1327, %v1387
      %v1460 = vadd.f32 %v1328, %v1387
      %v1461 = vadd.f32 %v1329, %v1387
      %v1462 = vadd.f32 %v1330, %v1387
      %v1463 = vadd.f32 %v1331, %v1387
      %v1464 = vadd.f32 %v1332, %v1387
      %v1465 = vadd.f32 %v1333, %v1387
      %v1466 = vadd.f32 %v1334, %v1387
      %v1467 = vadd.f32 %v1335, %v1387
      %v1468 = vadd.f32 %v1336, %v1387
      %v1469 = vadd.f32 %v1337, %v1387
      %v1470 = vadd.f32 %v1338, %v1387
      %v1471 = vadd.f32 %v1339, %v1387
      %v1472 = vadd.f32 %v1340, %v1387
      %v1473 = vadd.f32 %v1341, %v1387
      %v1474 = vadd.f32 %v1342, %v1387
      %v1475 = vadd.f32 %v1343, %v1387
      %v1476 = vadd.f32 %v1344, %v1387
      %v1477 = vadd.f32 %v1345, %v1387
      %v1478 = vadd.f32 %v1346, %v1387
      %v1479 = vadd.f32 %v1347, %v1387
      %v1480 = vadd.f32 %v1348, %v1387
      %v1481 = vadd.f32 %v1349, %v1387
      %v1482 = vadd.f32 %v1350, %v1387
      %v1483 = vadd.f32 %v1351, %v1387
      %v1484 = vadd.f32 %v1352, %v1387
      %v1485 = vadd.f32 %v1353, %v1387
      %v1486 = vadd.f32 %v1354, %v1387
      %v1487 = vadd.f32 %v1355, %v1387
      %v1488 = vadd.f32 %v1356, %v1387
      %v1489 = vadd.f32 %v1357, %v1387
      %v1490 = vadd.f32 %v1358, %v1387
      %v1491 = vadd.f32 %v1359, %v1387
      %v1492 = vadd.f32 %v1360, %v1387
      %v1493 = vadd.f32 %v1361, %v1387
      %v1494 = vadd.f32 %v1362, %v1387
      %v1495 = vadd.f32 %v1363, %v1387
      %v1496 = vadd.f32 %v1364, %v1387
      %v1497 = vadd.f32 %v1365, %v1387
      %v1498 = vadd.f32 %v1366, %v1387
      %v1499 = vadd.f32 %v1367, %v1387
      %v1500 = vadd.f32 %v1368, %v1387
      %v1501 = vadd.f32 %v1369, %v1387
      %v1502 = vadd.f32 %v1370, %v1387
      %v1503 = vadd.f32 %v1371, %v1387
      %v1504 = vadd.f32 %v1372, %v1387
      %v1505 = vadd.f32 %v1373, %v1387
      %v1506 = vadd.f32 %v1374, %v1387
      %v1507 = vadd.f32 %v1375, %v1387
      %v1508 = vadd.f32 %v1376, %v1387
      %v1509 = vadd.f32 %v1377, %v1387
      %v1510 = vadd.f32 %v1378, %v1387
      %v1511 = vadd.f32 %v1379, %v1387
      %v1512 = vadd.f32 %v1380, %v1387
      %v1513 = vadd.f32 %v1381, %v1387
      %v1514 = vadd.f32 %v1382, %v1387
      %v1515 = vadd.f32 %v1383, %v1387
      %v1516 = vadd.f32 %v1384, %v1387
      %v1517 = vxor.u32 %v1389, 2147483648
      %v1518 = vxor.u32 %v1390, 2147483648
      %v1519 = vxor.u32 %v1391, 2147483648
      %v1520 = vxor.u32 %v1392, 2147483648
      %v1521 = vxor.u32 %v1393, 2147483648
      %v1522 = vxor.u32 %v1394, 2147483648
      %v1523 = vxor.u32 %v1395, 2147483648
      %v1524 = vxor.u32 %v1396, 2147483648
      %v1525 = vxor.u32 %v1397, 2147483648
      %v1526 = vxor.u32 %v1398, 2147483648
      %v1527 = vxor.u32 %v1399, 2147483648
      %v1528 = vxor.u32 %v1400, 2147483648
      %v1529 = vxor.u32 %v1401, 2147483648
      %v1530 = vxor.u32 %v1402, 2147483648
      %v1531 = vxor.u32 %v1403, 2147483648
      %v1532 = vxor.u32 %v1404, 2147483648
      %v1533 = vxor.u32 %v1405, 2147483648
      %v1534 = vxor.u32 %v1406, 2147483648
      %v1535 = vxor.u32 %v1407, 2147483648
      %v1536 = vxor.u32 %v1408, 2147483648
      %v1537 = vxor.u32 %v1409, 2147483648
      %v1538 = vxor.u32 %v1410, 2147483648
      %v1539 = vxor.u32 %v1411, 2147483648
      %v1540 = vxor.u32 %v1412, 2147483648
      %v1541 = vxor.u32 %v1413, 2147483648
      %v1542 = vxor.u32 %v1414, 2147483648
      %v1543 = vxor.u32 %v1415, 2147483648
      %v1544 = vxor.u32 %v1416, 2147483648
      %v1545 = vxor.u32 %v1417, 2147483648
      %v1546 = vxor.u32 %v1418, 2147483648
      %v1547 = vxor.u32 %v1419, 2147483648
      %v1548 = vxor.u32 %v1420, 2147483648
      %v1549 = vxor.u32 %v1421, 2147483648
      %v1550 = vxor.u32 %v1422, 2147483648
      %v1551 = vxor.u32 %v1423, 2147483648
      %v1552 = vxor.u32 %v1424, 2147483648
      %v1553 = vxor.u32 %v1425, 2147483648
      %v1554 = vxor.u32 %v1426, 2147483648
      %v1555 = vxor.u32 %v1427, 2147483648
      %v1556 = vxor.u32 %v1428, 2147483648
      %v1557 = vxor.u32 %v1429, 2147483648
      %v1558 = vxor.u32 %v1430, 2147483648
      %v1559 = vxor.u32 %v1431, 2147483648
      %v1560 = vxor.u32 %v1432, 2147483648
      %v1561 = vxor.u32 %v1433, 2147483648
      %v1562 = vxor.u32 %v1434, 2147483648
      %v1563 = vxor.u32 %v1435, 2147483648
      %v1564 = vxor.u32 %v1436, 2147483648
      %v1565 = vxor.u32 %v1437, 2147483648
      %v1566 = vxor.u32 %v1438, 2147483648
      %v1567 = vxor.u32 %v1439, 2147483648
      %v1568 = vxor.u32 %v1440, 2147483648
      %v1569 = vxor.u32 %v1441, 2147483648
      %v1570 = vxor.u32 %v1442, 2147483648
      %v1571 = vxor.u32 %v1443, 2147483648
      %v1572 = vxor.u32 %v1444, 2147483648
      %v1573 = vxor.u32 %v1445, 2147483648
      %v1574 = vxor.u32 %v1446, 2147483648
      %v1575 = vxor.u32 %v1447, 2147483648
      %v1576 = vxor.u32 %v1448, 2147483648
      %v1577 = vxor.u32 %v1449, 2147483648
      %v1578 = vxor.u32 %v1450, 2147483648
      %v1579 = vxor.u32 %v1451, 2147483648
      %v1580 = vxor.u32 %v1452, 2147483648
      %v1581 = vxor.u32 %v1453, 2147483648
      %v1582 = vxor.u32 %v1454, 2147483648
      %v1583 = vxor.u32 %v1455, 2147483648
      %v1584 = vxor.u32 %v1456, 2147483648
      %v1585 = vxor.u32 %v1457, 2147483648
      %v1586 = vxor.u32 %v1458, 2147483648
      %v1587 = vxor.u32 %v1459, 2147483648
      %v1588 = vxor.u32 %v1460, 2147483648
      %v1589 = vxor.u32 %v1461, 2147483648
      %v1590 = vxor.u32 %v1462, 2147483648
      %v1591 = vxor.u32 %v1463, 2147483648
      %v1592 = vxor.u32 %v1464, 2147483648
      %v1593 = vxor.u32 %v1465, 2147483648
      %v1594 = vxor.u32 %v1466, 2147483648
      %v1595 = vxor.u32 %v1467, 2147483648
      %v1596 = vxor.u32 %v1468, 2147483648
      %v1597 = vxor.u32 %v1469, 2147483648
      %v1598 = vxor.u32 %v1470, 2147483648
      %v1599 = vxor.u32 %v1471, 2147483648
      %v1600 = vxor.u32 %v1472, 2147483648
      %v1601 = vxor.u32 %v1473, 2147483648
      %v1602 = vxor.u32 %v1474, 2147483648
      %v1603 = vxor.u32 %v1475, 2147483648
      %v1604 = vxor.u32 %v1476, 2147483648
      %v1605 = vxor.u32 %v1477, 2147483648
      %v1606 = vxor.u32 %v1478, 2147483648
      %v1607 = vxor.u32 %v1479, 2147483648
      %v1608 = vxor.u32 %v1480, 2147483648
      %v1609 = vxor.u32 %v1481, 2147483648
      %v1610 = vxor.u32 %v1482, 2147483648
      %v1611 = vxor.u32 %v1483, 2147483648
      %v1612 = vxor.u32 %v1484, 2147483648
      %v1613 = vxor.u32 %v1485, 2147483648
      %v1614 = vxor.u32 %v1486, 2147483648
      %v1615 = vxor.u32 %v1487, 2147483648
      %v1616 = vxor.u32 %v1488, 2147483648
      %v1617 = vxor.u32 %v1489, 2147483648
      %v1618 = vxor.u32 %v1490, 2147483648
      %v1619 = vxor.u32 %v1491, 2147483648
      %v1620 = vxor.u32 %v1492, 2147483648
      %v1621 = vxor.u32 %v1493, 2147483648
      %v1622 = vxor.u32 %v1494, 2147483648
      %v1623 = vxor.u32 %v1495, 2147483648
      %v1624 = vxor.u32 %v1496, 2147483648
      %v1625 = vxor.u32 %v1497, 2147483648
      %v1626 = vxor.u32 %v1498, 2147483648
      %v1627 = vxor.u32 %v1499, 2147483648
      %v1628 = vxor.u32 %v1500, 2147483648
      %v1629 = vxor.u32 %v1501, 2147483648
      %v1630 = vxor.u32 %v1502, 2147483648
      %v1631 = vxor.u32 %v1503, 2147483648
      %v1632 = vxor.u32 %v1504, 2147483648
      %v1633 = vxor.u32 %v1505, 2147483648
      %v1634 = vxor.u32 %v1506, 2147483648
      %v1635 = vxor.u32 %v1507, 2147483648
      %v1636 = vxor.u32 %v1508, 2147483648
      %v1637 = vxor.u32 %v1509, 2147483648
      %v1638 = vxor.u32 %v1510, 2147483648
      %v1639 = vxor.u32 %v1511, 2147483648
      %v1640 = vxor.u32 %v1512, 2147483648
      %v1641 = vxor.u32 %v1513, 2147483648
      %v1642 = vxor.u32 %v1514, 2147483648
      %v1643 = vxor.u32 %v1515, 2147483648
      %v1644 = vxor.u32 %v1516, 2147483648
      %v1645 = vmul.f32 %v1517, 1.442695
      %v1646 = vpow.pop %v1645
      %v1647 = vmul.f32 %v1518, 1.442695
      %v1648 = vpow.pop %v1647
      %v1649 = vmul.f32 %v1519, 1.442695
      %v1650 = vpow.pop %v1649
      %v1651 = vmul.f32 %v1520, 1.442695
      %v1652 = vpow.pop %v1651
      %v1653 = vmul.f32 %v1521, 1.442695
      %v1654 = vpow.pop %v1653
      %v1655 = vmul.f32 %v1522, 1.442695
      %v1656 = vpow.pop %v1655
      %v1657 = vmul.f32 %v1523, 1.442695
      %v1658 = vpow.pop %v1657
      %v1659 = vmul.f32 %v1524, 1.442695
      %v1660 = vpow.pop %v1659
      %v1661 = vmul.f32 %v1525, 1.442695
      %v1662 = vpow.pop %v1661
      %v1663 = vmul.f32 %v1526, 1.442695
      %v1664 = vpow.pop %v1663
      %v1665 = vmul.f32 %v1527, 1.442695
      %v1666 = vpow.pop %v1665
      %v1667 = vmul.f32 %v1528, 1.442695
      %v1668 = vpow.pop %v1667
      %v1669 = vmul.f32 %v1529, 1.442695
      %v1670 = vpow.pop %v1669
      %v1671 = vmul.f32 %v1530, 1.442695
      %v1672 = vpow.pop %v1671
      %v1673 = vmul.f32 %v1531, 1.442695
      %v1674 = vpow.pop %v1673
      %v1675 = vmul.f32 %v1532, 1.442695
      %v1676 = vpow.pop %v1675
      %v1677 = vmul.f32 %v1533, 1.442695
      %v1678 = vpow.pop %v1677
      %v1679 = vmul.f32 %v1534, 1.442695
      %v1680 = vpow.pop %v1679
      %v1681 = vmul.f32 %v1535, 1.442695
      %v1682 = vpow.pop %v1681
      %v1683 = vmul.f32 %v1536, 1.442695
      %v1684 = vpow.pop %v1683
      %v1685 = vmul.f32 %v1537, 1.442695
      %v1686 = vpow.pop %v1685
      %v1687 = vmul.f32 %v1538, 1.442695
      %v1688 = vpow.pop %v1687
      %v1689 = vmul.f32 %v1539, 1.442695
      %v1690 = vpow.pop %v1689
      %v1691 = vmul.f32 %v1540, 1.442695
      %v1692 = vpow.pop %v1691
      %v1693 = vmul.f32 %v1541, 1.442695
      %v1694 = vpow.pop %v1693
      %v1695 = vmul.f32 %v1542, 1.442695
      %v1696 = vpow.pop %v1695
      %v1697 = vmul.f32 %v1543, 1.442695
      %v1698 = vpow.pop %v1697
      %v1699 = vmul.f32 %v1544, 1.442695
      %v1700 = vpow.pop %v1699
      %v1701 = vmul.f32 %v1545, 1.442695
      %v1702 = vpow.pop %v1701
      %v1703 = vmul.f32 %v1546, 1.442695
      %v1704 = vpow.pop %v1703
      %v1705 = vmul.f32 %v1547, 1.442695
      %v1706 = vpow.pop %v1705
      %v1707 = vmul.f32 %v1548, 1.442695
      %v1708 = vpow.pop %v1707
      %v1709 = vmul.f32 %v1549, 1.442695
      %v1710 = vpow.pop %v1709
      %v1711 = vmul.f32 %v1550, 1.442695
      %v1712 = vpow.pop %v1711
      %v1713 = vmul.f32 %v1551, 1.442695
      %v1714 = vpow.pop %v1713
      %v1715 = vmul.f32 %v1552, 1.442695
      %v1716 = vpow.pop %v1715
      %v1717 = vmul.f32 %v1553, 1.442695
      %v1718 = vpow.pop %v1717
      %v1719 = vmul.f32 %v1554, 1.442695
      %v1720 = vpow.pop %v1719
      %v1721 = vmul.f32 %v1555, 1.442695
      %v1722 = vpow.pop %v1721
      %v1723 = vmul.f32 %v1556, 1.442695
      %v1724 = vpow.pop %v1723
      %v1725 = vmul.f32 %v1557, 1.442695
      %v1726 = vpow.pop %v1725
      %v1727 = vmul.f32 %v1558, 1.442695
      %v1728 = vpow.pop %v1727
      %v1729 = vmul.f32 %v1559, 1.442695
      %v1730 = vpow.pop %v1729
      %v1731 = vmul.f32 %v1560, 1.442695
      %v1732 = vpow.pop %v1731
      %v1733 = vmul.f32 %v1561, 1.442695
      %v1734 = vpow.pop %v1733
      %v1735 = vmul.f32 %v1562, 1.442695
      %v1736 = vpow.pop %v1735
      %v1737 = vmul.f32 %v1563, 1.442695
      %v1738 = vpow.pop %v1737
      %v1739 = vmul.f32 %v1564, 1.442695
      %v1740 = vpow.pop %v1739
      %v1741 = vmul.f32 %v1565, 1.442695
      %v1742 = vpow.pop %v1741
      %v1743 = vmul.f32 %v1566, 1.442695
      %v1744 = vpow.pop %v1743
      %v1745 = vmul.f32 %v1567, 1.442695
      %v1746 = vpow.pop %v1745
      %v1747 = vmul.f32 %v1568, 1.442695
      %v1748 = vpow.pop %v1747
      %v1749 = vmul.f32 %v1569, 1.442695
      %v1750 = vpow.pop %v1749
      %v1751 = vmul.f32 %v1570, 1.442695
      %v1752 = vpow.pop %v1751
      %v1753 = vmul.f32 %v1571, 1.442695
      %v1754 = vpow.pop %v1753
      %v1755 = vmul.f32 %v1572, 1.442695
      %v1756 = vpow.pop %v1755
      %v1757 = vmul.f32 %v1573, 1.442695
      %v1758 = vpow.pop %v1757
      %v1759 = vmul.f32 %v1574, 1.442695
      %v1760 = vpow.pop %v1759
      %v1761 = vmul.f32 %v1575, 1.442695
      %v1762 = vpow.pop %v1761
      %v1763 = vmul.f32 %v1576, 1.442695
      %v1764 = vpow.pop %v1763
      %v1765 = vmul.f32 %v1577, 1.442695
      %v1766 = vpow.pop %v1765
      %v1767 = vmul.f32 %v1578, 1.442695
      %v1768 = vpow.pop %v1767
      %v1769 = vmul.f32 %v1579, 1.442695
      %v1770 = vpow.pop %v1769
      %v1771 = vmul.f32 %v1580, 1.442695
      %v1772 = vpow.pop %v1771
      %v1773 = vmul.f32 %v1581, 1.442695
      %v1774 = vpow.pop %v1773
      %v1775 = vmul.f32 %v1582, 1.442695
      %v1776 = vpow.pop %v1775
      %v1777 = vmul.f32 %v1583, 1.442695
      %v1778 = vpow.pop %v1777
      %v1779 = vmul.f32 %v1584, 1.442695
      %v1780 = vpow.pop %v1779
      %v1781 = vmul.f32 %v1585, 1.442695
      %v1782 = vpow.pop %v1781
      %v1783 = vmul.f32 %v1586, 1.442695
      %v1784 = vpow.pop %v1783
      %v1785 = vmul.f32 %v1587, 1.442695
      %v1786 = vpow.pop %v1785
      %v1787 = vmul.f32 %v1588, 1.442695
      %v1788 = vpow.pop %v1787
      %v1789 = vmul.f32 %v1589, 1.442695
      %v1790 = vpow.pop %v1789
      %v1791 = vmul.f32 %v1590, 1.442695
      %v1792 = vpow.pop %v1791
      %v1793 = vmul.f32 %v1591, 1.442695
      %v1794 = vpow.pop %v1793
      %v1795 = vmul.f32 %v1592, 1.442695
      %v1796 = vpow.pop %v1795
      %v1797 = vmul.f32 %v1593, 1.442695
      %v1798 = vpow.pop %v1797
      %v1799 = vmul.f32 %v1594, 1.442695
      %v1800 = vpow.pop %v1799
      %v1801 = vmul.f32 %v1595, 1.442695
      %v1802 = vpow.pop %v1801
      %v1803 = vmul.f32 %v1596, 1.442695
      %v1804 = vpow.pop %v1803
      %v1805 = vmul.f32 %v1597, 1.442695
      %v1806 = vpow.pop %v1805
      %v1807 = vmul.f32 %v1598, 1.442695
      %v1808 = vpow.pop %v1807
      %v1809 = vmul.f32 %v1599, 1.442695
      %v1810 = vpow.pop %v1809
      %v1811 = vmul.f32 %v1600, 1.442695
      %v1812 = vpow.pop %v1811
      %v1813 = vmul.f32 %v1601, 1.442695
      %v1814 = vpow.pop %v1813
      %v1815 = vmul.f32 %v1602, 1.442695
      %v1816 = vpow.pop %v1815
      %v1817 = vmul.f32 %v1603, 1.442695
      %v1818 = vpow.pop %v1817
      %v1819 = vmul.f32 %v1604, 1.442695
      %v1820 = vpow.pop %v1819
      %v1821 = vmul.f32 %v1605, 1.442695
      %v1822 = vpow.pop %v1821
      %v1823 = vmul.f32 %v1606, 1.442695
      %v1824 = vpow.pop %v1823
      %v1825 = vmul.f32 %v1607, 1.442695
      %v1826 = vpow.pop %v1825
      %v1827 = vmul.f32 %v1608, 1.442695
      %v1828 = vpow.pop %v1827
      %v1829 = vmul.f32 %v1609, 1.442695
      %v1830 = vpow.pop %v1829
      %v1831 = vmul.f32 %v1610, 1.442695
      %v1832 = vpow.pop %v1831
      %v1833 = vmul.f32 %v1611, 1.442695
      %v1834 = vpow.pop %v1833
      %v1835 = vmul.f32 %v1612, 1.442695
      %v1836 = vpow.pop %v1835
      %v1837 = vmul.f32 %v1613, 1.442695
      %v1838 = vpow.pop %v1837
      %v1839 = vmul.f32 %v1614, 1.442695
      %v1840 = vpow.pop %v1839
      %v1841 = vmul.f32 %v1615, 1.442695
      %v1842 = vpow.pop %v1841
      %v1843 = vmul.f32 %v1616, 1.442695
      %v1844 = vpow.pop %v1843
      %v1845 = vmul.f32 %v1617, 1.442695
      %v1846 = vpow.pop %v1845
      %v1847 = vmul.f32 %v1618, 1.442695
      %v1848 = vpow.pop %v1847
      %v1849 = vmul.f32 %v1619, 1.442695
      %v1850 = vpow.pop %v1849
      %v1851 = vmul.f32 %v1620, 1.442695
      %v1852 = vpow.pop %v1851
      %v1853 = vmul.f32 %v1621, 1.442695
      %v1854 = vpow.pop %v1853
      %v1855 = vmul.f32 %v1622, 1.442695
      %v1856 = vpow.pop %v1855
      %v1857 = vmul.f32 %v1623, 1.442695
      %v1858 = vpow.pop %v1857
      %v1859 = vmul.f32 %v1624, 1.442695
      %v1860 = vpow.pop %v1859
      %v1861 = vmul.f32 %v1625, 1.442695
      %v1862 = vpow.pop %v1861
      %v1863 = vmul.f32 %v1626, 1.442695
      %v1864 = vpow.pop %v1863
      %v1865 = vmul.f32 %v1627, 1.442695
      %v1866 = vpow.pop %v1865
      %v1867 = vmul.f32 %v1628, 1.442695
      %v1868 = vpow.pop %v1867
      %v1869 = vmul.f32 %v1629, 1.442695
      %v1870 = vpow.pop %v1869
      %v1871 = vmul.f32 %v1630, 1.442695
      %v1872 = vpow.pop %v1871
      %v1873 = vmul.f32 %v1631, 1.442695
      %v1874 = vpow.pop %v1873
      %v1875 = vmul.f32 %v1632, 1.442695
      %v1876 = vpow.pop %v1875
      %v1877 = vmul.f32 %v1633, 1.442695
      %v1878 = vpow.pop %v1877
      %v1879 = vmul.f32 %v1634, 1.442695
      %v1880 = vpow.pop %v1879
      %v1881 = vmul.f32 %v1635, 1.442695
      %v1882 = vpow.pop %v1881
      %v1883 = vmul.f32 %v1636, 1.442695
      %v1884 = vpow.pop %v1883
      %v1885 = vmul.f32 %v1637, 1.442695
      %v1886 = vpow.pop %v1885
      %v1887 = vmul.f32 %v1638, 1.442695
      %v1888 = vpow.pop %v1887
      %v1889 = vmul.f32 %v1639, 1.442695
      %v1890 = vpow.pop %v1889
      %v1891 = vmul.f32 %v1640, 1.442695
      %v1892 = vpow.pop %v1891
      %v1893 = vmul.f32 %v1641, 1.442695
      %v1894 = vpow.pop %v1893
      %v1895 = vmul.f32 %v1642, 1.442695
      %v1896 = vpow.pop %v1895
      %v1897 = vmul.f32 %v1643, 1.442695
      %v1898 = vpow.pop %v1897
      %v1899 = vmul.f32 %v1644, 1.442695
      %v1900 = vpow.pop %v1899
      %v1901 = vadd.f32 %v1646, 1.0
      %v1902 = vadd.f32 %v1648, 1.0
      %v1903 = vadd.f32 %v1650, 1.0
      %v1904 = vadd.f32 %v1652, 1.0
      %v1905 = vadd.f32 %v1654, 1.0
      %v1906 = vadd.f32 %v1656, 1.0
      %v1907 = vadd.f32 %v1658, 1.0
      %v1908 = vadd.f32 %v1660, 1.0
      %v1909 = vadd.f32 %v1662, 1.0
      %v1910 = vadd.f32 %v1664, 1.0
      %v1911 = vadd.f32 %v1666, 1.0
      %v1912 = vadd.f32 %v1668, 1.0
      %v1913 = vadd.f32 %v1670, 1.0
      %v1914 = vadd.f32 %v1672, 1.0
      %v1915 = vadd.f32 %v1674, 1.0
      %v1916 = vadd.f32 %v1676, 1.0
      %v1917 = vadd.f32 %v1678, 1.0
      %v1918 = vadd.f32 %v1680, 1.0
      %v1919 = vadd.f32 %v1682, 1.0
      %v1920 = vadd.f32 %v1684, 1.0
      %v1921 = vadd.f32 %v1686, 1.0
      %v1922 = vadd.f32 %v1688, 1.0
      %v1923 = vadd.f32 %v1690, 1.0
      %v1924 = vadd.f32 %v1692, 1.0
      %v1925 = vadd.f32 %v1694, 1.0
      %v1926 = vadd.f32 %v1696, 1.0
      %v1927 = vadd.f32 %v1698, 1.0
      %v1928 = vadd.f32 %v1700, 1.0
      %v1929 = vadd.f32 %v1702, 1.0
      %v1930 = vadd.f32 %v1704, 1.0
      %v1931 = vadd.f32 %v1706, 1.0
      %v1932 = vadd.f32 %v1708, 1.0
      %v1933 = vadd.f32 %v1710, 1.0
      %v1934 = vadd.f32 %v1712, 1.0
      %v1935 = vadd.f32 %v1714, 1.0
      %v1936 = vadd.f32 %v1716, 1.0
      %v1937 = vadd.f32 %v1718, 1.0
      %v1938 = vadd.f32 %v1720, 1.0
      %v1939 = vadd.f32 %v1722, 1.0
      %v1940 = vadd.f32 %v1724, 1.0
      %v1941 = vadd.f32 %v1726, 1.0
      %v1942 = vadd.f32 %v1728, 1.0
      %v1943 = vadd.f32 %v1730, 1.0
      %v1944 = vadd.f32 %v1732, 1.0
      %v1945 = vadd.f32 %v1734, 1.0
      %v1946 = vadd.f32 %v1736, 1.0
      %v1947 = vadd.f32 %v1738, 1.0
      %v1948 = vadd.f32 %v1740, 1.0
      %v1949 = vadd.f32 %v1742, 1.0
      %v1950 = vadd.f32 %v1744, 1.0
      %v1951 = vadd.f32 %v1746, 1.0
      %v1952 = vadd.f32 %v1748, 1.0
      %v1953 = vadd.f32 %v1750, 1.0
      %v1954 = vadd.f32 %v1752, 1.0
      %v1955 = vadd.f32 %v1754, 1.0
      %v1956 = vadd.f32 %v1756, 1.0
      %v1957 = vadd.f32 %v1758, 1.0
      %v1958 = vadd.f32 %v1760, 1.0
      %v1959 = vadd.f32 %v1762, 1.0
      %v1960 = vadd.f32 %v1764, 1.0
      %v1961 = vadd.f32 %v1766, 1.0
      %v1962 = vadd.f32 %v1768, 1.0
      %v1963 = vadd.f32 %v1770, 1.0
      %v1964 = vadd.f32 %v1772, 1.0
      %v1965 = vadd.f32 %v1774, 1.0
      %v1966 = vadd.f32 %v1776, 1.0
      %v1967 = vadd.f32 %v1778, 1.0
      %v1968 = vadd.f32 %v1780, 1.0
      %v1969 = vadd.f32 %v1782, 1.0
      %v1970 = vadd.f32 %v1784, 1.0
      %v1971 = vadd.f32 %v1786, 1.0
      %v1972 = vadd.f32 %v1788, 1.0
      %v1973 = vadd.f32 %v1790, 1.0
      %v1974 = vadd.f32 %v1792, 1.0
      %v1975 = vadd.f32 %v1794, 1.0
      %v1976 = vadd.f32 %v1796, 1.0
      %v1977 = vadd.f32 %v1798, 1.0
      %v1978 = vadd.f32 %v1800, 1.0
      %v1979 = vadd.f32 %v1802, 1.0
      %v1980 = vadd.f32 %v1804, 1.0
      %v1981 = vadd.f32 %v1806, 1.0
      %v1982 = vadd.f32 %v1808, 1.0
      %v1983 = vadd.f32 %v1810, 1.0
      %v1984 = vadd.f32 %v1812, 1.0
      %v1985 = vadd.f32 %v1814, 1.0
      %v1986 = vadd.f32 %v1816, 1.0
      %v1987 = vadd.f32 %v1818, 1.0
      %v1988 = vadd.f32 %v1820, 1.0
      %v1989 = vadd.f32 %v1822, 1.0
      %v1990 = vadd.f32 %v1824, 1.0
      %v1991 = vadd.f32 %v1826, 1.0
      %v1992 = vadd.f32 %v1828, 1.0
      %v1993 = vadd.f32 %v1830, 1.0
      %v1994 = vadd.f32 %v1832, 1.0
      %v1995 = vadd.f32 %v1834, 1.0
      %v1996 = vadd.f32 %v1836, 1.0
      %v1997 = vadd.f32 %v1838, 1.0
      %v1998 = vadd.f32 %v1840, 1.0
      %v1999 = vadd.f32 %v1842, 1.0
      %v2000 = vadd.f32 %v1844, 1.0
      %v2001 = vadd.f32 %v1846, 1.0
      %v2002 = vadd.f32 %v1848, 1.0
      %v2003 = vadd.f32 %v1850, 1.0
      %v2004 = vadd.f32 %v1852, 1.0
      %v2005 = vadd.f32 %v1854, 1.0
      %v2006 = vadd.f32 %v1856, 1.0
      %v2007 = vadd.f32 %v1858, 1.0
      %v2008 = vadd.f32 %v1860, 1.0
      %v2009 = vadd.f32 %v1862, 1.0
      %v2010 = vadd.f32 %v1864, 1.0
      %v2011 = vadd.f32 %v1866, 1.0
      %v2012 = vadd.f32 %v1868, 1.0
      %v2013 = vadd.f32 %v1870, 1.0
      %v2014 = vadd.f32 %v1872, 1.0
      %v2015 = vadd.f32 %v1874, 1.0
      %v2016 = vadd.f32 %v1876, 1.0
      %v2017 = vadd.f32 %v1878, 1.0
      %v2018 = vadd.f32 %v1880, 1.0
      %v2019 = vadd.f32 %v1882, 1.0
      %v2020 = vadd.f32 %v1884, 1.0
      %v2021 = vadd.f32 %v1886, 1.0
      %v2022 = vadd.f32 %v1888, 1.0
      %v2023 = vadd.f32 %v1890, 1.0
      %v2024 = vadd.f32 %v1892, 1.0
      %v2025 = vadd.f32 %v1894, 1.0
      %v2026 = vadd.f32 %v1896, 1.0
      %v2027 = vadd.f32 %v1898, 1.0
      %v2028 = vadd.f32 %v1900, 1.0
      %v2029 = vrcp.pop %v1901
      %v2030 = vmul.f32 %v1901, %v2029
      %v2031 = vsub.f32 1.0, %v2030
      %v2032 = vmul.f32 %v2029, %v2031
      %v2033 = vadd.f32 %v2029, %v2032
      %vm2034 = vweird.f32 %v1901
      %vm2035 = vweird.f32 %v2029
      %vm2036 = vmor %vm2034, %vm2035
      %v2037 = vsel %vm2036, %v2029, %v2033
      %v2038 = vand.u32 2147483647, %v1901
      %vm2039 = vcmp.eq.f32.partialorder %v2038, 8.507059e+37
      %v2040 = vand.u32 %v1901, 2147483648
      %v2041 = vor.u32 1.1754944e-38, %v2040
      %v2042 = vsel %vm2039, %v2041, %v2037
      %v2043 = vmul.f32 1.0, %v2042
      %v2044 = vrcp.pop %v1902
      %v2045 = vmul.f32 %v1902, %v2044
      %v2046 = vsub.f32 1.0, %v2045
      %v2047 = vmul.f32 %v2044, %v2046
      %v2048 = vadd.f32 %v2044, %v2047
      %vm2049 = vweird.f32 %v1902
      %vm2050 = vweird.f32 %v2044
      %vm2051 = vmor %vm2049, %vm2050
      %v2052 = vsel %vm2051, %v2044, %v2048
      %v2053 = vand.u32 2147483647, %v1902
      %vm2054 = vcmp.eq.f32.partialorder %v2053, 8.507059e+37
      %v2055 = vand.u32 %v1902, 2147483648
      %v2056 = vor.u32 1.1754944e-38, %v2055
      %v2057 = vsel %vm2054, %v2056, %v2052
      %v2058 = vmul.f32 1.0, %v2057
      %v2059 = vrcp.pop %v1903
      %v2060 = vmul.f32 %v1903, %v2059
      %v2061 = vsub.f32 1.0, %v2060
      %v2062 = vmul.f32 %v2059, %v2061
      %v2063 = vadd.f32 %v2059, %v2062
      %vm2064 = vweird.f32 %v1903
      %vm2065 = vweird.f32 %v2059
      %vm2066 = vmor %vm2064, %vm2065
      %v2067 = vsel %vm2066, %v2059, %v2063
      %v2068 = vand.u32 2147483647, %v1903
      %vm2069 = vcmp.eq.f32.partialorder %v2068, 8.507059e+37
      %v2070 = vand.u32 %v1903, 2147483648
      %v2071 = vor.u32 1.1754944e-38, %v2070
      %v2072 = vsel %vm2069, %v2071, %v2067
      %v2073 = vmul.f32 1.0, %v2072
      %v2074 = vrcp.pop %v1904
      %v2075 = vmul.f32 %v1904, %v2074
      %v2076 = vsub.f32 1.0, %v2075
      %v2077 = vmul.f32 %v2074, %v2076
      %v2078 = vadd.f32 %v2074, %v2077
      %vm2079 = vweird.f32 %v1904
      %vm2080 = vweird.f32 %v2074
      %vm2081 = vmor %vm2079, %vm2080
      %v2082 = vsel %vm2081, %v2074, %v2078
      %v2083 = vand.u32 2147483647, %v1904
      %vm2084 = vcmp.eq.f32.partialorder %v2083, 8.507059e+37
      %v2085 = vand.u32 %v1904, 2147483648
      %v2086 = vor.u32 1.1754944e-38, %v2085
      %v2087 = vsel %vm2084, %v2086, %v2082
      %v2088 = vmul.f32 1.0, %v2087
      %v2089 = vrcp.pop %v1905
      %v2090 = vmul.f32 %v1905, %v2089
      %v2091 = vsub.f32 1.0, %v2090
      %v2092 = vmul.f32 %v2089, %v2091
      %v2093 = vadd.f32 %v2089, %v2092
      %vm2094 = vweird.f32 %v1905
      %vm2095 = vweird.f32 %v2089
      %vm2096 = vmor %vm2094, %vm2095
      %v2097 = vsel %vm2096, %v2089, %v2093
      %v2098 = vand.u32 2147483647, %v1905
      %vm2099 = vcmp.eq.f32.partialorder %v2098, 8.507059e+37
      %v2100 = vand.u32 %v1905, 2147483648
      %v2101 = vor.u32 1.1754944e-38, %v2100
      %v2102 = vsel %vm2099, %v2101, %v2097
      %v2103 = vmul.f32 1.0, %v2102
      %v2104 = vrcp.pop %v1906
      %v2105 = vmul.f32 %v1906, %v2104
      %v2106 = vsub.f32 1.0, %v2105
      %v2107 = vmul.f32 %v2104, %v2106
      %v2108 = vadd.f32 %v2104, %v2107
      %vm2109 = vweird.f32 %v1906
      %vm2110 = vweird.f32 %v2104
      %vm2111 = vmor %vm2109, %vm2110
      %v2112 = vsel %vm2111, %v2104, %v2108
      %v2113 = vand.u32 2147483647, %v1906
      %vm2114 = vcmp.eq.f32.partialorder %v2113, 8.507059e+37
      %v2115 = vand.u32 %v1906, 2147483648
      %v2116 = vor.u32 1.1754944e-38, %v2115
      %v2117 = vsel %vm2114, %v2116, %v2112
      %v2118 = vmul.f32 1.0, %v2117
      %v2119 = vrcp.pop %v1907
      %v2120 = vmul.f32 %v1907, %v2119
      %v2121 = vsub.f32 1.0, %v2120
      %v2122 = vmul.f32 %v2119, %v2121
      %v2123 = vadd.f32 %v2119, %v2122
      %vm2124 = vweird.f32 %v1907
      %vm2125 = vweird.f32 %v2119
      %vm2126 = vmor %vm2124, %vm2125
      %v2127 = vsel %vm2126, %v2119, %v2123
      %v2128 = vand.u32 2147483647, %v1907
      %vm2129 = vcmp.eq.f32.partialorder %v2128, 8.507059e+37
      %v2130 = vand.u32 %v1907, 2147483648
      %v2131 = vor.u32 1.1754944e-38, %v2130
      %v2132 = vsel %vm2129, %v2131, %v2127
      %v2133 = vmul.f32 1.0, %v2132
      %v2134 = vrcp.pop %v1908
      %v2135 = vmul.f32 %v1908, %v2134
      %v2136 = vsub.f32 1.0, %v2135
      %v2137 = vmul.f32 %v2134, %v2136
      %v2138 = vadd.f32 %v2134, %v2137
      %vm2139 = vweird.f32 %v1908
      %vm2140 = vweird.f32 %v2134
      %vm2141 = vmor %vm2139, %vm2140
      %v2142 = vsel %vm2141, %v2134, %v2138
      %v2143 = vand.u32 2147483647, %v1908
      %vm2144 = vcmp.eq.f32.partialorder %v2143, 8.507059e+37
      %v2145 = vand.u32 %v1908, 2147483648
      %v2146 = vor.u32 1.1754944e-38, %v2145
      %v2147 = vsel %vm2144, %v2146, %v2142
      %v2148 = vmul.f32 1.0, %v2147
      %v2149 = vrcp.pop %v1909
      %v2150 = vmul.f32 %v1909, %v2149
      %v2151 = vsub.f32 1.0, %v2150
      %v2152 = vmul.f32 %v2149, %v2151
      %v2153 = vadd.f32 %v2149, %v2152
      %vm2154 = vweird.f32 %v1909
      %vm2155 = vweird.f32 %v2149
      %vm2156 = vmor %vm2154, %vm2155
      %v2157 = vsel %vm2156, %v2149, %v2153
      %v2158 = vand.u32 2147483647, %v1909
      %vm2159 = vcmp.eq.f32.partialorder %v2158, 8.507059e+37
      %v2160 = vand.u32 %v1909, 2147483648
      %v2161 = vor.u32 1.1754944e-38, %v2160
      %v2162 = vsel %vm2159, %v2161, %v2157
      %v2163 = vmul.f32 1.0, %v2162
      %v2164 = vrcp.pop %v1910
      %v2165 = vmul.f32 %v1910, %v2164
      %v2166 = vsub.f32 1.0, %v2165
      %v2167 = vmul.f32 %v2164, %v2166
      %v2168 = vadd.f32 %v2164, %v2167
      %vm2169 = vweird.f32 %v1910
      %vm2170 = vweird.f32 %v2164
      %vm2171 = vmor %vm2169, %vm2170
      %v2172 = vsel %vm2171, %v2164, %v2168
      %v2173 = vand.u32 2147483647, %v1910
      %vm2174 = vcmp.eq.f32.partialorder %v2173, 8.507059e+37
      %v2175 = vand.u32 %v1910, 2147483648
      %v2176 = vor.u32 1.1754944e-38, %v2175
      %v2177 = vsel %vm2174, %v2176, %v2172
      %v2178 = vmul.f32 1.0, %v2177
      %v2179 = vrcp.pop %v1911
      %v2180 = vmul.f32 %v1911, %v2179
      %v2181 = vsub.f32 1.0, %v2180
      %v2182 = vmul.f32 %v2179, %v2181
      %v2183 = vadd.f32 %v2179, %v2182
      %vm2184 = vweird.f32 %v1911
      %vm2185 = vweird.f32 %v2179
      %vm2186 = vmor %vm2184, %vm2185
      %v2187 = vsel %vm2186, %v2179, %v2183
      %v2188 = vand.u32 2147483647, %v1911
      %vm2189 = vcmp.eq.f32.partialorder %v2188, 8.507059e+37
      %v2190 = vand.u32 %v1911, 2147483648
      %v2191 = vor.u32 1.1754944e-38, %v2190
      %v2192 = vsel %vm2189, %v2191, %v2187
      %v2193 = vmul.f32 1.0, %v2192
      %v2194 = vrcp.pop %v1912
      %v2195 = vmul.f32 %v1912, %v2194
      %v2196 = vsub.f32 1.0, %v2195
      %v2197 = vmul.f32 %v2194, %v2196
      %v2198 = vadd.f32 %v2194, %v2197
      %vm2199 = vweird.f32 %v1912
      %vm2200 = vweird.f32 %v2194
      %vm2201 = vmor %vm2199, %vm2200
      %v2202 = vsel %vm2201, %v2194, %v2198
      %v2203 = vand.u32 2147483647, %v1912
      %vm2204 = vcmp.eq.f32.partialorder %v2203, 8.507059e+37
      %v2205 = vand.u32 %v1912, 2147483648
      %v2206 = vor.u32 1.1754944e-38, %v2205
      %v2207 = vsel %vm2204, %v2206, %v2202
      %v2208 = vmul.f32 1.0, %v2207
      %v2209 = vrcp.pop %v1913
      %v2210 = vmul.f32 %v1913, %v2209
      %v2211 = vsub.f32 1.0, %v2210
      %v2212 = vmul.f32 %v2209, %v2211
      %v2213 = vadd.f32 %v2209, %v2212
      %vm2214 = vweird.f32 %v1913
      %vm2215 = vweird.f32 %v2209
      %vm2216 = vmor %vm2214, %vm2215
      %v2217 = vsel %vm2216, %v2209, %v2213
      %v2218 = vand.u32 2147483647, %v1913
      %vm2219 = vcmp.eq.f32.partialorder %v2218, 8.507059e+37
      %v2220 = vand.u32 %v1913, 2147483648
      %v2221 = vor.u32 1.1754944e-38, %v2220
      %v2222 = vsel %vm2219, %v2221, %v2217
      %v2223 = vmul.f32 1.0, %v2222
      %v2224 = vrcp.pop %v1914
      %v2225 = vmul.f32 %v1914, %v2224
      %v2226 = vsub.f32 1.0, %v2225
      %v2227 = vmul.f32 %v2224, %v2226
      %v2228 = vadd.f32 %v2224, %v2227
      %vm2229 = vweird.f32 %v1914
      %vm2230 = vweird.f32 %v2224
      %vm2231 = vmor %vm2229, %vm2230
      %v2232 = vsel %vm2231, %v2224, %v2228
      %v2233 = vand.u32 2147483647, %v1914
      %vm2234 = vcmp.eq.f32.partialorder %v2233, 8.507059e+37
      %v2235 = vand.u32 %v1914, 2147483648
      %v2236 = vor.u32 1.1754944e-38, %v2235
      %v2237 = vsel %vm2234, %v2236, %v2232
      %v2238 = vmul.f32 1.0, %v2237
      %v2239 = vrcp.pop %v1915
      %v2240 = vmul.f32 %v1915, %v2239
      %v2241 = vsub.f32 1.0, %v2240
      %v2242 = vmul.f32 %v2239, %v2241
      %v2243 = vadd.f32 %v2239, %v2242
      %vm2244 = vweird.f32 %v1915
      %vm2245 = vweird.f32 %v2239
      %vm2246 = vmor %vm2244, %vm2245
      %v2247 = vsel %vm2246, %v2239, %v2243
      %v2248 = vand.u32 2147483647, %v1915
      %vm2249 = vcmp.eq.f32.partialorder %v2248, 8.507059e+37
      %v2250 = vand.u32 %v1915, 2147483648
      %v2251 = vor.u32 1.1754944e-38, %v2250
      %v2252 = vsel %vm2249, %v2251, %v2247
      %v2253 = vmul.f32 1.0, %v2252
      %v2254 = vrcp.pop %v1916
      %v2255 = vmul.f32 %v1916, %v2254
      %v2256 = vsub.f32 1.0, %v2255
      %v2257 = vmul.f32 %v2254, %v2256
      %v2258 = vadd.f32 %v2254, %v2257
      %vm2259 = vweird.f32 %v1916
      %vm2260 = vweird.f32 %v2254
      %vm2261 = vmor %vm2259, %vm2260
      %v2262 = vsel %vm2261, %v2254, %v2258
      %v2263 = vand.u32 2147483647, %v1916
      %vm2264 = vcmp.eq.f32.partialorder %v2263, 8.507059e+37
      %v2265 = vand.u32 %v1916, 2147483648
      %v2266 = vor.u32 1.1754944e-38, %v2265
      %v2267 = vsel %vm2264, %v2266, %v2262
      %v2268 = vmul.f32 1.0, %v2267
      %v2269 = vrcp.pop %v1917
      %v2270 = vmul.f32 %v1917, %v2269
      %v2271 = vsub.f32 1.0, %v2270
      %v2272 = vmul.f32 %v2269, %v2271
      %v2273 = vadd.f32 %v2269, %v2272
      %vm2274 = vweird.f32 %v1917
      %vm2275 = vweird.f32 %v2269
      %vm2276 = vmor %vm2274, %vm2275
      %v2277 = vsel %vm2276, %v2269, %v2273
      %v2278 = vand.u32 2147483647, %v1917
      %vm2279 = vcmp.eq.f32.partialorder %v2278, 8.507059e+37
      %v2280 = vand.u32 %v1917, 2147483648
      %v2281 = vor.u32 1.1754944e-38, %v2280
      %v2282 = vsel %vm2279, %v2281, %v2277
      %v2283 = vmul.f32 1.0, %v2282
      %v2284 = vrcp.pop %v1918
      %v2285 = vmul.f32 %v1918, %v2284
      %v2286 = vsub.f32 1.0, %v2285
      %v2287 = vmul.f32 %v2284, %v2286
      %v2288 = vadd.f32 %v2284, %v2287
      %vm2289 = vweird.f32 %v1918
      %vm2290 = vweird.f32 %v2284
      %vm2291 = vmor %vm2289, %vm2290
      %v2292 = vsel %vm2291, %v2284, %v2288
      %v2293 = vand.u32 2147483647, %v1918
      %vm2294 = vcmp.eq.f32.partialorder %v2293, 8.507059e+37
      %v2295 = vand.u32 %v1918, 2147483648
      %v2296 = vor.u32 1.1754944e-38, %v2295
      %v2297 = vsel %vm2294, %v2296, %v2292
      %v2298 = vmul.f32 1.0, %v2297
      %v2299 = vrcp.pop %v1919
      %v2300 = vmul.f32 %v1919, %v2299
      %v2301 = vsub.f32 1.0, %v2300
      %v2302 = vmul.f32 %v2299, %v2301
      %v2303 = vadd.f32 %v2299, %v2302
      %vm2304 = vweird.f32 %v1919
      %vm2305 = vweird.f32 %v2299
      %vm2306 = vmor %vm2304, %vm2305
      %v2307 = vsel %vm2306, %v2299, %v2303
      %v2308 = vand.u32 2147483647, %v1919
      %vm2309 = vcmp.eq.f32.partialorder %v2308, 8.507059e+37
      %v2310 = vand.u32 %v1919, 2147483648
      %v2311 = vor.u32 1.1754944e-38, %v2310
      %v2312 = vsel %vm2309, %v2311, %v2307
      %v2313 = vmul.f32 1.0, %v2312
      %v2314 = vrcp.pop %v1920
      %v2315 = vmul.f32 %v1920, %v2314
      %v2316 = vsub.f32 1.0, %v2315
      %v2317 = vmul.f32 %v2314, %v2316
      %v2318 = vadd.f32 %v2314, %v2317
      %vm2319 = vweird.f32 %v1920
      %vm2320 = vweird.f32 %v2314
      %vm2321 = vmor %vm2319, %vm2320
      %v2322 = vsel %vm2321, %v2314, %v2318
      %v2323 = vand.u32 2147483647, %v1920
      %vm2324 = vcmp.eq.f32.partialorder %v2323, 8.507059e+37
      %v2325 = vand.u32 %v1920, 2147483648
      %v2326 = vor.u32 1.1754944e-38, %v2325
      %v2327 = vsel %vm2324, %v2326, %v2322
      %v2328 = vmul.f32 1.0, %v2327
      %v2329 = vrcp.pop %v1921
      %v2330 = vmul.f32 %v1921, %v2329
      %v2331 = vsub.f32 1.0, %v2330
      %v2332 = vmul.f32 %v2329, %v2331
      %v2333 = vadd.f32 %v2329, %v2332
      %vm2334 = vweird.f32 %v1921
      %vm2335 = vweird.f32 %v2329
      %vm2336 = vmor %vm2334, %vm2335
      %v2337 = vsel %vm2336, %v2329, %v2333
      %v2338 = vand.u32 2147483647, %v1921
      %vm2339 = vcmp.eq.f32.partialorder %v2338, 8.507059e+37
      %v2340 = vand.u32 %v1921, 2147483648
      %v2341 = vor.u32 1.1754944e-38, %v2340
      %v2342 = vsel %vm2339, %v2341, %v2337
      %v2343 = vmul.f32 1.0, %v2342
      %v2344 = vrcp.pop %v1922
      %v2345 = vmul.f32 %v1922, %v2344
      %v2346 = vsub.f32 1.0, %v2345
      %v2347 = vmul.f32 %v2344, %v2346
      %v2348 = vadd.f32 %v2344, %v2347
      %vm2349 = vweird.f32 %v1922
      %vm2350 = vweird.f32 %v2344
      %vm2351 = vmor %vm2349, %vm2350
      %v2352 = vsel %vm2351, %v2344, %v2348
      %v2353 = vand.u32 2147483647, %v1922
      %vm2354 = vcmp.eq.f32.partialorder %v2353, 8.507059e+37
      %v2355 = vand.u32 %v1922, 2147483648
      %v2356 = vor.u32 1.1754944e-38, %v2355
      %v2357 = vsel %vm2354, %v2356, %v2352
      %v2358 = vmul.f32 1.0, %v2357
      %v2359 = vrcp.pop %v1923
      %v2360 = vmul.f32 %v1923, %v2359
      %v2361 = vsub.f32 1.0, %v2360
      %v2362 = vmul.f32 %v2359, %v2361
      %v2363 = vadd.f32 %v2359, %v2362
      %vm2364 = vweird.f32 %v1923
      %vm2365 = vweird.f32 %v2359
      %vm2366 = vmor %vm2364, %vm2365
      %v2367 = vsel %vm2366, %v2359, %v2363
      %v2368 = vand.u32 2147483647, %v1923
      %vm2369 = vcmp.eq.f32.partialorder %v2368, 8.507059e+37
      %v2370 = vand.u32 %v1923, 2147483648
      %v2371 = vor.u32 1.1754944e-38, %v2370
      %v2372 = vsel %vm2369, %v2371, %v2367
      %v2373 = vmul.f32 1.0, %v2372
      %v2374 = vrcp.pop %v1924
      %v2375 = vmul.f32 %v1924, %v2374
      %v2376 = vsub.f32 1.0, %v2375
      %v2377 = vmul.f32 %v2374, %v2376
      %v2378 = vadd.f32 %v2374, %v2377
      %vm2379 = vweird.f32 %v1924
      %vm2380 = vweird.f32 %v2374
      %vm2381 = vmor %vm2379, %vm2380
      %v2382 = vsel %vm2381, %v2374, %v2378
      %v2383 = vand.u32 2147483647, %v1924
      %vm2384 = vcmp.eq.f32.partialorder %v2383, 8.507059e+37
      %v2385 = vand.u32 %v1924, 2147483648
      %v2386 = vor.u32 1.1754944e-38, %v2385
      %v2387 = vsel %vm2384, %v2386, %v2382
      %v2388 = vmul.f32 1.0, %v2387
      %v2389 = vrcp.pop %v1925
      %v2390 = vmul.f32 %v1925, %v2389
      %v2391 = vsub.f32 1.0, %v2390
      %v2392 = vmul.f32 %v2389, %v2391
      %v2393 = vadd.f32 %v2389, %v2392
      %vm2394 = vweird.f32 %v1925
      %vm2395 = vweird.f32 %v2389
      %vm2396 = vmor %vm2394, %vm2395
      %v2397 = vsel %vm2396, %v2389, %v2393
      %v2398 = vand.u32 2147483647, %v1925
      %vm2399 = vcmp.eq.f32.partialorder %v2398, 8.507059e+37
      %v2400 = vand.u32 %v1925, 2147483648
      %v2401 = vor.u32 1.1754944e-38, %v2400
      %v2402 = vsel %vm2399, %v2401, %v2397
      %v2403 = vmul.f32 1.0, %v2402
      %v2404 = vrcp.pop %v1926
      %v2405 = vmul.f32 %v1926, %v2404
      %v2406 = vsub.f32 1.0, %v2405
      %v2407 = vmul.f32 %v2404, %v2406
      %v2408 = vadd.f32 %v2404, %v2407
      %vm2409 = vweird.f32 %v1926
      %vm2410 = vweird.f32 %v2404
      %vm2411 = vmor %vm2409, %vm2410
      %v2412 = vsel %vm2411, %v2404, %v2408
      %v2413 = vand.u32 2147483647, %v1926
      %vm2414 = vcmp.eq.f32.partialorder %v2413, 8.507059e+37
      %v2415 = vand.u32 %v1926, 2147483648
      %v2416 = vor.u32 1.1754944e-38, %v2415
      %v2417 = vsel %vm2414, %v2416, %v2412
      %v2418 = vmul.f32 1.0, %v2417
      %v2419 = vrcp.pop %v1927
      %v2420 = vmul.f32 %v1927, %v2419
      %v2421 = vsub.f32 1.0, %v2420
      %v2422 = vmul.f32 %v2419, %v2421
      %v2423 = vadd.f32 %v2419, %v2422
      %vm2424 = vweird.f32 %v1927
      %vm2425 = vweird.f32 %v2419
      %vm2426 = vmor %vm2424, %vm2425
      %v2427 = vsel %vm2426, %v2419, %v2423
      %v2428 = vand.u32 2147483647, %v1927
      %vm2429 = vcmp.eq.f32.partialorder %v2428, 8.507059e+37
      %v2430 = vand.u32 %v1927, 2147483648
      %v2431 = vor.u32 1.1754944e-38, %v2430
      %v2432 = vsel %vm2429, %v2431, %v2427
      %v2433 = vmul.f32 1.0, %v2432
      %v2434 = vrcp.pop %v1928
      %v2435 = vmul.f32 %v1928, %v2434
      %v2436 = vsub.f32 1.0, %v2435
      %v2437 = vmul.f32 %v2434, %v2436
      %v2438 = vadd.f32 %v2434, %v2437
      %vm2439 = vweird.f32 %v1928
      %vm2440 = vweird.f32 %v2434
      %vm2441 = vmor %vm2439, %vm2440
      %v2442 = vsel %vm2441, %v2434, %v2438
      %v2443 = vand.u32 2147483647, %v1928
      %vm2444 = vcmp.eq.f32.partialorder %v2443, 8.507059e+37
      %v2445 = vand.u32 %v1928, 2147483648
      %v2446 = vor.u32 1.1754944e-38, %v2445
      %v2447 = vsel %vm2444, %v2446, %v2442
      %v2448 = vmul.f32 1.0, %v2447
      %v2449 = vrcp.pop %v1929
      %v2450 = vmul.f32 %v1929, %v2449
      %v2451 = vsub.f32 1.0, %v2450
      %v2452 = vmul.f32 %v2449, %v2451
      %v2453 = vadd.f32 %v2449, %v2452
      %vm2454 = vweird.f32 %v1929
      %vm2455 = vweird.f32 %v2449
      %vm2456 = vmor %vm2454, %vm2455
      %v2457 = vsel %vm2456, %v2449, %v2453
      %v2458 = vand.u32 2147483647, %v1929
      %vm2459 = vcmp.eq.f32.partialorder %v2458, 8.507059e+37
      %v2460 = vand.u32 %v1929, 2147483648
      %v2461 = vor.u32 1.1754944e-38, %v2460
      %v2462 = vsel %vm2459, %v2461, %v2457
      %v2463 = vmul.f32 1.0, %v2462
      %v2464 = vrcp.pop %v1930
      %v2465 = vmul.f32 %v1930, %v2464
      %v2466 = vsub.f32 1.0, %v2465
      %v2467 = vmul.f32 %v2464, %v2466
      %v2468 = vadd.f32 %v2464, %v2467
      %vm2469 = vweird.f32 %v1930
      %vm2470 = vweird.f32 %v2464
      %vm2471 = vmor %vm2469, %vm2470
      %v2472 = vsel %vm2471, %v2464, %v2468
      %v2473 = vand.u32 2147483647, %v1930
      %vm2474 = vcmp.eq.f32.partialorder %v2473, 8.507059e+37
      %v2475 = vand.u32 %v1930, 2147483648
      %v2476 = vor.u32 1.1754944e-38, %v2475
      %v2477 = vsel %vm2474, %v2476, %v2472
      %v2478 = vmul.f32 1.0, %v2477
      %v2479 = vrcp.pop %v1931
      %v2480 = vmul.f32 %v1931, %v2479
      %v2481 = vsub.f32 1.0, %v2480
      %v2482 = vmul.f32 %v2479, %v2481
      %v2483 = vadd.f32 %v2479, %v2482
      %vm2484 = vweird.f32 %v1931
      %vm2485 = vweird.f32 %v2479
      %vm2486 = vmor %vm2484, %vm2485
      %v2487 = vsel %vm2486, %v2479, %v2483
      %v2488 = vand.u32 2147483647, %v1931
      %vm2489 = vcmp.eq.f32.partialorder %v2488, 8.507059e+37
      %v2490 = vand.u32 %v1931, 2147483648
      %v2491 = vor.u32 1.1754944e-38, %v2490
      %v2492 = vsel %vm2489, %v2491, %v2487
      %v2493 = vmul.f32 1.0, %v2492
      %v2494 = vrcp.pop %v1932
      %v2495 = vmul.f32 %v1932, %v2494
      %v2496 = vsub.f32 1.0, %v2495
      %v2497 = vmul.f32 %v2494, %v2496
      %v2498 = vadd.f32 %v2494, %v2497
      %vm2499 = vweird.f32 %v1932
      %vm2500 = vweird.f32 %v2494
      %vm2501 = vmor %vm2499, %vm2500
      %v2502 = vsel %vm2501, %v2494, %v2498
      %v2503 = vand.u32 2147483647, %v1932
      %vm2504 = vcmp.eq.f32.partialorder %v2503, 8.507059e+37
      %v2505 = vand.u32 %v1932, 2147483648
      %v2506 = vor.u32 1.1754944e-38, %v2505
      %v2507 = vsel %vm2504, %v2506, %v2502
      %v2508 = vmul.f32 1.0, %v2507
      %v2509 = vrcp.pop %v1933
      %v2510 = vmul.f32 %v1933, %v2509
      %v2511 = vsub.f32 1.0, %v2510
      %v2512 = vmul.f32 %v2509, %v2511
      %v2513 = vadd.f32 %v2509, %v2512
      %vm2514 = vweird.f32 %v1933
      %vm2515 = vweird.f32 %v2509
      %vm2516 = vmor %vm2514, %vm2515
      %v2517 = vsel %vm2516, %v2509, %v2513
      %v2518 = vand.u32 2147483647, %v1933
      %vm2519 = vcmp.eq.f32.partialorder %v2518, 8.507059e+37
      %v2520 = vand.u32 %v1933, 2147483648
      %v2521 = vor.u32 1.1754944e-38, %v2520
      %v2522 = vsel %vm2519, %v2521, %v2517
      %v2523 = vmul.f32 1.0, %v2522
      %v2524 = vrcp.pop %v1934
      %v2525 = vmul.f32 %v1934, %v2524
      %v2526 = vsub.f32 1.0, %v2525
      %v2527 = vmul.f32 %v2524, %v2526
      %v2528 = vadd.f32 %v2524, %v2527
      %vm2529 = vweird.f32 %v1934
      %vm2530 = vweird.f32 %v2524
      %vm2531 = vmor %vm2529, %vm2530
      %v2532 = vsel %vm2531, %v2524, %v2528
      %v2533 = vand.u32 2147483647, %v1934
      %vm2534 = vcmp.eq.f32.partialorder %v2533, 8.507059e+37
      %v2535 = vand.u32 %v1934, 2147483648
      %v2536 = vor.u32 1.1754944e-38, %v2535
      %v2537 = vsel %vm2534, %v2536, %v2532
      %v2538 = vmul.f32 1.0, %v2537
      %v2539 = vrcp.pop %v1935
      %v2540 = vmul.f32 %v1935, %v2539
      %v2541 = vsub.f32 1.0, %v2540
      %v2542 = vmul.f32 %v2539, %v2541
      %v2543 = vadd.f32 %v2539, %v2542
      %vm2544 = vweird.f32 %v1935
      %vm2545 = vweird.f32 %v2539
      %vm2546 = vmor %vm2544, %vm2545
      %v2547 = vsel %vm2546, %v2539, %v2543
      %v2548 = vand.u32 2147483647, %v1935
      %vm2549 = vcmp.eq.f32.partialorder %v2548, 8.507059e+37
      %v2550 = vand.u32 %v1935, 2147483648
      %v2551 = vor.u32 1.1754944e-38, %v2550
      %v2552 = vsel %vm2549, %v2551, %v2547
      %v2553 = vmul.f32 1.0, %v2552
      %v2554 = vrcp.pop %v1936
      %v2555 = vmul.f32 %v1936, %v2554
      %v2556 = vsub.f32 1.0, %v2555
      %v2557 = vmul.f32 %v2554, %v2556
      %v2558 = vadd.f32 %v2554, %v2557
      %vm2559 = vweird.f32 %v1936
      %vm2560 = vweird.f32 %v2554
      %vm2561 = vmor %vm2559, %vm2560
      %v2562 = vsel %vm2561, %v2554, %v2558
      %v2563 = vand.u32 2147483647, %v1936
      %vm2564 = vcmp.eq.f32.partialorder %v2563, 8.507059e+37
      %v2565 = vand.u32 %v1936, 2147483648
      %v2566 = vor.u32 1.1754944e-38, %v2565
      %v2567 = vsel %vm2564, %v2566, %v2562
      %v2568 = vmul.f32 1.0, %v2567
      %v2569 = vrcp.pop %v1937
      %v2570 = vmul.f32 %v1937, %v2569
      %v2571 = vsub.f32 1.0, %v2570
      %v2572 = vmul.f32 %v2569, %v2571
      %v2573 = vadd.f32 %v2569, %v2572
      %vm2574 = vweird.f32 %v1937
      %vm2575 = vweird.f32 %v2569
      %vm2576 = vmor %vm2574, %vm2575
      %v2577 = vsel %vm2576, %v2569, %v2573
      %v2578 = vand.u32 2147483647, %v1937
      %vm2579 = vcmp.eq.f32.partialorder %v2578, 8.507059e+37
      %v2580 = vand.u32 %v1937, 2147483648
      %v2581 = vor.u32 1.1754944e-38, %v2580
      %v2582 = vsel %vm2579, %v2581, %v2577
      %v2583 = vmul.f32 1.0, %v2582
      %v2584 = vrcp.pop %v1938
      %v2585 = vmul.f32 %v1938, %v2584
      %v2586 = vsub.f32 1.0, %v2585
      %v2587 = vmul.f32 %v2584, %v2586
      %v2588 = vadd.f32 %v2584, %v2587
      %vm2589 = vweird.f32 %v1938
      %vm2590 = vweird.f32 %v2584
      %vm2591 = vmor %vm2589, %vm2590
      %v2592 = vsel %vm2591, %v2584, %v2588
      %v2593 = vand.u32 2147483647, %v1938
      %vm2594 = vcmp.eq.f32.partialorder %v2593, 8.507059e+37
      %v2595 = vand.u32 %v1938, 2147483648
      %v2596 = vor.u32 1.1754944e-38, %v2595
      %v2597 = vsel %vm2594, %v2596, %v2592
      %v2598 = vmul.f32 1.0, %v2597
      %v2599 = vrcp.pop %v1939
      %v2600 = vmul.f32 %v1939, %v2599
      %v2601 = vsub.f32 1.0, %v2600
      %v2602 = vmul.f32 %v2599, %v2601
      %v2603 = vadd.f32 %v2599, %v2602
      %vm2604 = vweird.f32 %v1939
      %vm2605 = vweird.f32 %v2599
      %vm2606 = vmor %vm2604, %vm2605
      %v2607 = vsel %vm2606, %v2599, %v2603
      %v2608 = vand.u32 2147483647, %v1939
      %vm2609 = vcmp.eq.f32.partialorder %v2608, 8.507059e+37
      %v2610 = vand.u32 %v1939, 2147483648
      %v2611 = vor.u32 1.1754944e-38, %v2610
      %v2612 = vsel %vm2609, %v2611, %v2607
      %v2613 = vmul.f32 1.0, %v2612
      %v2614 = vrcp.pop %v1940
      %v2615 = vmul.f32 %v1940, %v2614
      %v2616 = vsub.f32 1.0, %v2615
      %v2617 = vmul.f32 %v2614, %v2616
      %v2618 = vadd.f32 %v2614, %v2617
      %vm2619 = vweird.f32 %v1940
      %vm2620 = vweird.f32 %v2614
      %vm2621 = vmor %vm2619, %vm2620
      %v2622 = vsel %vm2621, %v2614, %v2618
      %v2623 = vand.u32 2147483647, %v1940
      %vm2624 = vcmp.eq.f32.partialorder %v2623, 8.507059e+37
      %v2625 = vand.u32 %v1940, 2147483648
      %v2626 = vor.u32 1.1754944e-38, %v2625
      %v2627 = vsel %vm2624, %v2626, %v2622
      %v2628 = vmul.f32 1.0, %v2627
      %v2629 = vrcp.pop %v1941
      %v2630 = vmul.f32 %v1941, %v2629
      %v2631 = vsub.f32 1.0, %v2630
      %v2632 = vmul.f32 %v2629, %v2631
      %v2633 = vadd.f32 %v2629, %v2632
      %vm2634 = vweird.f32 %v1941
      %vm2635 = vweird.f32 %v2629
      %vm2636 = vmor %vm2634, %vm2635
      %v2637 = vsel %vm2636, %v2629, %v2633
      %v2638 = vand.u32 2147483647, %v1941
      %vm2639 = vcmp.eq.f32.partialorder %v2638, 8.507059e+37
      %v2640 = vand.u32 %v1941, 2147483648
      %v2641 = vor.u32 1.1754944e-38, %v2640
      %v2642 = vsel %vm2639, %v2641, %v2637
      %v2643 = vmul.f32 1.0, %v2642
      %v2644 = vrcp.pop %v1942
      %v2645 = vmul.f32 %v1942, %v2644
      %v2646 = vsub.f32 1.0, %v2645
      %v2647 = vmul.f32 %v2644, %v2646
      %v2648 = vadd.f32 %v2644, %v2647
      %vm2649 = vweird.f32 %v1942
      %vm2650 = vweird.f32 %v2644
      %vm2651 = vmor %vm2649, %vm2650
      %v2652 = vsel %vm2651, %v2644, %v2648
      %v2653 = vand.u32 2147483647, %v1942
      %vm2654 = vcmp.eq.f32.partialorder %v2653, 8.507059e+37
      %v2655 = vand.u32 %v1942, 2147483648
      %v2656 = vor.u32 1.1754944e-38, %v2655
      %v2657 = vsel %vm2654, %v2656, %v2652
      %v2658 = vmul.f32 1.0, %v2657
      %v2659 = vrcp.pop %v1943
      %v2660 = vmul.f32 %v1943, %v2659
      %v2661 = vsub.f32 1.0, %v2660
      %v2662 = vmul.f32 %v2659, %v2661
      %v2663 = vadd.f32 %v2659, %v2662
      %vm2664 = vweird.f32 %v1943
      %vm2665 = vweird.f32 %v2659
      %vm2666 = vmor %vm2664, %vm2665
      %v2667 = vsel %vm2666, %v2659, %v2663
      %v2668 = vand.u32 2147483647, %v1943
      %vm2669 = vcmp.eq.f32.partialorder %v2668, 8.507059e+37
      %v2670 = vand.u32 %v1943, 2147483648
      %v2671 = vor.u32 1.1754944e-38, %v2670
      %v2672 = vsel %vm2669, %v2671, %v2667
      %v2673 = vmul.f32 1.0, %v2672
      %v2674 = vrcp.pop %v1944
      %v2675 = vmul.f32 %v1944, %v2674
      %v2676 = vsub.f32 1.0, %v2675
      %v2677 = vmul.f32 %v2674, %v2676
      %v2678 = vadd.f32 %v2674, %v2677
      %vm2679 = vweird.f32 %v1944
      %vm2680 = vweird.f32 %v2674
      %vm2681 = vmor %vm2679, %vm2680
      %v2682 = vsel %vm2681, %v2674, %v2678
      %v2683 = vand.u32 2147483647, %v1944
      %vm2684 = vcmp.eq.f32.partialorder %v2683, 8.507059e+37
      %v2685 = vand.u32 %v1944, 2147483648
      %v2686 = vor.u32 1.1754944e-38, %v2685
      %v2687 = vsel %vm2684, %v2686, %v2682
      %v2688 = vmul.f32 1.0, %v2687
      %v2689 = vrcp.pop %v1945
      %v2690 = vmul.f32 %v1945, %v2689
      %v2691 = vsub.f32 1.0, %v2690
      %v2692 = vmul.f32 %v2689, %v2691
      %v2693 = vadd.f32 %v2689, %v2692
      %vm2694 = vweird.f32 %v1945
      %vm2695 = vweird.f32 %v2689
      %vm2696 = vmor %vm2694, %vm2695
      %v2697 = vsel %vm2696, %v2689, %v2693
      %v2698 = vand.u32 2147483647, %v1945
      %vm2699 = vcmp.eq.f32.partialorder %v2698, 8.507059e+37
      %v2700 = vand.u32 %v1945, 2147483648
      %v2701 = vor.u32 1.1754944e-38, %v2700
      %v2702 = vsel %vm2699, %v2701, %v2697
      %v2703 = vmul.f32 1.0, %v2702
      %v2704 = vrcp.pop %v1946
      %v2705 = vmul.f32 %v1946, %v2704
      %v2706 = vsub.f32 1.0, %v2705
      %v2707 = vmul.f32 %v2704, %v2706
      %v2708 = vadd.f32 %v2704, %v2707
      %vm2709 = vweird.f32 %v1946
      %vm2710 = vweird.f32 %v2704
      %vm2711 = vmor %vm2709, %vm2710
      %v2712 = vsel %vm2711, %v2704, %v2708
      %v2713 = vand.u32 2147483647, %v1946
      %vm2714 = vcmp.eq.f32.partialorder %v2713, 8.507059e+37
      %v2715 = vand.u32 %v1946, 2147483648
      %v2716 = vor.u32 1.1754944e-38, %v2715
      %v2717 = vsel %vm2714, %v2716, %v2712
      %v2718 = vmul.f32 1.0, %v2717
      %v2719 = vrcp.pop %v1947
      %v2720 = vmul.f32 %v1947, %v2719
      %v2721 = vsub.f32 1.0, %v2720
      %v2722 = vmul.f32 %v2719, %v2721
      %v2723 = vadd.f32 %v2719, %v2722
      %vm2724 = vweird.f32 %v1947
      %vm2725 = vweird.f32 %v2719
      %vm2726 = vmor %vm2724, %vm2725
      %v2727 = vsel %vm2726, %v2719, %v2723
      %v2728 = vand.u32 2147483647, %v1947
      %vm2729 = vcmp.eq.f32.partialorder %v2728, 8.507059e+37
      %v2730 = vand.u32 %v1947, 2147483648
      %v2731 = vor.u32 1.1754944e-38, %v2730
      %v2732 = vsel %vm2729, %v2731, %v2727
      %v2733 = vmul.f32 1.0, %v2732
      %v2734 = vrcp.pop %v1948
      %v2735 = vmul.f32 %v1948, %v2734
      %v2736 = vsub.f32 1.0, %v2735
      %v2737 = vmul.f32 %v2734, %v2736
      %v2738 = vadd.f32 %v2734, %v2737
      %vm2739 = vweird.f32 %v1948
      %vm2740 = vweird.f32 %v2734
      %vm2741 = vmor %vm2739, %vm2740
      %v2742 = vsel %vm2741, %v2734, %v2738
      %v2743 = vand.u32 2147483647, %v1948
      %vm2744 = vcmp.eq.f32.partialorder %v2743, 8.507059e+37
      %v2745 = vand.u32 %v1948, 2147483648
      %v2746 = vor.u32 1.1754944e-38, %v2745
      %v2747 = vsel %vm2744, %v2746, %v2742
      %v2748 = vmul.f32 1.0, %v2747
      %v2749 = vrcp.pop %v1949
      %v2750 = vmul.f32 %v1949, %v2749
      %v2751 = vsub.f32 1.0, %v2750
      %v2752 = vmul.f32 %v2749, %v2751
      %v2753 = vadd.f32 %v2749, %v2752
      %vm2754 = vweird.f32 %v1949
      %vm2755 = vweird.f32 %v2749
      %vm2756 = vmor %vm2754, %vm2755
      %v2757 = vsel %vm2756, %v2749, %v2753
      %v2758 = vand.u32 2147483647, %v1949
      %vm2759 = vcmp.eq.f32.partialorder %v2758, 8.507059e+37
      %v2760 = vand.u32 %v1949, 2147483648
      %v2761 = vor.u32 1.1754944e-38, %v2760
      %v2762 = vsel %vm2759, %v2761, %v2757
      %v2763 = vmul.f32 1.0, %v2762
      %v2764 = vrcp.pop %v1950
      %v2765 = vmul.f32 %v1950, %v2764
      %v2766 = vsub.f32 1.0, %v2765
      %v2767 = vmul.f32 %v2764, %v2766
      %v2768 = vadd.f32 %v2764, %v2767
      %vm2769 = vweird.f32 %v1950
      %vm2770 = vweird.f32 %v2764
      %vm2771 = vmor %vm2769, %vm2770
      %v2772 = vsel %vm2771, %v2764, %v2768
      %v2773 = vand.u32 2147483647, %v1950
      %vm2774 = vcmp.eq.f32.partialorder %v2773, 8.507059e+37
      %v2775 = vand.u32 %v1950, 2147483648
      %v2776 = vor.u32 1.1754944e-38, %v2775
      %v2777 = vsel %vm2774, %v2776, %v2772
      %v2778 = vmul.f32 1.0, %v2777
      %v2779 = vrcp.pop %v1951
      %v2780 = vmul.f32 %v1951, %v2779
      %v2781 = vsub.f32 1.0, %v2780
      %v2782 = vmul.f32 %v2779, %v2781
      %v2783 = vadd.f32 %v2779, %v2782
      %vm2784 = vweird.f32 %v1951
      %vm2785 = vweird.f32 %v2779
      %vm2786 = vmor %vm2784, %vm2785
      %v2787 = vsel %vm2786, %v2779, %v2783
      %v2788 = vand.u32 2147483647, %v1951
      %vm2789 = vcmp.eq.f32.partialorder %v2788, 8.507059e+37
      %v2790 = vand.u32 %v1951, 2147483648
      %v2791 = vor.u32 1.1754944e-38, %v2790
      %v2792 = vsel %vm2789, %v2791, %v2787
      %v2793 = vmul.f32 1.0, %v2792
      %v2794 = vrcp.pop %v1952
      %v2795 = vmul.f32 %v1952, %v2794
      %v2796 = vsub.f32 1.0, %v2795
      %v2797 = vmul.f32 %v2794, %v2796
      %v2798 = vadd.f32 %v2794, %v2797
      %vm2799 = vweird.f32 %v1952
      %vm2800 = vweird.f32 %v2794
      %vm2801 = vmor %vm2799, %vm2800
      %v2802 = vsel %vm2801, %v2794, %v2798
      %v2803 = vand.u32 2147483647, %v1952
      %vm2804 = vcmp.eq.f32.partialorder %v2803, 8.507059e+37
      %v2805 = vand.u32 %v1952, 2147483648
      %v2806 = vor.u32 1.1754944e-38, %v2805
      %v2807 = vsel %vm2804, %v2806, %v2802
      %v2808 = vmul.f32 1.0, %v2807
      %v2809 = vrcp.pop %v1953
      %v2810 = vmul.f32 %v1953, %v2809
      %v2811 = vsub.f32 1.0, %v2810
      %v2812 = vmul.f32 %v2809, %v2811
      %v2813 = vadd.f32 %v2809, %v2812
      %vm2814 = vweird.f32 %v1953
      %vm2815 = vweird.f32 %v2809
      %vm2816 = vmor %vm2814, %vm2815
      %v2817 = vsel %vm2816, %v2809, %v2813
      %v2818 = vand.u32 2147483647, %v1953
      %vm2819 = vcmp.eq.f32.partialorder %v2818, 8.507059e+37
      %v2820 = vand.u32 %v1953, 2147483648
      %v2821 = vor.u32 1.1754944e-38, %v2820
      %v2822 = vsel %vm2819, %v2821, %v2817
      %v2823 = vmul.f32 1.0, %v2822
      %v2824 = vrcp.pop %v1954
      %v2825 = vmul.f32 %v1954, %v2824
      %v2826 = vsub.f32 1.0, %v2825
      %v2827 = vmul.f32 %v2824, %v2826
      %v2828 = vadd.f32 %v2824, %v2827
      %vm2829 = vweird.f32 %v1954
      %vm2830 = vweird.f32 %v2824
      %vm2831 = vmor %vm2829, %vm2830
      %v2832 = vsel %vm2831, %v2824, %v2828
      %v2833 = vand.u32 2147483647, %v1954
      %vm2834 = vcmp.eq.f32.partialorder %v2833, 8.507059e+37
      %v2835 = vand.u32 %v1954, 2147483648
      %v2836 = vor.u32 1.1754944e-38, %v2835
      %v2837 = vsel %vm2834, %v2836, %v2832
      %v2838 = vmul.f32 1.0, %v2837
      %v2839 = vrcp.pop %v1955
      %v2840 = vmul.f32 %v1955, %v2839
      %v2841 = vsub.f32 1.0, %v2840
      %v2842 = vmul.f32 %v2839, %v2841
      %v2843 = vadd.f32 %v2839, %v2842
      %vm2844 = vweird.f32 %v1955
      %vm2845 = vweird.f32 %v2839
      %vm2846 = vmor %vm2844, %vm2845
      %v2847 = vsel %vm2846, %v2839, %v2843
      %v2848 = vand.u32 2147483647, %v1955
      %vm2849 = vcmp.eq.f32.partialorder %v2848, 8.507059e+37
      %v2850 = vand.u32 %v1955, 2147483648
      %v2851 = vor.u32 1.1754944e-38, %v2850
      %v2852 = vsel %vm2849, %v2851, %v2847
      %v2853 = vmul.f32 1.0, %v2852
      %v2854 = vrcp.pop %v1956
      %v2855 = vmul.f32 %v1956, %v2854
      %v2856 = vsub.f32 1.0, %v2855
      %v2857 = vmul.f32 %v2854, %v2856
      %v2858 = vadd.f32 %v2854, %v2857
      %vm2859 = vweird.f32 %v1956
      %vm2860 = vweird.f32 %v2854
      %vm2861 = vmor %vm2859, %vm2860
      %v2862 = vsel %vm2861, %v2854, %v2858
      %v2863 = vand.u32 2147483647, %v1956
      %vm2864 = vcmp.eq.f32.partialorder %v2863, 8.507059e+37
      %v2865 = vand.u32 %v1956, 2147483648
      %v2866 = vor.u32 1.1754944e-38, %v2865
      %v2867 = vsel %vm2864, %v2866, %v2862
      %v2868 = vmul.f32 1.0, %v2867
      %v2869 = vrcp.pop %v1957
      %v2870 = vmul.f32 %v1957, %v2869
      %v2871 = vsub.f32 1.0, %v2870
      %v2872 = vmul.f32 %v2869, %v2871
      %v2873 = vadd.f32 %v2869, %v2872
      %vm2874 = vweird.f32 %v1957
      %vm2875 = vweird.f32 %v2869
      %vm2876 = vmor %vm2874, %vm2875
      %v2877 = vsel %vm2876, %v2869, %v2873
      %v2878 = vand.u32 2147483647, %v1957
      %vm2879 = vcmp.eq.f32.partialorder %v2878, 8.507059e+37
      %v2880 = vand.u32 %v1957, 2147483648
      %v2881 = vor.u32 1.1754944e-38, %v2880
      %v2882 = vsel %vm2879, %v2881, %v2877
      %v2883 = vmul.f32 1.0, %v2882
      %v2884 = vrcp.pop %v1958
      %v2885 = vmul.f32 %v1958, %v2884
      %v2886 = vsub.f32 1.0, %v2885
      %v2887 = vmul.f32 %v2884, %v2886
      %v2888 = vadd.f32 %v2884, %v2887
      %vm2889 = vweird.f32 %v1958
      %vm2890 = vweird.f32 %v2884
      %vm2891 = vmor %vm2889, %vm2890
      %v2892 = vsel %vm2891, %v2884, %v2888
      %v2893 = vand.u32 2147483647, %v1958
      %vm2894 = vcmp.eq.f32.partialorder %v2893, 8.507059e+37
      %v2895 = vand.u32 %v1958, 2147483648
      %v2896 = vor.u32 1.1754944e-38, %v2895
      %v2897 = vsel %vm2894, %v2896, %v2892
      %v2898 = vmul.f32 1.0, %v2897
      %v2899 = vrcp.pop %v1959
      %v2900 = vmul.f32 %v1959, %v2899
      %v2901 = vsub.f32 1.0, %v2900
      %v2902 = vmul.f32 %v2899, %v2901
      %v2903 = vadd.f32 %v2899, %v2902
      %vm2904 = vweird.f32 %v1959
      %vm2905 = vweird.f32 %v2899
      %vm2906 = vmor %vm2904, %vm2905
      %v2907 = vsel %vm2906, %v2899, %v2903
      %v2908 = vand.u32 2147483647, %v1959
      %vm2909 = vcmp.eq.f32.partialorder %v2908, 8.507059e+37
      %v2910 = vand.u32 %v1959, 2147483648
      %v2911 = vor.u32 1.1754944e-38, %v2910
      %v2912 = vsel %vm2909, %v2911, %v2907
      %v2913 = vmul.f32 1.0, %v2912
      %v2914 = vrcp.pop %v1960
      %v2915 = vmul.f32 %v1960, %v2914
      %v2916 = vsub.f32 1.0, %v2915
      %v2917 = vmul.f32 %v2914, %v2916
      %v2918 = vadd.f32 %v2914, %v2917
      %vm2919 = vweird.f32 %v1960
      %vm2920 = vweird.f32 %v2914
      %vm2921 = vmor %vm2919, %vm2920
      %v2922 = vsel %vm2921, %v2914, %v2918
      %v2923 = vand.u32 2147483647, %v1960
      %vm2924 = vcmp.eq.f32.partialorder %v2923, 8.507059e+37
      %v2925 = vand.u32 %v1960, 2147483648
      %v2926 = vor.u32 1.1754944e-38, %v2925
      %v2927 = vsel %vm2924, %v2926, %v2922
      %v2928 = vmul.f32 1.0, %v2927
      %v2929 = vrcp.pop %v1961
      %v2930 = vmul.f32 %v1961, %v2929
      %v2931 = vsub.f32 1.0, %v2930
      %v2932 = vmul.f32 %v2929, %v2931
      %v2933 = vadd.f32 %v2929, %v2932
      %vm2934 = vweird.f32 %v1961
      %vm2935 = vweird.f32 %v2929
      %vm2936 = vmor %vm2934, %vm2935
      %v2937 = vsel %vm2936, %v2929, %v2933
      %v2938 = vand.u32 2147483647, %v1961
      %vm2939 = vcmp.eq.f32.partialorder %v2938, 8.507059e+37
      %v2940 = vand.u32 %v1961, 2147483648
      %v2941 = vor.u32 1.1754944e-38, %v2940
      %v2942 = vsel %vm2939, %v2941, %v2937
      %v2943 = vmul.f32 1.0, %v2942
      %v2944 = vrcp.pop %v1962
      %v2945 = vmul.f32 %v1962, %v2944
      %v2946 = vsub.f32 1.0, %v2945
      %v2947 = vmul.f32 %v2944, %v2946
      %v2948 = vadd.f32 %v2944, %v2947
      %vm2949 = vweird.f32 %v1962
      %vm2950 = vweird.f32 %v2944
      %vm2951 = vmor %vm2949, %vm2950
      %v2952 = vsel %vm2951, %v2944, %v2948
      %v2953 = vand.u32 2147483647, %v1962
      %vm2954 = vcmp.eq.f32.partialorder %v2953, 8.507059e+37
      %v2955 = vand.u32 %v1962, 2147483648
      %v2956 = vor.u32 1.1754944e-38, %v2955
      %v2957 = vsel %vm2954, %v2956, %v2952
      %v2958 = vmul.f32 1.0, %v2957
      %v2959 = vrcp.pop %v1963
      %v2960 = vmul.f32 %v1963, %v2959
      %v2961 = vsub.f32 1.0, %v2960
      %v2962 = vmul.f32 %v2959, %v2961
      %v2963 = vadd.f32 %v2959, %v2962
      %vm2964 = vweird.f32 %v1963
      %vm2965 = vweird.f32 %v2959
      %vm2966 = vmor %vm2964, %vm2965
      %v2967 = vsel %vm2966, %v2959, %v2963
      %v2968 = vand.u32 2147483647, %v1963
      %vm2969 = vcmp.eq.f32.partialorder %v2968, 8.507059e+37
      %v2970 = vand.u32 %v1963, 2147483648
      %v2971 = vor.u32 1.1754944e-38, %v2970
      %v2972 = vsel %vm2969, %v2971, %v2967
      %v2973 = vmul.f32 1.0, %v2972
      %v2974 = vrcp.pop %v1964
      %v2975 = vmul.f32 %v1964, %v2974
      %v2976 = vsub.f32 1.0, %v2975
      %v2977 = vmul.f32 %v2974, %v2976
      %v2978 = vadd.f32 %v2974, %v2977
      %vm2979 = vweird.f32 %v1964
      %vm2980 = vweird.f32 %v2974
      %vm2981 = vmor %vm2979, %vm2980
      %v2982 = vsel %vm2981, %v2974, %v2978
      %v2983 = vand.u32 2147483647, %v1964
      %vm2984 = vcmp.eq.f32.partialorder %v2983, 8.507059e+37
      %v2985 = vand.u32 %v1964, 2147483648
      %v2986 = vor.u32 1.1754944e-38, %v2985
      %v2987 = vsel %vm2984, %v2986, %v2982
      %v2988 = vmul.f32 1.0, %v2987
      %v2989 = vrcp.pop %v1965
      %v2990 = vmul.f32 %v1965, %v2989
      %v2991 = vsub.f32 1.0, %v2990
      %v2992 = vmul.f32 %v2989, %v2991
      %v2993 = vadd.f32 %v2989, %v2992
      %vm2994 = vweird.f32 %v1965
      %vm2995 = vweird.f32 %v2989
      %vm2996 = vmor %vm2994, %vm2995
      %v2997 = vsel %vm2996, %v2989, %v2993
      %v2998 = vand.u32 2147483647, %v1965
      %vm2999 = vcmp.eq.f32.partialorder %v2998, 8.507059e+37
      %v3000 = vand.u32 %v1965, 2147483648
      %v3001 = vor.u32 1.1754944e-38, %v3000
      %v3002 = vsel %vm2999, %v3001, %v2997
      %v3003 = vmul.f32 1.0, %v3002
      %v3004 = vrcp.pop %v1966
      %v3005 = vmul.f32 %v1966, %v3004
      %v3006 = vsub.f32 1.0, %v3005
      %v3007 = vmul.f32 %v3004, %v3006
      %v3008 = vadd.f32 %v3004, %v3007
      %vm3009 = vweird.f32 %v1966
      %vm3010 = vweird.f32 %v3004
      %vm3011 = vmor %vm3009, %vm3010
      %v3012 = vsel %vm3011, %v3004, %v3008
      %v3013 = vand.u32 2147483647, %v1966
      %vm3014 = vcmp.eq.f32.partialorder %v3013, 8.507059e+37
      %v3015 = vand.u32 %v1966, 2147483648
      %v3016 = vor.u32 1.1754944e-38, %v3015
      %v3017 = vsel %vm3014, %v3016, %v3012
      %v3018 = vmul.f32 1.0, %v3017
      %v3019 = vrcp.pop %v1967
      %v3020 = vmul.f32 %v1967, %v3019
      %v3021 = vsub.f32 1.0, %v3020
      %v3022 = vmul.f32 %v3019, %v3021
      %v3023 = vadd.f32 %v3019, %v3022
      %vm3024 = vweird.f32 %v1967
      %vm3025 = vweird.f32 %v3019
      %vm3026 = vmor %vm3024, %vm3025
      %v3027 = vsel %vm3026, %v3019, %v3023
      %v3028 = vand.u32 2147483647, %v1967
      %vm3029 = vcmp.eq.f32.partialorder %v3028, 8.507059e+37
      %v3030 = vand.u32 %v1967, 2147483648
      %v3031 = vor.u32 1.1754944e-38, %v3030
      %v3032 = vsel %vm3029, %v3031, %v3027
      %v3033 = vmul.f32 1.0, %v3032
      %v3034 = vrcp.pop %v1968
      %v3035 = vmul.f32 %v1968, %v3034
      %v3036 = vsub.f32 1.0, %v3035
      %v3037 = vmul.f32 %v3034, %v3036
      %v3038 = vadd.f32 %v3034, %v3037
      %vm3039 = vweird.f32 %v1968
      %vm3040 = vweird.f32 %v3034
      %vm3041 = vmor %vm3039, %vm3040
      %v3042 = vsel %vm3041, %v3034, %v3038
      %v3043 = vand.u32 2147483647, %v1968
      %vm3044 = vcmp.eq.f32.partialorder %v3043, 8.507059e+37
      %v3045 = vand.u32 %v1968, 2147483648
      %v3046 = vor.u32 1.1754944e-38, %v3045
      %v3047 = vsel %vm3044, %v3046, %v3042
      %v3048 = vmul.f32 1.0, %v3047
      %v3049 = vrcp.pop %v1969
      %v3050 = vmul.f32 %v1969, %v3049
      %v3051 = vsub.f32 1.0, %v3050
      %v3052 = vmul.f32 %v3049, %v3051
      %v3053 = vadd.f32 %v3049, %v3052
      %vm3054 = vweird.f32 %v1969
      %vm3055 = vweird.f32 %v3049
      %vm3056 = vmor %vm3054, %vm3055
      %v3057 = vsel %vm3056, %v3049, %v3053
      %v3058 = vand.u32 2147483647, %v1969
      %vm3059 = vcmp.eq.f32.partialorder %v3058, 8.507059e+37
      %v3060 = vand.u32 %v1969, 2147483648
      %v3061 = vor.u32 1.1754944e-38, %v3060
      %v3062 = vsel %vm3059, %v3061, %v3057
      %v3063 = vmul.f32 1.0, %v3062
      %v3064 = vrcp.pop %v1970
      %v3065 = vmul.f32 %v1970, %v3064
      %v3066 = vsub.f32 1.0, %v3065
      %v3067 = vmul.f32 %v3064, %v3066
      %v3068 = vadd.f32 %v3064, %v3067
      %vm3069 = vweird.f32 %v1970
      %vm3070 = vweird.f32 %v3064
      %vm3071 = vmor %vm3069, %vm3070
      %v3072 = vsel %vm3071, %v3064, %v3068
      %v3073 = vand.u32 2147483647, %v1970
      %vm3074 = vcmp.eq.f32.partialorder %v3073, 8.507059e+37
      %v3075 = vand.u32 %v1970, 2147483648
      %v3076 = vor.u32 1.1754944e-38, %v3075
      %v3077 = vsel %vm3074, %v3076, %v3072
      %v3078 = vmul.f32 1.0, %v3077
      %v3079 = vrcp.pop %v1971
      %v3080 = vmul.f32 %v1971, %v3079
      %v3081 = vsub.f32 1.0, %v3080
      %v3082 = vmul.f32 %v3079, %v3081
      %v3083 = vadd.f32 %v3079, %v3082
      %vm3084 = vweird.f32 %v1971
      %vm3085 = vweird.f32 %v3079
      %vm3086 = vmor %vm3084, %vm3085
      %v3087 = vsel %vm3086, %v3079, %v3083
      %v3088 = vand.u32 2147483647, %v1971
      %vm3089 = vcmp.eq.f32.partialorder %v3088, 8.507059e+37
      %v3090 = vand.u32 %v1971, 2147483648
      %v3091 = vor.u32 1.1754944e-38, %v3090
      %v3092 = vsel %vm3089, %v3091, %v3087
      %v3093 = vmul.f32 1.0, %v3092
      %v3094 = vrcp.pop %v1972
      %v3095 = vmul.f32 %v1972, %v3094
      %v3096 = vsub.f32 1.0, %v3095
      %v3097 = vmul.f32 %v3094, %v3096
      %v3098 = vadd.f32 %v3094, %v3097
      %vm3099 = vweird.f32 %v1972
      %vm3100 = vweird.f32 %v3094
      %vm3101 = vmor %vm3099, %vm3100
      %v3102 = vsel %vm3101, %v3094, %v3098
      %v3103 = vand.u32 2147483647, %v1972
      %vm3104 = vcmp.eq.f32.partialorder %v3103, 8.507059e+37
      %v3105 = vand.u32 %v1972, 2147483648
      %v3106 = vor.u32 1.1754944e-38, %v3105
      %v3107 = vsel %vm3104, %v3106, %v3102
      %v3108 = vmul.f32 1.0, %v3107
      %v3109 = vrcp.pop %v1973
      %v3110 = vmul.f32 %v1973, %v3109
      %v3111 = vsub.f32 1.0, %v3110
      %v3112 = vmul.f32 %v3109, %v3111
      %v3113 = vadd.f32 %v3109, %v3112
      %vm3114 = vweird.f32 %v1973
      %vm3115 = vweird.f32 %v3109
      %vm3116 = vmor %vm3114, %vm3115
      %v3117 = vsel %vm3116, %v3109, %v3113
      %v3118 = vand.u32 2147483647, %v1973
      %vm3119 = vcmp.eq.f32.partialorder %v3118, 8.507059e+37
      %v3120 = vand.u32 %v1973, 2147483648
      %v3121 = vor.u32 1.1754944e-38, %v3120
      %v3122 = vsel %vm3119, %v3121, %v3117
      %v3123 = vmul.f32 1.0, %v3122
      %v3124 = vrcp.pop %v1974
      %v3125 = vmul.f32 %v1974, %v3124
      %v3126 = vsub.f32 1.0, %v3125
      %v3127 = vmul.f32 %v3124, %v3126
      %v3128 = vadd.f32 %v3124, %v3127
      %vm3129 = vweird.f32 %v1974
      %vm3130 = vweird.f32 %v3124
      %vm3131 = vmor %vm3129, %vm3130
      %v3132 = vsel %vm3131, %v3124, %v3128
      %v3133 = vand.u32 2147483647, %v1974
      %vm3134 = vcmp.eq.f32.partialorder %v3133, 8.507059e+37
      %v3135 = vand.u32 %v1974, 2147483648
      %v3136 = vor.u32 1.1754944e-38, %v3135
      %v3137 = vsel %vm3134, %v3136, %v3132
      %v3138 = vmul.f32 1.0, %v3137
      %v3139 = vrcp.pop %v1975
      %v3140 = vmul.f32 %v1975, %v3139
      %v3141 = vsub.f32 1.0, %v3140
      %v3142 = vmul.f32 %v3139, %v3141
      %v3143 = vadd.f32 %v3139, %v3142
      %vm3144 = vweird.f32 %v1975
      %vm3145 = vweird.f32 %v3139
      %vm3146 = vmor %vm3144, %vm3145
      %v3147 = vsel %vm3146, %v3139, %v3143
      %v3148 = vand.u32 2147483647, %v1975
      %vm3149 = vcmp.eq.f32.partialorder %v3148, 8.507059e+37
      %v3150 = vand.u32 %v1975, 2147483648
      %v3151 = vor.u32 1.1754944e-38, %v3150
      %v3152 = vsel %vm3149, %v3151, %v3147
      %v3153 = vmul.f32 1.0, %v3152
      %v3154 = vrcp.pop %v1976
      %v3155 = vmul.f32 %v1976, %v3154
      %v3156 = vsub.f32 1.0, %v3155
      %v3157 = vmul.f32 %v3154, %v3156
      %v3158 = vadd.f32 %v3154, %v3157
      %vm3159 = vweird.f32 %v1976
      %vm3160 = vweird.f32 %v3154
      %vm3161 = vmor %vm3159, %vm3160
      %v3162 = vsel %vm3161, %v3154, %v3158
      %v3163 = vand.u32 2147483647, %v1976
      %vm3164 = vcmp.eq.f32.partialorder %v3163, 8.507059e+37
      %v3165 = vand.u32 %v1976, 2147483648
      %v3166 = vor.u32 1.1754944e-38, %v3165
      %v3167 = vsel %vm3164, %v3166, %v3162
      %v3168 = vmul.f32 1.0, %v3167
      %v3169 = vrcp.pop %v1977
      %v3170 = vmul.f32 %v1977, %v3169
      %v3171 = vsub.f32 1.0, %v3170
      %v3172 = vmul.f32 %v3169, %v3171
      %v3173 = vadd.f32 %v3169, %v3172
      %vm3174 = vweird.f32 %v1977
      %vm3175 = vweird.f32 %v3169
      %vm3176 = vmor %vm3174, %vm3175
      %v3177 = vsel %vm3176, %v3169, %v3173
      %v3178 = vand.u32 2147483647, %v1977
      %vm3179 = vcmp.eq.f32.partialorder %v3178, 8.507059e+37
      %v3180 = vand.u32 %v1977, 2147483648
      %v3181 = vor.u32 1.1754944e-38, %v3180
      %v3182 = vsel %vm3179, %v3181, %v3177
      %v3183 = vmul.f32 1.0, %v3182
      %v3184 = vrcp.pop %v1978
      %v3185 = vmul.f32 %v1978, %v3184
      %v3186 = vsub.f32 1.0, %v3185
      %v3187 = vmul.f32 %v3184, %v3186
      %v3188 = vadd.f32 %v3184, %v3187
      %vm3189 = vweird.f32 %v1978
      %vm3190 = vweird.f32 %v3184
      %vm3191 = vmor %vm3189, %vm3190
      %v3192 = vsel %vm3191, %v3184, %v3188
      %v3193 = vand.u32 2147483647, %v1978
      %vm3194 = vcmp.eq.f32.partialorder %v3193, 8.507059e+37
      %v3195 = vand.u32 %v1978, 2147483648
      %v3196 = vor.u32 1.1754944e-38, %v3195
      %v3197 = vsel %vm3194, %v3196, %v3192
      %v3198 = vmul.f32 1.0, %v3197
      %v3199 = vrcp.pop %v1979
      %v3200 = vmul.f32 %v1979, %v3199
      %v3201 = vsub.f32 1.0, %v3200
      %v3202 = vmul.f32 %v3199, %v3201
      %v3203 = vadd.f32 %v3199, %v3202
      %vm3204 = vweird.f32 %v1979
      %vm3205 = vweird.f32 %v3199
      %vm3206 = vmor %vm3204, %vm3205
      %v3207 = vsel %vm3206, %v3199, %v3203
      %v3208 = vand.u32 2147483647, %v1979
      %vm3209 = vcmp.eq.f32.partialorder %v3208, 8.507059e+37
      %v3210 = vand.u32 %v1979, 2147483648
      %v3211 = vor.u32 1.1754944e-38, %v3210
      %v3212 = vsel %vm3209, %v3211, %v3207
      %v3213 = vmul.f32 1.0, %v3212
      %v3214 = vrcp.pop %v1980
      %v3215 = vmul.f32 %v1980, %v3214
      %v3216 = vsub.f32 1.0, %v3215
      %v3217 = vmul.f32 %v3214, %v3216
      %v3218 = vadd.f32 %v3214, %v3217
      %vm3219 = vweird.f32 %v1980
      %vm3220 = vweird.f32 %v3214
      %vm3221 = vmor %vm3219, %vm3220
      %v3222 = vsel %vm3221, %v3214, %v3218
      %v3223 = vand.u32 2147483647, %v1980
      %vm3224 = vcmp.eq.f32.partialorder %v3223, 8.507059e+37
      %v3225 = vand.u32 %v1980, 2147483648
      %v3226 = vor.u32 1.1754944e-38, %v3225
      %v3227 = vsel %vm3224, %v3226, %v3222
      %v3228 = vmul.f32 1.0, %v3227
      %v3229 = vrcp.pop %v1981
      %v3230 = vmul.f32 %v1981, %v3229
      %v3231 = vsub.f32 1.0, %v3230
      %v3232 = vmul.f32 %v3229, %v3231
      %v3233 = vadd.f32 %v3229, %v3232
      %vm3234 = vweird.f32 %v1981
      %vm3235 = vweird.f32 %v3229
      %vm3236 = vmor %vm3234, %vm3235
      %v3237 = vsel %vm3236, %v3229, %v3233
      %v3238 = vand.u32 2147483647, %v1981
      %vm3239 = vcmp.eq.f32.partialorder %v3238, 8.507059e+37
      %v3240 = vand.u32 %v1981, 2147483648
      %v3241 = vor.u32 1.1754944e-38, %v3240
      %v3242 = vsel %vm3239, %v3241, %v3237
      %v3243 = vmul.f32 1.0, %v3242
      %v3244 = vrcp.pop %v1982
      %v3245 = vmul.f32 %v1982, %v3244
      %v3246 = vsub.f32 1.0, %v3245
      %v3247 = vmul.f32 %v3244, %v3246
      %v3248 = vadd.f32 %v3244, %v3247
      %vm3249 = vweird.f32 %v1982
      %vm3250 = vweird.f32 %v3244
      %vm3251 = vmor %vm3249, %vm3250
      %v3252 = vsel %vm3251, %v3244, %v3248
      %v3253 = vand.u32 2147483647, %v1982
      %vm3254 = vcmp.eq.f32.partialorder %v3253, 8.507059e+37
      %v3255 = vand.u32 %v1982, 2147483648
      %v3256 = vor.u32 1.1754944e-38, %v3255
      %v3257 = vsel %vm3254, %v3256, %v3252
      %v3258 = vmul.f32 1.0, %v3257
      %v3259 = vrcp.pop %v1983
      %v3260 = vmul.f32 %v1983, %v3259
      %v3261 = vsub.f32 1.0, %v3260
      %v3262 = vmul.f32 %v3259, %v3261
      %v3263 = vadd.f32 %v3259, %v3262
      %vm3264 = vweird.f32 %v1983
      %vm3265 = vweird.f32 %v3259
      %vm3266 = vmor %vm3264, %vm3265
      %v3267 = vsel %vm3266, %v3259, %v3263
      %v3268 = vand.u32 2147483647, %v1983
      %vm3269 = vcmp.eq.f32.partialorder %v3268, 8.507059e+37
      %v3270 = vand.u32 %v1983, 2147483648
      %v3271 = vor.u32 1.1754944e-38, %v3270
      %v3272 = vsel %vm3269, %v3271, %v3267
      %v3273 = vmul.f32 1.0, %v3272
      %v3274 = vrcp.pop %v1984
      %v3275 = vmul.f32 %v1984, %v3274
      %v3276 = vsub.f32 1.0, %v3275
      %v3277 = vmul.f32 %v3274, %v3276
      %v3278 = vadd.f32 %v3274, %v3277
      %vm3279 = vweird.f32 %v1984
      %vm3280 = vweird.f32 %v3274
      %vm3281 = vmor %vm3279, %vm3280
      %v3282 = vsel %vm3281, %v3274, %v3278
      %v3283 = vand.u32 2147483647, %v1984
      %vm3284 = vcmp.eq.f32.partialorder %v3283, 8.507059e+37
      %v3285 = vand.u32 %v1984, 2147483648
      %v3286 = vor.u32 1.1754944e-38, %v3285
      %v3287 = vsel %vm3284, %v3286, %v3282
      %v3288 = vmul.f32 1.0, %v3287
      %v3289 = vrcp.pop %v1985
      %v3290 = vmul.f32 %v1985, %v3289
      %v3291 = vsub.f32 1.0, %v3290
      %v3292 = vmul.f32 %v3289, %v3291
      %v3293 = vadd.f32 %v3289, %v3292
      %vm3294 = vweird.f32 %v1985
      %vm3295 = vweird.f32 %v3289
      %vm3296 = vmor %vm3294, %vm3295
      %v3297 = vsel %vm3296, %v3289, %v3293
      %v3298 = vand.u32 2147483647, %v1985
      %vm3299 = vcmp.eq.f32.partialorder %v3298, 8.507059e+37
      %v3300 = vand.u32 %v1985, 2147483648
      %v3301 = vor.u32 1.1754944e-38, %v3300
      %v3302 = vsel %vm3299, %v3301, %v3297
      %v3303 = vmul.f32 1.0, %v3302
      %v3304 = vrcp.pop %v1986
      %v3305 = vmul.f32 %v1986, %v3304
      %v3306 = vsub.f32 1.0, %v3305
      %v3307 = vmul.f32 %v3304, %v3306
      %v3308 = vadd.f32 %v3304, %v3307
      %vm3309 = vweird.f32 %v1986
      %vm3310 = vweird.f32 %v3304
      %vm3311 = vmor %vm3309, %vm3310
      %v3312 = vsel %vm3311, %v3304, %v3308
      %v3313 = vand.u32 2147483647, %v1986
      %vm3314 = vcmp.eq.f32.partialorder %v3313, 8.507059e+37
      %v3315 = vand.u32 %v1986, 2147483648
      %v3316 = vor.u32 1.1754944e-38, %v3315
      %v3317 = vsel %vm3314, %v3316, %v3312
      %v3318 = vmul.f32 1.0, %v3317
      %v3319 = vrcp.pop %v1987
      %v3320 = vmul.f32 %v1987, %v3319
      %v3321 = vsub.f32 1.0, %v3320
      %v3322 = vmul.f32 %v3319, %v3321
      %v3323 = vadd.f32 %v3319, %v3322
      %vm3324 = vweird.f32 %v1987
      %vm3325 = vweird.f32 %v3319
      %vm3326 = vmor %vm3324, %vm3325
      %v3327 = vsel %vm3326, %v3319, %v3323
      %v3328 = vand.u32 2147483647, %v1987
      %vm3329 = vcmp.eq.f32.partialorder %v3328, 8.507059e+37
      %v3330 = vand.u32 %v1987, 2147483648
      %v3331 = vor.u32 1.1754944e-38, %v3330
      %v3332 = vsel %vm3329, %v3331, %v3327
      %v3333 = vmul.f32 1.0, %v3332
      %v3334 = vrcp.pop %v1988
      %v3335 = vmul.f32 %v1988, %v3334
      %v3336 = vsub.f32 1.0, %v3335
      %v3337 = vmul.f32 %v3334, %v3336
      %v3338 = vadd.f32 %v3334, %v3337
      %vm3339 = vweird.f32 %v1988
      %vm3340 = vweird.f32 %v3334
      %vm3341 = vmor %vm3339, %vm3340
      %v3342 = vsel %vm3341, %v3334, %v3338
      %v3343 = vand.u32 2147483647, %v1988
      %vm3344 = vcmp.eq.f32.partialorder %v3343, 8.507059e+37
      %v3345 = vand.u32 %v1988, 2147483648
      %v3346 = vor.u32 1.1754944e-38, %v3345
      %v3347 = vsel %vm3344, %v3346, %v3342
      %v3348 = vmul.f32 1.0, %v3347
      %v3349 = vrcp.pop %v1989
      %v3350 = vmul.f32 %v1989, %v3349
      %v3351 = vsub.f32 1.0, %v3350
      %v3352 = vmul.f32 %v3349, %v3351
      %v3353 = vadd.f32 %v3349, %v3352
      %vm3354 = vweird.f32 %v1989
      %vm3355 = vweird.f32 %v3349
      %vm3356 = vmor %vm3354, %vm3355
      %v3357 = vsel %vm3356, %v3349, %v3353
      %v3358 = vand.u32 2147483647, %v1989
      %vm3359 = vcmp.eq.f32.partialorder %v3358, 8.507059e+37
      %v3360 = vand.u32 %v1989, 2147483648
      %v3361 = vor.u32 1.1754944e-38, %v3360
      %v3362 = vsel %vm3359, %v3361, %v3357
      %v3363 = vmul.f32 1.0, %v3362
      %v3364 = vrcp.pop %v1990
      %v3365 = vmul.f32 %v1990, %v3364
      %v3366 = vsub.f32 1.0, %v3365
      %v3367 = vmul.f32 %v3364, %v3366
      %v3368 = vadd.f32 %v3364, %v3367
      %vm3369 = vweird.f32 %v1990
      %vm3370 = vweird.f32 %v3364
      %vm3371 = vmor %vm3369, %vm3370
      %v3372 = vsel %vm3371, %v3364, %v3368
      %v3373 = vand.u32 2147483647, %v1990
      %vm3374 = vcmp.eq.f32.partialorder %v3373, 8.507059e+37
      %v3375 = vand.u32 %v1990, 2147483648
      %v3376 = vor.u32 1.1754944e-38, %v3375
      %v3377 = vsel %vm3374, %v3376, %v3372
      %v3378 = vmul.f32 1.0, %v3377
      %v3379 = vrcp.pop %v1991
      %v3380 = vmul.f32 %v1991, %v3379
      %v3381 = vsub.f32 1.0, %v3380
      %v3382 = vmul.f32 %v3379, %v3381
      %v3383 = vadd.f32 %v3379, %v3382
      %vm3384 = vweird.f32 %v1991
      %vm3385 = vweird.f32 %v3379
      %vm3386 = vmor %vm3384, %vm3385
      %v3387 = vsel %vm3386, %v3379, %v3383
      %v3388 = vand.u32 2147483647, %v1991
      %vm3389 = vcmp.eq.f32.partialorder %v3388, 8.507059e+37
      %v3390 = vand.u32 %v1991, 2147483648
      %v3391 = vor.u32 1.1754944e-38, %v3390
      %v3392 = vsel %vm3389, %v3391, %v3387
      %v3393 = vmul.f32 1.0, %v3392
      %v3394 = vrcp.pop %v1992
      %v3395 = vmul.f32 %v1992, %v3394
      %v3396 = vsub.f32 1.0, %v3395
      %v3397 = vmul.f32 %v3394, %v3396
      %v3398 = vadd.f32 %v3394, %v3397
      %vm3399 = vweird.f32 %v1992
      %vm3400 = vweird.f32 %v3394
      %vm3401 = vmor %vm3399, %vm3400
      %v3402 = vsel %vm3401, %v3394, %v3398
      %v3403 = vand.u32 2147483647, %v1992
      %vm3404 = vcmp.eq.f32.partialorder %v3403, 8.507059e+37
      %v3405 = vand.u32 %v1992, 2147483648
      %v3406 = vor.u32 1.1754944e-38, %v3405
      %v3407 = vsel %vm3404, %v3406, %v3402
      %v3408 = vmul.f32 1.0, %v3407
      %v3409 = vrcp.pop %v1993
      %v3410 = vmul.f32 %v1993, %v3409
      %v3411 = vsub.f32 1.0, %v3410
      %v3412 = vmul.f32 %v3409, %v3411
      %v3413 = vadd.f32 %v3409, %v3412
      %vm3414 = vweird.f32 %v1993
      %vm3415 = vweird.f32 %v3409
      %vm3416 = vmor %vm3414, %vm3415
      %v3417 = vsel %vm3416, %v3409, %v3413
      %v3418 = vand.u32 2147483647, %v1993
      %vm3419 = vcmp.eq.f32.partialorder %v3418, 8.507059e+37
      %v3420 = vand.u32 %v1993, 2147483648
      %v3421 = vor.u32 1.1754944e-38, %v3420
      %v3422 = vsel %vm3419, %v3421, %v3417
      %v3423 = vmul.f32 1.0, %v3422
      %v3424 = vrcp.pop %v1994
      %v3425 = vmul.f32 %v1994, %v3424
      %v3426 = vsub.f32 1.0, %v3425
      %v3427 = vmul.f32 %v3424, %v3426
      %v3428 = vadd.f32 %v3424, %v3427
      %vm3429 = vweird.f32 %v1994
      %vm3430 = vweird.f32 %v3424
      %vm3431 = vmor %vm3429, %vm3430
      %v3432 = vsel %vm3431, %v3424, %v3428
      %v3433 = vand.u32 2147483647, %v1994
      %vm3434 = vcmp.eq.f32.partialorder %v3433, 8.507059e+37
      %v3435 = vand.u32 %v1994, 2147483648
      %v3436 = vor.u32 1.1754944e-38, %v3435
      %v3437 = vsel %vm3434, %v3436, %v3432
      %v3438 = vmul.f32 1.0, %v3437
      %v3439 = vrcp.pop %v1995
      %v3440 = vmul.f32 %v1995, %v3439
      %v3441 = vsub.f32 1.0, %v3440
      %v3442 = vmul.f32 %v3439, %v3441
      %v3443 = vadd.f32 %v3439, %v3442
      %vm3444 = vweird.f32 %v1995
      %vm3445 = vweird.f32 %v3439
      %vm3446 = vmor %vm3444, %vm3445
      %v3447 = vsel %vm3446, %v3439, %v3443
      %v3448 = vand.u32 2147483647, %v1995
      %vm3449 = vcmp.eq.f32.partialorder %v3448, 8.507059e+37
      %v3450 = vand.u32 %v1995, 2147483648
      %v3451 = vor.u32 1.1754944e-38, %v3450
      %v3452 = vsel %vm3449, %v3451, %v3447
      %v3453 = vmul.f32 1.0, %v3452
      %v3454 = vrcp.pop %v1996
      %v3455 = vmul.f32 %v1996, %v3454
      %v3456 = vsub.f32 1.0, %v3455
      %v3457 = vmul.f32 %v3454, %v3456
      %v3458 = vadd.f32 %v3454, %v3457
      %vm3459 = vweird.f32 %v1996
      %vm3460 = vweird.f32 %v3454
      %vm3461 = vmor %vm3459, %vm3460
      %v3462 = vsel %vm3461, %v3454, %v3458
      %v3463 = vand.u32 2147483647, %v1996
      %vm3464 = vcmp.eq.f32.partialorder %v3463, 8.507059e+37
      %v3465 = vand.u32 %v1996, 2147483648
      %v3466 = vor.u32 1.1754944e-38, %v3465
      %v3467 = vsel %vm3464, %v3466, %v3462
      %v3468 = vmul.f32 1.0, %v3467
      %v3469 = vrcp.pop %v1997
      %v3470 = vmul.f32 %v1997, %v3469
      %v3471 = vsub.f32 1.0, %v3470
      %v3472 = vmul.f32 %v3469, %v3471
      %v3473 = vadd.f32 %v3469, %v3472
      %vm3474 = vweird.f32 %v1997
      %vm3475 = vweird.f32 %v3469
      %vm3476 = vmor %vm3474, %vm3475
      %v3477 = vsel %vm3476, %v3469, %v3473
      %v3478 = vand.u32 2147483647, %v1997
      %vm3479 = vcmp.eq.f32.partialorder %v3478, 8.507059e+37
      %v3480 = vand.u32 %v1997, 2147483648
      %v3481 = vor.u32 1.1754944e-38, %v3480
      %v3482 = vsel %vm3479, %v3481, %v3477
      %v3483 = vmul.f32 1.0, %v3482
      %v3484 = vrcp.pop %v1998
      %v3485 = vmul.f32 %v1998, %v3484
      %v3486 = vsub.f32 1.0, %v3485
      %v3487 = vmul.f32 %v3484, %v3486
      %v3488 = vadd.f32 %v3484, %v3487
      %vm3489 = vweird.f32 %v1998
      %vm3490 = vweird.f32 %v3484
      %vm3491 = vmor %vm3489, %vm3490
      %v3492 = vsel %vm3491, %v3484, %v3488
      %v3493 = vand.u32 2147483647, %v1998
      %vm3494 = vcmp.eq.f32.partialorder %v3493, 8.507059e+37
      %v3495 = vand.u32 %v1998, 2147483648
      %v3496 = vor.u32 1.1754944e-38, %v3495
      %v3497 = vsel %vm3494, %v3496, %v3492
      %v3498 = vmul.f32 1.0, %v3497
      %v3499 = vrcp.pop %v1999
      %v3500 = vmul.f32 %v1999, %v3499
      %v3501 = vsub.f32 1.0, %v3500
      %v3502 = vmul.f32 %v3499, %v3501
      %v3503 = vadd.f32 %v3499, %v3502
      %vm3504 = vweird.f32 %v1999
      %vm3505 = vweird.f32 %v3499
      %vm3506 = vmor %vm3504, %vm3505
      %v3507 = vsel %vm3506, %v3499, %v3503
      %v3508 = vand.u32 2147483647, %v1999
      %vm3509 = vcmp.eq.f32.partialorder %v3508, 8.507059e+37
      %v3510 = vand.u32 %v1999, 2147483648
      %v3511 = vor.u32 1.1754944e-38, %v3510
      %v3512 = vsel %vm3509, %v3511, %v3507
      %v3513 = vmul.f32 1.0, %v3512
      %v3514 = vrcp.pop %v2000
      %v3515 = vmul.f32 %v2000, %v3514
      %v3516 = vsub.f32 1.0, %v3515
      %v3517 = vmul.f32 %v3514, %v3516
      %v3518 = vadd.f32 %v3514, %v3517
      %vm3519 = vweird.f32 %v2000
      %vm3520 = vweird.f32 %v3514
      %vm3521 = vmor %vm3519, %vm3520
      %v3522 = vsel %vm3521, %v3514, %v3518
      %v3523 = vand.u32 2147483647, %v2000
      %vm3524 = vcmp.eq.f32.partialorder %v3523, 8.507059e+37
      %v3525 = vand.u32 %v2000, 2147483648
      %v3526 = vor.u32 1.1754944e-38, %v3525
      %v3527 = vsel %vm3524, %v3526, %v3522
      %v3528 = vmul.f32 1.0, %v3527
      %v3529 = vrcp.pop %v2001
      %v3530 = vmul.f32 %v2001, %v3529
      %v3531 = vsub.f32 1.0, %v3530
      %v3532 = vmul.f32 %v3529, %v3531
      %v3533 = vadd.f32 %v3529, %v3532
      %vm3534 = vweird.f32 %v2001
      %vm3535 = vweird.f32 %v3529
      %vm3536 = vmor %vm3534, %vm3535
      %v3537 = vsel %vm3536, %v3529, %v3533
      %v3538 = vand.u32 2147483647, %v2001
      %vm3539 = vcmp.eq.f32.partialorder %v3538, 8.507059e+37
      %v3540 = vand.u32 %v2001, 2147483648
      %v3541 = vor.u32 1.1754944e-38, %v3540
      %v3542 = vsel %vm3539, %v3541, %v3537
      %v3543 = vmul.f32 1.0, %v3542
      %v3544 = vrcp.pop %v2002
      %v3545 = vmul.f32 %v2002, %v3544
      %v3546 = vsub.f32 1.0, %v3545
      %v3547 = vmul.f32 %v3544, %v3546
      %v3548 = vadd.f32 %v3544, %v3547
      %vm3549 = vweird.f32 %v2002
      %vm3550 = vweird.f32 %v3544
      %vm3551 = vmor %vm3549, %vm3550
      %v3552 = vsel %vm3551, %v3544, %v3548
      %v3553 = vand.u32 2147483647, %v2002
      %vm3554 = vcmp.eq.f32.partialorder %v3553, 8.507059e+37
      %v3555 = vand.u32 %v2002, 2147483648
      %v3556 = vor.u32 1.1754944e-38, %v3555
      %v3557 = vsel %vm3554, %v3556, %v3552
      %v3558 = vmul.f32 1.0, %v3557
      %v3559 = vrcp.pop %v2003
      %v3560 = vmul.f32 %v2003, %v3559
      %v3561 = vsub.f32 1.0, %v3560
      %v3562 = vmul.f32 %v3559, %v3561
      %v3563 = vadd.f32 %v3559, %v3562
      %vm3564 = vweird.f32 %v2003
      %vm3565 = vweird.f32 %v3559
      %vm3566 = vmor %vm3564, %vm3565
      %v3567 = vsel %vm3566, %v3559, %v3563
      %v3568 = vand.u32 2147483647, %v2003
      %vm3569 = vcmp.eq.f32.partialorder %v3568, 8.507059e+37
      %v3570 = vand.u32 %v2003, 2147483648
      %v3571 = vor.u32 1.1754944e-38, %v3570
      %v3572 = vsel %vm3569, %v3571, %v3567
      %v3573 = vmul.f32 1.0, %v3572
      %v3574 = vrcp.pop %v2004
      %v3575 = vmul.f32 %v2004, %v3574
      %v3576 = vsub.f32 1.0, %v3575
      %v3577 = vmul.f32 %v3574, %v3576
      %v3578 = vadd.f32 %v3574, %v3577
      %vm3579 = vweird.f32 %v2004
      %vm3580 = vweird.f32 %v3574
      %vm3581 = vmor %vm3579, %vm3580
      %v3582 = vsel %vm3581, %v3574, %v3578
      %v3583 = vand.u32 2147483647, %v2004
      %vm3584 = vcmp.eq.f32.partialorder %v3583, 8.507059e+37
      %v3585 = vand.u32 %v2004, 2147483648
      %v3586 = vor.u32 1.1754944e-38, %v3585
      %v3587 = vsel %vm3584, %v3586, %v3582
      %v3588 = vmul.f32 1.0, %v3587
      %v3589 = vrcp.pop %v2005
      %v3590 = vmul.f32 %v2005, %v3589
      %v3591 = vsub.f32 1.0, %v3590
      %v3592 = vmul.f32 %v3589, %v3591
      %v3593 = vadd.f32 %v3589, %v3592
      %vm3594 = vweird.f32 %v2005
      %vm3595 = vweird.f32 %v3589
      %vm3596 = vmor %vm3594, %vm3595
      %v3597 = vsel %vm3596, %v3589, %v3593
      %v3598 = vand.u32 2147483647, %v2005
      %vm3599 = vcmp.eq.f32.partialorder %v3598, 8.507059e+37
      %v3600 = vand.u32 %v2005, 2147483648
      %v3601 = vor.u32 1.1754944e-38, %v3600
      %v3602 = vsel %vm3599, %v3601, %v3597
      %v3603 = vmul.f32 1.0, %v3602
      %v3604 = vrcp.pop %v2006
      %v3605 = vmul.f32 %v2006, %v3604
      %v3606 = vsub.f32 1.0, %v3605
      %v3607 = vmul.f32 %v3604, %v3606
      %v3608 = vadd.f32 %v3604, %v3607
      %vm3609 = vweird.f32 %v2006
      %vm3610 = vweird.f32 %v3604
      %vm3611 = vmor %vm3609, %vm3610
      %v3612 = vsel %vm3611, %v3604, %v3608
      %v3613 = vand.u32 2147483647, %v2006
      %vm3614 = vcmp.eq.f32.partialorder %v3613, 8.507059e+37
      %v3615 = vand.u32 %v2006, 2147483648
      %v3616 = vor.u32 1.1754944e-38, %v3615
      %v3617 = vsel %vm3614, %v3616, %v3612
      %v3618 = vmul.f32 1.0, %v3617
      %v3619 = vrcp.pop %v2007
      %v3620 = vmul.f32 %v2007, %v3619
      %v3621 = vsub.f32 1.0, %v3620
      %v3622 = vmul.f32 %v3619, %v3621
      %v3623 = vadd.f32 %v3619, %v3622
      %vm3624 = vweird.f32 %v2007
      %vm3625 = vweird.f32 %v3619
      %vm3626 = vmor %vm3624, %vm3625
      %v3627 = vsel %vm3626, %v3619, %v3623
      %v3628 = vand.u32 2147483647, %v2007
      %vm3629 = vcmp.eq.f32.partialorder %v3628, 8.507059e+37
      %v3630 = vand.u32 %v2007, 2147483648
      %v3631 = vor.u32 1.1754944e-38, %v3630
      %v3632 = vsel %vm3629, %v3631, %v3627
      %v3633 = vmul.f32 1.0, %v3632
      %v3634 = vrcp.pop %v2008
      %v3635 = vmul.f32 %v2008, %v3634
      %v3636 = vsub.f32 1.0, %v3635
      %v3637 = vmul.f32 %v3634, %v3636
      %v3638 = vadd.f32 %v3634, %v3637
      %vm3639 = vweird.f32 %v2008
      %vm3640 = vweird.f32 %v3634
      %vm3641 = vmor %vm3639, %vm3640
      %v3642 = vsel %vm3641, %v3634, %v3638
      %v3643 = vand.u32 2147483647, %v2008
      %vm3644 = vcmp.eq.f32.partialorder %v3643, 8.507059e+37
      %v3645 = vand.u32 %v2008, 2147483648
      %v3646 = vor.u32 1.1754944e-38, %v3645
      %v3647 = vsel %vm3644, %v3646, %v3642
      %v3648 = vmul.f32 1.0, %v3647
      %v3649 = vrcp.pop %v2009
      %v3650 = vmul.f32 %v2009, %v3649
      %v3651 = vsub.f32 1.0, %v3650
      %v3652 = vmul.f32 %v3649, %v3651
      %v3653 = vadd.f32 %v3649, %v3652
      %vm3654 = vweird.f32 %v2009
      %vm3655 = vweird.f32 %v3649
      %vm3656 = vmor %vm3654, %vm3655
      %v3657 = vsel %vm3656, %v3649, %v3653
      %v3658 = vand.u32 2147483647, %v2009
      %vm3659 = vcmp.eq.f32.partialorder %v3658, 8.507059e+37
      %v3660 = vand.u32 %v2009, 2147483648
      %v3661 = vor.u32 1.1754944e-38, %v3660
      %v3662 = vsel %vm3659, %v3661, %v3657
      %v3663 = vmul.f32 1.0, %v3662
      %v3664 = vrcp.pop %v2010
      %v3665 = vmul.f32 %v2010, %v3664
      %v3666 = vsub.f32 1.0, %v3665
      %v3667 = vmul.f32 %v3664, %v3666
      %v3668 = vadd.f32 %v3664, %v3667
      %vm3669 = vweird.f32 %v2010
      %vm3670 = vweird.f32 %v3664
      %vm3671 = vmor %vm3669, %vm3670
      %v3672 = vsel %vm3671, %v3664, %v3668
      %v3673 = vand.u32 2147483647, %v2010
      %vm3674 = vcmp.eq.f32.partialorder %v3673, 8.507059e+37
      %v3675 = vand.u32 %v2010, 2147483648
      %v3676 = vor.u32 1.1754944e-38, %v3675
      %v3677 = vsel %vm3674, %v3676, %v3672
      %v3678 = vmul.f32 1.0, %v3677
      %v3679 = vrcp.pop %v2011
      %v3680 = vmul.f32 %v2011, %v3679
      %v3681 = vsub.f32 1.0, %v3680
      %v3682 = vmul.f32 %v3679, %v3681
      %v3683 = vadd.f32 %v3679, %v3682
      %vm3684 = vweird.f32 %v2011
      %vm3685 = vweird.f32 %v3679
      %vm3686 = vmor %vm3684, %vm3685
      %v3687 = vsel %vm3686, %v3679, %v3683
      %v3688 = vand.u32 2147483647, %v2011
      %vm3689 = vcmp.eq.f32.partialorder %v3688, 8.507059e+37
      %v3690 = vand.u32 %v2011, 2147483648
      %v3691 = vor.u32 1.1754944e-38, %v3690
      %v3692 = vsel %vm3689, %v3691, %v3687
      %v3693 = vmul.f32 1.0, %v3692
      %v3694 = vrcp.pop %v2012
      %v3695 = vmul.f32 %v2012, %v3694
      %v3696 = vsub.f32 1.0, %v3695
      %v3697 = vmul.f32 %v3694, %v3696
      %v3698 = vadd.f32 %v3694, %v3697
      %vm3699 = vweird.f32 %v2012
      %vm3700 = vweird.f32 %v3694
      %vm3701 = vmor %vm3699, %vm3700
      %v3702 = vsel %vm3701, %v3694, %v3698
      %v3703 = vand.u32 2147483647, %v2012
      %vm3704 = vcmp.eq.f32.partialorder %v3703, 8.507059e+37
      %v3705 = vand.u32 %v2012, 2147483648
      %v3706 = vor.u32 1.1754944e-38, %v3705
      %v3707 = vsel %vm3704, %v3706, %v3702
      %v3708 = vmul.f32 1.0, %v3707
      %v3709 = vrcp.pop %v2013
      %v3710 = vmul.f32 %v2013, %v3709
      %v3711 = vsub.f32 1.0, %v3710
      %v3712 = vmul.f32 %v3709, %v3711
      %v3713 = vadd.f32 %v3709, %v3712
      %vm3714 = vweird.f32 %v2013
      %vm3715 = vweird.f32 %v3709
      %vm3716 = vmor %vm3714, %vm3715
      %v3717 = vsel %vm3716, %v3709, %v3713
      %v3718 = vand.u32 2147483647, %v2013
      %vm3719 = vcmp.eq.f32.partialorder %v3718, 8.507059e+37
      %v3720 = vand.u32 %v2013, 2147483648
      %v3721 = vor.u32 1.1754944e-38, %v3720
      %v3722 = vsel %vm3719, %v3721, %v3717
      %v3723 = vmul.f32 1.0, %v3722
      %v3724 = vrcp.pop %v2014
      %v3725 = vmul.f32 %v2014, %v3724
      %v3726 = vsub.f32 1.0, %v3725
      %v3727 = vmul.f32 %v3724, %v3726
      %v3728 = vadd.f32 %v3724, %v3727
      %vm3729 = vweird.f32 %v2014
      %vm3730 = vweird.f32 %v3724
      %vm3731 = vmor %vm3729, %vm3730
      %v3732 = vsel %vm3731, %v3724, %v3728
      %v3733 = vand.u32 2147483647, %v2014
      %vm3734 = vcmp.eq.f32.partialorder %v3733, 8.507059e+37
      %v3735 = vand.u32 %v2014, 2147483648
      %v3736 = vor.u32 1.1754944e-38, %v3735
      %v3737 = vsel %vm3734, %v3736, %v3732
      %v3738 = vmul.f32 1.0, %v3737
      %v3739 = vrcp.pop %v2015
      %v3740 = vmul.f32 %v2015, %v3739
      %v3741 = vsub.f32 1.0, %v3740
      %v3742 = vmul.f32 %v3739, %v3741
      %v3743 = vadd.f32 %v3739, %v3742
      %vm3744 = vweird.f32 %v2015
      %vm3745 = vweird.f32 %v3739
      %vm3746 = vmor %vm3744, %vm3745
      %v3747 = vsel %vm3746, %v3739, %v3743
      %v3748 = vand.u32 2147483647, %v2015
      %vm3749 = vcmp.eq.f32.partialorder %v3748, 8.507059e+37
      %v3750 = vand.u32 %v2015, 2147483648
      %v3751 = vor.u32 1.1754944e-38, %v3750
      %v3752 = vsel %vm3749, %v3751, %v3747
      %v3753 = vmul.f32 1.0, %v3752
      %v3754 = vrcp.pop %v2016
      %v3755 = vmul.f32 %v2016, %v3754
      %v3756 = vsub.f32 1.0, %v3755
      %v3757 = vmul.f32 %v3754, %v3756
      %v3758 = vadd.f32 %v3754, %v3757
      %vm3759 = vweird.f32 %v2016
      %vm3760 = vweird.f32 %v3754
      %vm3761 = vmor %vm3759, %vm3760
      %v3762 = vsel %vm3761, %v3754, %v3758
      %v3763 = vand.u32 2147483647, %v2016
      %vm3764 = vcmp.eq.f32.partialorder %v3763, 8.507059e+37
      %v3765 = vand.u32 %v2016, 2147483648
      %v3766 = vor.u32 1.1754944e-38, %v3765
      %v3767 = vsel %vm3764, %v3766, %v3762
      %v3768 = vmul.f32 1.0, %v3767
      %v3769 = vrcp.pop %v2017
      %v3770 = vmul.f32 %v2017, %v3769
      %v3771 = vsub.f32 1.0, %v3770
      %v3772 = vmul.f32 %v3769, %v3771
      %v3773 = vadd.f32 %v3769, %v3772
      %vm3774 = vweird.f32 %v2017
      %vm3775 = vweird.f32 %v3769
      %vm3776 = vmor %vm3774, %vm3775
      %v3777 = vsel %vm3776, %v3769, %v3773
      %v3778 = vand.u32 2147483647, %v2017
      %vm3779 = vcmp.eq.f32.partialorder %v3778, 8.507059e+37
      %v3780 = vand.u32 %v2017, 2147483648
      %v3781 = vor.u32 1.1754944e-38, %v3780
      %v3782 = vsel %vm3779, %v3781, %v3777
      %v3783 = vmul.f32 1.0, %v3782
      %v3784 = vrcp.pop %v2018
      %v3785 = vmul.f32 %v2018, %v3784
      %v3786 = vsub.f32 1.0, %v3785
      %v3787 = vmul.f32 %v3784, %v3786
      %v3788 = vadd.f32 %v3784, %v3787
      %vm3789 = vweird.f32 %v2018
      %vm3790 = vweird.f32 %v3784
      %vm3791 = vmor %vm3789, %vm3790
      %v3792 = vsel %vm3791, %v3784, %v3788
      %v3793 = vand.u32 2147483647, %v2018
      %vm3794 = vcmp.eq.f32.partialorder %v3793, 8.507059e+37
      %v3795 = vand.u32 %v2018, 2147483648
      %v3796 = vor.u32 1.1754944e-38, %v3795
      %v3797 = vsel %vm3794, %v3796, %v3792
      %v3798 = vmul.f32 1.0, %v3797
      %v3799 = vrcp.pop %v2019
      %v3800 = vmul.f32 %v2019, %v3799
      %v3801 = vsub.f32 1.0, %v3800
      %v3802 = vmul.f32 %v3799, %v3801
      %v3803 = vadd.f32 %v3799, %v3802
      %vm3804 = vweird.f32 %v2019
      %vm3805 = vweird.f32 %v3799
      %vm3806 = vmor %vm3804, %vm3805
      %v3807 = vsel %vm3806, %v3799, %v3803
      %v3808 = vand.u32 2147483647, %v2019
      %vm3809 = vcmp.eq.f32.partialorder %v3808, 8.507059e+37
      %v3810 = vand.u32 %v2019, 2147483648
      %v3811 = vor.u32 1.1754944e-38, %v3810
      %v3812 = vsel %vm3809, %v3811, %v3807
      %v3813 = vmul.f32 1.0, %v3812
      %v3814 = vrcp.pop %v2020
      %v3815 = vmul.f32 %v2020, %v3814
      %v3816 = vsub.f32 1.0, %v3815
      %v3817 = vmul.f32 %v3814, %v3816
      %v3818 = vadd.f32 %v3814, %v3817
      %vm3819 = vweird.f32 %v2020
      %vm3820 = vweird.f32 %v3814
      %vm3821 = vmor %vm3819, %vm3820
      %v3822 = vsel %vm3821, %v3814, %v3818
      %v3823 = vand.u32 2147483647, %v2020
      %vm3824 = vcmp.eq.f32.partialorder %v3823, 8.507059e+37
      %v3825 = vand.u32 %v2020, 2147483648
      %v3826 = vor.u32 1.1754944e-38, %v3825
      %v3827 = vsel %vm3824, %v3826, %v3822
      %v3828 = vmul.f32 1.0, %v3827
      %v3829 = vrcp.pop %v2021
      %v3830 = vmul.f32 %v2021, %v3829
      %v3831 = vsub.f32 1.0, %v3830
      %v3832 = vmul.f32 %v3829, %v3831
      %v3833 = vadd.f32 %v3829, %v3832
      %vm3834 = vweird.f32 %v2021
      %vm3835 = vweird.f32 %v3829
      %vm3836 = vmor %vm3834, %vm3835
      %v3837 = vsel %vm3836, %v3829, %v3833
      %v3838 = vand.u32 2147483647, %v2021
      %vm3839 = vcmp.eq.f32.partialorder %v3838, 8.507059e+37
      %v3840 = vand.u32 %v2021, 2147483648
      %v3841 = vor.u32 1.1754944e-38, %v3840
      %v3842 = vsel %vm3839, %v3841, %v3837
      %v3843 = vmul.f32 1.0, %v3842
      %v3844 = vrcp.pop %v2022
      %v3845 = vmul.f32 %v2022, %v3844
      %v3846 = vsub.f32 1.0, %v3845
      %v3847 = vmul.f32 %v3844, %v3846
      %v3848 = vadd.f32 %v3844, %v3847
      %vm3849 = vweird.f32 %v2022
      %vm3850 = vweird.f32 %v3844
      %vm3851 = vmor %vm3849, %vm3850
      %v3852 = vsel %vm3851, %v3844, %v3848
      %v3853 = vand.u32 2147483647, %v2022
      %vm3854 = vcmp.eq.f32.partialorder %v3853, 8.507059e+37
      %v3855 = vand.u32 %v2022, 2147483648
      %v3856 = vor.u32 1.1754944e-38, %v3855
      %v3857 = vsel %vm3854, %v3856, %v3852
      %v3858 = vmul.f32 1.0, %v3857
      %v3859 = vrcp.pop %v2023
      %v3860 = vmul.f32 %v2023, %v3859
      %v3861 = vsub.f32 1.0, %v3860
      %v3862 = vmul.f32 %v3859, %v3861
      %v3863 = vadd.f32 %v3859, %v3862
      %vm3864 = vweird.f32 %v2023
      %vm3865 = vweird.f32 %v3859
      %vm3866 = vmor %vm3864, %vm3865
      %v3867 = vsel %vm3866, %v3859, %v3863
      %v3868 = vand.u32 2147483647, %v2023
      %vm3869 = vcmp.eq.f32.partialorder %v3868, 8.507059e+37
      %v3870 = vand.u32 %v2023, 2147483648
      %v3871 = vor.u32 1.1754944e-38, %v3870
      %v3872 = vsel %vm3869, %v3871, %v3867
      %v3873 = vmul.f32 1.0, %v3872
      %v3874 = vrcp.pop %v2024
      %v3875 = vmul.f32 %v2024, %v3874
      %v3876 = vsub.f32 1.0, %v3875
      %v3877 = vmul.f32 %v3874, %v3876
      %v3878 = vadd.f32 %v3874, %v3877
      %vm3879 = vweird.f32 %v2024
      %vm3880 = vweird.f32 %v3874
      %vm3881 = vmor %vm3879, %vm3880
      %v3882 = vsel %vm3881, %v3874, %v3878
      %v3883 = vand.u32 2147483647, %v2024
      %vm3884 = vcmp.eq.f32.partialorder %v3883, 8.507059e+37
      %v3885 = vand.u32 %v2024, 2147483648
      %v3886 = vor.u32 1.1754944e-38, %v3885
      %v3887 = vsel %vm3884, %v3886, %v3882
      %v3888 = vmul.f32 1.0, %v3887
      %v3889 = vrcp.pop %v2025
      %v3890 = vmul.f32 %v2025, %v3889
      %v3891 = vsub.f32 1.0, %v3890
      %v3892 = vmul.f32 %v3889, %v3891
      %v3893 = vadd.f32 %v3889, %v3892
      %vm3894 = vweird.f32 %v2025
      %vm3895 = vweird.f32 %v3889
      %vm3896 = vmor %vm3894, %vm3895
      %v3897 = vsel %vm3896, %v3889, %v3893
      %v3898 = vand.u32 2147483647, %v2025
      %vm3899 = vcmp.eq.f32.partialorder %v3898, 8.507059e+37
      %v3900 = vand.u32 %v2025, 2147483648
      %v3901 = vor.u32 1.1754944e-38, %v3900
      %v3902 = vsel %vm3899, %v3901, %v3897
      %v3903 = vmul.f32 1.0, %v3902
      %v3904 = vrcp.pop %v2026
      %v3905 = vmul.f32 %v2026, %v3904
      %v3906 = vsub.f32 1.0, %v3905
      %v3907 = vmul.f32 %v3904, %v3906
      %v3908 = vadd.f32 %v3904, %v3907
      %vm3909 = vweird.f32 %v2026
      %vm3910 = vweird.f32 %v3904
      %vm3911 = vmor %vm3909, %vm3910
      %v3912 = vsel %vm3911, %v3904, %v3908
      %v3913 = vand.u32 2147483647, %v2026
      %vm3914 = vcmp.eq.f32.partialorder %v3913, 8.507059e+37
      %v3915 = vand.u32 %v2026, 2147483648
      %v3916 = vor.u32 1.1754944e-38, %v3915
      %v3917 = vsel %vm3914, %v3916, %v3912
      %v3918 = vmul.f32 1.0, %v3917
      %v3919 = vrcp.pop %v2027
      %v3920 = vmul.f32 %v2027, %v3919
      %v3921 = vsub.f32 1.0, %v3920
      %v3922 = vmul.f32 %v3919, %v3921
      %v3923 = vadd.f32 %v3919, %v3922
      %vm3924 = vweird.f32 %v2027
      %vm3925 = vweird.f32 %v3919
      %vm3926 = vmor %vm3924, %vm3925
      %v3927 = vsel %vm3926, %v3919, %v3923
      %v3928 = vand.u32 2147483647, %v2027
      %vm3929 = vcmp.eq.f32.partialorder %v3928, 8.507059e+37
      %v3930 = vand.u32 %v2027, 2147483648
      %v3931 = vor.u32 1.1754944e-38, %v3930
      %v3932 = vsel %vm3929, %v3931, %v3927
      %v3933 = vmul.f32 1.0, %v3932
      %v3934 = vrcp.pop %v2028
      %v3935 = vmul.f32 %v2028, %v3934
      %v3936 = vsub.f32 1.0, %v3935
      %v3937 = vmul.f32 %v3934, %v3936
      %v3938 = vadd.f32 %v3934, %v3937
      %vm3939 = vweird.f32 %v2028
      %vm3940 = vweird.f32 %v3934
      %vm3941 = vmor %vm3939, %vm3940
      %v3942 = vsel %vm3941, %v3934, %v3938
      %v3943 = vand.u32 2147483647, %v2028
      %vm3944 = vcmp.eq.f32.partialorder %v3943, 8.507059e+37
      %v3945 = vand.u32 %v2028, 2147483648
      %v3946 = vor.u32 1.1754944e-38, %v3945
      %v3947 = vsel %vm3944, %v3946, %v3942
      %v3948 = vmul.f32 1.0, %v3947
      %v3949 = vmul.f32 %v1389, %v2043
      %v3950 = vmul.f32 %v1390, %v2058
      %v3951 = vmul.f32 %v1391, %v2073
      %v3952 = vmul.f32 %v1392, %v2088
      %v3953 = vmul.f32 %v1393, %v2103
      %v3954 = vmul.f32 %v1394, %v2118
      %v3955 = vmul.f32 %v1395, %v2133
      %v3956 = vmul.f32 %v1396, %v2148
      %v3957 = vmul.f32 %v1397, %v2163
      %v3958 = vmul.f32 %v1398, %v2178
      %v3959 = vmul.f32 %v1399, %v2193
      %v3960 = vmul.f32 %v1400, %v2208
      %v3961 = vmul.f32 %v1401, %v2223
      %v3962 = vmul.f32 %v1402, %v2238
      %v3963 = vmul.f32 %v1403, %v2253
      %v3964 = vmul.f32 %v1404, %v2268
      %v3965 = vmul.f32 %v1405, %v2283
      %v3966 = vmul.f32 %v1406, %v2298
      %v3967 = vmul.f32 %v1407, %v2313
      %v3968 = vmul.f32 %v1408, %v2328
      %v3969 = vmul.f32 %v1409, %v2343
      %v3970 = vmul.f32 %v1410, %v2358
      %v3971 = vmul.f32 %v1411, %v2373
      %v3972 = vmul.f32 %v1412, %v2388
      %v3973 = vmul.f32 %v1413, %v2403
      %v3974 = vmul.f32 %v1414, %v2418
      %v3975 = vmul.f32 %v1415, %v2433
      %v3976 = vmul.f32 %v1416, %v2448
      %v3977 = vmul.f32 %v1417, %v2463
      %v3978 = vmul.f32 %v1418, %v2478
      %v3979 = vmul.f32 %v1419, %v2493
      %v3980 = vmul.f32 %v1420, %v2508
      %v3981 = vmul.f32 %v1421, %v2523
      %v3982 = vmul.f32 %v1422, %v2538
      %v3983 = vmul.f32 %v1423, %v2553
      %v3984 = vmul.f32 %v1424, %v2568
      %v3985 = vmul.f32 %v1425, %v2583
      %v3986 = vmul.f32 %v1426, %v2598
      %v3987 = vmul.f32 %v1427, %v2613
      %v3988 = vmul.f32 %v1428, %v2628
      %v3989 = vmul.f32 %v1429, %v2643
      %v3990 = vmul.f32 %v1430, %v2658
      %v3991 = vmul.f32 %v1431, %v2673
      %v3992 = vmul.f32 %v1432, %v2688
      %v3993 = vmul.f32 %v1433, %v2703
      %v3994 = vmul.f32 %v1434, %v2718
      %v3995 = vmul.f32 %v1435, %v2733
      %v3996 = vmul.f32 %v1436, %v2748
      %v3997 = vmul.f32 %v1437, %v2763
      %v3998 = vmul.f32 %v1438, %v2778
      %v3999 = vmul.f32 %v1439, %v2793
      %v4000 = vmul.f32 %v1440, %v2808
      %v4001 = vmul.f32 %v1441, %v2823
      %v4002 = vmul.f32 %v1442, %v2838
      %v4003 = vmul.f32 %v1443, %v2853
      %v4004 = vmul.f32 %v1444, %v2868
      %v4005 = vmul.f32 %v1445, %v2883
      %v4006 = vmul.f32 %v1446, %v2898
      %v4007 = vmul.f32 %v1447, %v2913
      %v4008 = vmul.f32 %v1448, %v2928
      %v4009 = vmul.f32 %v1449, %v2943
      %v4010 = vmul.f32 %v1450, %v2958
      %v4011 = vmul.f32 %v1451, %v2973
      %v4012 = vmul.f32 %v1452, %v2988
      %v4013 = vmul.f32 %v1453, %v3003
      %v4014 = vmul.f32 %v1454, %v3018
      %v4015 = vmul.f32 %v1455, %v3033
      %v4016 = vmul.f32 %v1456, %v3048
      %v4017 = vmul.f32 %v1457, %v3063
      %v4018 = vmul.f32 %v1458, %v3078
      %v4019 = vmul.f32 %v1459, %v3093
      %v4020 = vmul.f32 %v1460, %v3108
      %v4021 = vmul.f32 %v1461, %v3123
      %v4022 = vmul.f32 %v1462, %v3138
      %v4023 = vmul.f32 %v1463, %v3153
      %v4024 = vmul.f32 %v1464, %v3168
      %v4025 = vmul.f32 %v1465, %v3183
      %v4026 = vmul.f32 %v1466, %v3198
      %v4027 = vmul.f32 %v1467, %v3213
      %v4028 = vmul.f32 %v1468, %v3228
      %v4029 = vmul.f32 %v1469, %v3243
      %v4030 = vmul.f32 %v1470, %v3258
      %v4031 = vmul.f32 %v1471, %v3273
      %v4032 = vmul.f32 %v1472, %v3288
      %v4033 = vmul.f32 %v1473, %v3303
      %v4034 = vmul.f32 %v1474, %v3318
      %v4035 = vmul.f32 %v1475, %v3333
      %v4036 = vmul.f32 %v1476, %v3348
      %v4037 = vmul.f32 %v1477, %v3363
      %v4038 = vmul.f32 %v1478, %v3378
      %v4039 = vmul.f32 %v1479, %v3393
      %v4040 = vmul.f32 %v1480, %v3408
      %v4041 = vmul.f32 %v1481, %v3423
      %v4042 = vmul.f32 %v1482, %v3438
      %v4043 = vmul.f32 %v1483, %v3453
      %v4044 = vmul.f32 %v1484, %v3468
      %v4045 = vmul.f32 %v1485, %v3483
      %v4046 = vmul.f32 %v1486, %v3498
      %v4047 = vmul.f32 %v1487, %v3513
      %v4048 = vmul.f32 %v1488, %v3528
      %v4049 = vmul.f32 %v1489, %v3543
      %v4050 = vmul.f32 %v1490, %v3558
      %v4051 = vmul.f32 %v1491, %v3573
      %v4052 = vmul.f32 %v1492, %v3588
      %v4053 = vmul.f32 %v1493, %v3603
      %v4054 = vmul.f32 %v1494, %v3618
      %v4055 = vmul.f32 %v1495, %v3633
      %v4056 = vmul.f32 %v1496, %v3648
      %v4057 = vmul.f32 %v1497, %v3663
      %v4058 = vmul.f32 %v1498, %v3678
      %v4059 = vmul.f32 %v1499, %v3693
      %v4060 = vmul.f32 %v1500, %v3708
      %v4061 = vmul.f32 %v1501, %v3723
      %v4062 = vmul.f32 %v1502, %v3738
      %v4063 = vmul.f32 %v1503, %v3753
      %v4064 = vmul.f32 %v1504, %v3768
      %v4065 = vmul.f32 %v1505, %v3783
      %v4066 = vmul.f32 %v1506, %v3798
      %v4067 = vmul.f32 %v1507, %v3813
      %v4068 = vmul.f32 %v1508, %v3828
      %v4069 = vmul.f32 %v1509, %v3843
      %v4070 = vmul.f32 %v1510, %v3858
      %v4071 = vmul.f32 %v1511, %v3873
      %v4072 = vmul.f32 %v1512, %v3888
      %v4073 = vmul.f32 %v1513, %v3903
      %v4074 = vmul.f32 %v1514, %v3918
      %v4075 = vmul.f32 %v1515, %v3933
      %v4076 = vmul.f32 %v1516, %v3948
      %v4077 = vpack.c.bf16 %v3949, %v3949
      %v4078 = vpack.c.bf16 %v3950, %v3950
      %v4079 = vpack.c.bf16 %v3951, %v3951
      %v4080 = vpack.c.bf16 %v3952, %v3952
      %v4081 = vpack.c.bf16 %v3953, %v3953
      %v4082 = vpack.c.bf16 %v3954, %v3954
      %v4083 = vpack.c.bf16 %v3955, %v3955
      %v4084 = vpack.c.bf16 %v3956, %v3956
      %v4085 = vpack.c.bf16 %v3957, %v3957
      %v4086 = vpack.c.bf16 %v3958, %v3958
      %v4087 = vpack.c.bf16 %v3959, %v3959
      %v4088 = vpack.c.bf16 %v3960, %v3960
      %v4089 = vpack.c.bf16 %v3961, %v3961
      %v4090 = vpack.c.bf16 %v3962, %v3962
      %v4091 = vpack.c.bf16 %v3963, %v3963
      %v4092 = vpack.c.bf16 %v3964, %v3964
      %v4093 = vpack.c.bf16 %v3965, %v3965
      %v4094 = vpack.c.bf16 %v3966, %v3966
      %v4095 = vpack.c.bf16 %v3967, %v3967
      %v4096 = vpack.c.bf16 %v3968, %v3968
      %v4097 = vpack.c.bf16 %v3969, %v3969
      %v4098 = vpack.c.bf16 %v3970, %v3970
      %v4099 = vpack.c.bf16 %v3971, %v3971
      %v4100 = vpack.c.bf16 %v3972, %v3972
      %v4101 = vpack.c.bf16 %v3973, %v3973
      %v4102 = vpack.c.bf16 %v3974, %v3974
      %v4103 = vpack.c.bf16 %v3975, %v3975
      %v4104 = vpack.c.bf16 %v3976, %v3976
      %v4105 = vpack.c.bf16 %v3977, %v3977
      %v4106 = vpack.c.bf16 %v3978, %v3978
      %v4107 = vpack.c.bf16 %v3979, %v3979
      %v4108 = vpack.c.bf16 %v3980, %v3980
      %v4109 = vpack.c.bf16 %v3981, %v3981
      %v4110 = vpack.c.bf16 %v3982, %v3982
      %v4111 = vpack.c.bf16 %v3983, %v3983
      %v4112 = vpack.c.bf16 %v3984, %v3984
      %v4113 = vpack.c.bf16 %v3985, %v3985
      %v4114 = vpack.c.bf16 %v3986, %v3986
      %v4115 = vpack.c.bf16 %v3987, %v3987
      %v4116 = vpack.c.bf16 %v3988, %v3988
      %v4117 = vpack.c.bf16 %v3989, %v3989
      %v4118 = vpack.c.bf16 %v3990, %v3990
      %v4119 = vpack.c.bf16 %v3991, %v3991
      %v4120 = vpack.c.bf16 %v3992, %v3992
      %v4121 = vpack.c.bf16 %v3993, %v3993
      %v4122 = vpack.c.bf16 %v3994, %v3994
      %v4123 = vpack.c.bf16 %v3995, %v3995
      %v4124 = vpack.c.bf16 %v3996, %v3996
      %v4125 = vpack.c.bf16 %v3997, %v3997
      %v4126 = vpack.c.bf16 %v3998, %v3998
      %v4127 = vpack.c.bf16 %v3999, %v3999
      %v4128 = vpack.c.bf16 %v4000, %v4000
      %v4129 = vpack.c.bf16 %v4001, %v4001
      %v4130 = vpack.c.bf16 %v4002, %v4002
      %v4131 = vpack.c.bf16 %v4003, %v4003
      %v4132 = vpack.c.bf16 %v4004, %v4004
      %v4133 = vpack.c.bf16 %v4005, %v4005
      %v4134 = vpack.c.bf16 %v4006, %v4006
      %v4135 = vpack.c.bf16 %v4007, %v4007
      %v4136 = vpack.c.bf16 %v4008, %v4008
      %v4137 = vpack.c.bf16 %v4009, %v4009
      %v4138 = vpack.c.bf16 %v4010, %v4010
      %v4139 = vpack.c.bf16 %v4011, %v4011
      %v4140 = vpack.c.bf16 %v4012, %v4012
      %v4141 = vpack.c.bf16 %v4013, %v4013
      %v4142 = vpack.c.bf16 %v4014, %v4014
      %v4143 = vpack.c.bf16 %v4015, %v4015
      %v4144 = vpack.c.bf16 %v4016, %v4016
      %v4145 = vpack.c.bf16 %v4017, %v4017
      %v4146 = vpack.c.bf16 %v4018, %v4018
      %v4147 = vpack.c.bf16 %v4019, %v4019
      %v4148 = vpack.c.bf16 %v4020, %v4020
      %v4149 = vpack.c.bf16 %v4021, %v4021
      %v4150 = vpack.c.bf16 %v4022, %v4022
      %v4151 = vpack.c.bf16 %v4023, %v4023
      %v4152 = vpack.c.bf16 %v4024, %v4024
      %v4153 = vpack.c.bf16 %v4025, %v4025
      %v4154 = vpack.c.bf16 %v4026, %v4026
      %v4155 = vpack.c.bf16 %v4027, %v4027
      %v4156 = vpack.c.bf16 %v4028, %v4028
      %v4157 = vpack.c.bf16 %v4029, %v4029
      %v4158 = vpack.c.bf16 %v4030, %v4030
      %v4159 = vpack.c.bf16 %v4031, %v4031
      %v4160 = vpack.c.bf16 %v4032, %v4032
      %v4161 = vpack.c.bf16 %v4033, %v4033
      %v4162 = vpack.c.bf16 %v4034, %v4034
      %v4163 = vpack.c.bf16 %v4035, %v4035
      %v4164 = vpack.c.bf16 %v4036, %v4036
      %v4165 = vpack.c.bf16 %v4037, %v4037
      %v4166 = vpack.c.bf16 %v4038, %v4038
      %v4167 = vpack.c.bf16 %v4039, %v4039
      %v4168 = vpack.c.bf16 %v4040, %v4040
      %v4169 = vpack.c.bf16 %v4041, %v4041
      %v4170 = vpack.c.bf16 %v4042, %v4042
      %v4171 = vpack.c.bf16 %v4043, %v4043
      %v4172 = vpack.c.bf16 %v4044, %v4044
      %v4173 = vpack.c.bf16 %v4045, %v4045
      %v4174 = vpack.c.bf16 %v4046, %v4046
      %v4175 = vpack.c.bf16 %v4047, %v4047
      %v4176 = vpack.c.bf16 %v4048, %v4048
      %v4177 = vpack.c.bf16 %v4049, %v4049
      %v4178 = vpack.c.bf16 %v4050, %v4050
      %v4179 = vpack.c.bf16 %v4051, %v4051
      %v4180 = vpack.c.bf16 %v4052, %v4052
      %v4181 = vpack.c.bf16 %v4053, %v4053
      %v4182 = vpack.c.bf16 %v4054, %v4054
      %v4183 = vpack.c.bf16 %v4055, %v4055
      %v4184 = vpack.c.bf16 %v4056, %v4056
      %v4185 = vpack.c.bf16 %v4057, %v4057
      %v4186 = vpack.c.bf16 %v4058, %v4058
      %v4187 = vpack.c.bf16 %v4059, %v4059
      %v4188 = vpack.c.bf16 %v4060, %v4060
      %v4189 = vpack.c.bf16 %v4061, %v4061
      %v4190 = vpack.c.bf16 %v4062, %v4062
      %v4191 = vpack.c.bf16 %v4063, %v4063
      %v4192 = vpack.c.bf16 %v4064, %v4064
      %v4193 = vpack.c.bf16 %v4065, %v4065
      %v4194 = vpack.c.bf16 %v4066, %v4066
      %v4195 = vpack.c.bf16 %v4067, %v4067
      %v4196 = vpack.c.bf16 %v4068, %v4068
      %v4197 = vpack.c.bf16 %v4069, %v4069
      %v4198 = vpack.c.bf16 %v4070, %v4070
      %v4199 = vpack.c.bf16 %v4071, %v4071
      %v4200 = vpack.c.bf16 %v4072, %v4072
      %v4201 = vpack.c.bf16 %v4073, %v4073
      %v4202 = vpack.c.bf16 %v4074, %v4074
      %v4203 = vpack.c.bf16 %v4075, %v4075
      %v4204 = vpack.c.bf16 %v4076, %v4076
      %vm4205 = vcmask 388096
      %4206 = vst.msk [vmem:[%s264] sm:$0xf] %vm4205, %v4077
      %4207 = vst.msk [vmem:[%s264 + $0x4] sm:$0xf] %vm4205, %v4078
      %4208 = vst.msk [vmem:[%s264 + $0x8] sm:$0xf] %vm4205, %v4079
      %4209 = vst.msk [vmem:[%s264 + $0xc] sm:$0xf] %vm4205, %v4080
      %4210 = vst.msk [vmem:[%s264 + $0x10] sm:$0xf] %vm4205, %v4081
      %4211 = vst.msk [vmem:[%s264 + $0x14] sm:$0xf] %vm4205, %v4082
      %4212 = vst.msk [vmem:[%s264 + $0x18] sm:$0xf] %vm4205, %v4083
      %4213 = vst.msk [vmem:[%s264 + $0x1c] sm:$0xf] %vm4205, %v4084
      %4214 = vst.msk [vmem:[%s264 + $0x20] sm:$0xf] %vm4205, %v4085
      %4215 = vst.msk [vmem:[%s264 + $0x24] sm:$0xf] %vm4205, %v4086
      %4216 = vst.msk [vmem:[%s264 + $0x28] sm:$0xf] %vm4205, %v4087
      %4217 = vst.msk [vmem:[%s264 + $0x2c] sm:$0xf] %vm4205, %v4088
      %4218 = vst.msk [vmem:[%s264 + $0x30] sm:$0xf] %vm4205, %v4089
      %4219 = vst.msk [vmem:[%s264 + $0x34] sm:$0xf] %vm4205, %v4090
      %4220 = vst.msk [vmem:[%s264 + $0x38] sm:$0xf] %vm4205, %v4091
      %4221 = vst.msk [vmem:[%s264 + $0x3c] sm:$0xf] %vm4205, %v4092
      %4222 = vst.msk [vmem:[%s264 + $0x40] sm:$0xf] %vm4205, %v4093
      %4223 = vst.msk [vmem:[%s264 + $0x44] sm:$0xf] %vm4205, %v4094
      %4224 = vst.msk [vmem:[%s264 + $0x48] sm:$0xf] %vm4205, %v4095
      %4225 = vst.msk [vmem:[%s264 + $0x4c] sm:$0xf] %vm4205, %v4096
      %4226 = vst.msk [vmem:[%s264 + $0x50] sm:$0xf] %vm4205, %v4097
      %4227 = vst.msk [vmem:[%s264 + $0x54] sm:$0xf] %vm4205, %v4098
      %4228 = vst.msk [vmem:[%s264 + $0x58] sm:$0xf] %vm4205, %v4099
      %4229 = vst.msk [vmem:[%s264 + $0x5c] sm:$0xf] %vm4205, %v4100
      %4230 = vst.msk [vmem:[%s264 + $0x60] sm:$0xf] %vm4205, %v4101
      %4231 = vst.msk [vmem:[%s264 + $0x64] sm:$0xf] %vm4205, %v4102
      %4232 = vst.msk [vmem:[%s264 + $0x68] sm:$0xf] %vm4205, %v4103
      %4233 = vst.msk [vmem:[%s264 + $0x6c] sm:$0xf] %vm4205, %v4104
      %4234 = vst.msk [vmem:[%s264 + $0x70] sm:$0xf] %vm4205, %v4105
      %4235 = vst.msk [vmem:[%s264 + $0x74] sm:$0xf] %vm4205, %v4106
      %4236 = vst.msk [vmem:[%s264 + $0x78] sm:$0xf] %vm4205, %v4107
      %4237 = vst.msk [vmem:[%s264 + $0x7c] sm:$0xf] %vm4205, %v4108
      %4238 = vst.msk [vmem:[%s264 + $0x80] sm:$0xf] %vm4205, %v4109
      %4239 = vst.msk [vmem:[%s264 + $0x84] sm:$0xf] %vm4205, %v4110
      %4240 = vst.msk [vmem:[%s264 + $0x88] sm:$0xf] %vm4205, %v4111
      %4241 = vst.msk [vmem:[%s264 + $0x8c] sm:$0xf] %vm4205, %v4112
      %4242 = vst.msk [vmem:[%s264 + $0x90] sm:$0xf] %vm4205, %v4113
      %4243 = vst.msk [vmem:[%s264 + $0x94] sm:$0xf] %vm4205, %v4114
      %4244 = vst.msk [vmem:[%s264 + $0x98] sm:$0xf] %vm4205, %v4115
      %4245 = vst.msk [vmem:[%s264 + $0x9c] sm:$0xf] %vm4205, %v4116
      %4246 = vst.msk [vmem:[%s264 + $0xa0] sm:$0xf] %vm4205, %v4117
      %4247 = vst.msk [vmem:[%s264 + $0xa4] sm:$0xf] %vm4205, %v4118
      %4248 = vst.msk [vmem:[%s264 + $0xa8] sm:$0xf] %vm4205, %v4119
      %4249 = vst.msk [vmem:[%s264 + $0xac] sm:$0xf] %vm4205, %v4120
      %4250 = vst.msk [vmem:[%s264 + $0xb0] sm:$0xf] %vm4205, %v4121
      %4251 = vst.msk [vmem:[%s264 + $0xb4] sm:$0xf] %vm4205, %v4122
      %4252 = vst.msk [vmem:[%s264 + $0xb8] sm:$0xf] %vm4205, %v4123
      %4253 = vst.msk [vmem:[%s264 + $0xbc] sm:$0xf] %vm4205, %v4124
      %4254 = vst.msk [vmem:[%s264 + $0xc0] sm:$0xf] %vm4205, %v4125
      %4255 = vst.msk [vmem:[%s264 + $0xc4] sm:$0xf] %vm4205, %v4126
      %4256 = vst.msk [vmem:[%s264 + $0xc8] sm:$0xf] %vm4205, %v4127
      %4257 = vst.msk [vmem:[%s264 + $0xcc] sm:$0xf] %vm4205, %v4128
      %4258 = vst.msk [vmem:[%s264 + $0xd0] sm:$0xf] %vm4205, %v4129
      %4259 = vst.msk [vmem:[%s264 + $0xd4] sm:$0xf] %vm4205, %v4130
      %4260 = vst.msk [vmem:[%s264 + $0xd8] sm:$0xf] %vm4205, %v4131
      %4261 = vst.msk [vmem:[%s264 + $0xdc] sm:$0xf] %vm4205, %v4132
      %4262 = vst.msk [vmem:[%s264 + $0xe0] sm:$0xf] %vm4205, %v4133
      %4263 = vst.msk [vmem:[%s264 + $0xe4] sm:$0xf] %vm4205, %v4134
      %4264 = vst.msk [vmem:[%s264 + $0xe8] sm:$0xf] %vm4205, %v4135
      %4265 = vst.msk [vmem:[%s264 + $0xec] sm:$0xf] %vm4205, %v4136
      %4266 = vst.msk [vmem:[%s264 + $0xf0] sm:$0xf] %vm4205, %v4137
      %4267 = vst.msk [vmem:[%s264 + $0xf4] sm:$0xf] %vm4205, %v4138
      %4268 = vst.msk [vmem:[%s264 + $0xf8] sm:$0xf] %vm4205, %v4139
      %4269 = vst.msk [vmem:[%s264 + $0xfc] sm:$0xf] %vm4205, %v4140
      %4270 = vst.msk [vmem:[%s264 + $0x100] sm:$0xf] %vm4205, %v4141
      %4271 = vst.msk [vmem:[%s264 + $0x104] sm:$0xf] %vm4205, %v4142
      %4272 = vst.msk [vmem:[%s264 + $0x108] sm:$0xf] %vm4205, %v4143
      %4273 = vst.msk [vmem:[%s264 + $0x10c] sm:$0xf] %vm4205, %v4144
      %4274 = vst.msk [vmem:[%s264 + $0x110] sm:$0xf] %vm4205, %v4145
      %4275 = vst.msk [vmem:[%s264 + $0x114] sm:$0xf] %vm4205, %v4146
      %4276 = vst.msk [vmem:[%s264 + $0x118] sm:$0xf] %vm4205, %v4147
      %4277 = vst.msk [vmem:[%s264 + $0x11c] sm:$0xf] %vm4205, %v4148
      %4278 = vst.msk [vmem:[%s264 + $0x120] sm:$0xf] %vm4205, %v4149
      %4279 = vst.msk [vmem:[%s264 + $0x124] sm:$0xf] %vm4205, %v4150
      %4280 = vst.msk [vmem:[%s264 + $0x128] sm:$0xf] %vm4205, %v4151
      %4281 = vst.msk [vmem:[%s264 + $0x12c] sm:$0xf] %vm4205, %v4152
      %4282 = vst.msk [vmem:[%s264 + $0x130] sm:$0xf] %vm4205, %v4153
      %4283 = vst.msk [vmem:[%s264 + $0x134] sm:$0xf] %vm4205, %v4154
      %4284 = vst.msk [vmem:[%s264 + $0x138] sm:$0xf] %vm4205, %v4155
      %4285 = vst.msk [vmem:[%s264 + $0x13c] sm:$0xf] %vm4205, %v4156
      %4286 = vst.msk [vmem:[%s264 + $0x140] sm:$0xf] %vm4205, %v4157
      %4287 = vst.msk [vmem:[%s264 + $0x144] sm:$0xf] %vm4205, %v4158
      %4288 = vst.msk [vmem:[%s264 + $0x148] sm:$0xf] %vm4205, %v4159
      %4289 = vst.msk [vmem:[%s264 + $0x14c] sm:$0xf] %vm4205, %v4160
      %4290 = vst.msk [vmem:[%s264 + $0x150] sm:$0xf] %vm4205, %v4161
      %4291 = vst.msk [vmem:[%s264 + $0x154] sm:$0xf] %vm4205, %v4162
      %4292 = vst.msk [vmem:[%s264 + $0x158] sm:$0xf] %vm4205, %v4163
      %4293 = vst.msk [vmem:[%s264 + $0x15c] sm:$0xf] %vm4205, %v4164
      %4294 = vst.msk [vmem:[%s264 + $0x160] sm:$0xf] %vm4205, %v4165
      %4295 = vst.msk [vmem:[%s264 + $0x164] sm:$0xf] %vm4205, %v4166
      %4296 = vst.msk [vmem:[%s264 + $0x168] sm:$0xf] %vm4205, %v4167
      %4297 = vst.msk [vmem:[%s264 + $0x16c] sm:$0xf] %vm4205, %v4168
      %4298 = vst.msk [vmem:[%s264 + $0x170] sm:$0xf] %vm4205, %v4169
      %4299 = vst.msk [vmem:[%s264 + $0x174] sm:$0xf] %vm4205, %v4170
      %4300 = vst.msk [vmem:[%s264 + $0x178] sm:$0xf] %vm4205, %v4171
      %4301 = vst.msk [vmem:[%s264 + $0x17c] sm:$0xf] %vm4205, %v4172
      %4302 = vst.msk [vmem:[%s264 + $0x180] sm:$0xf] %vm4205, %v4173
      %4303 = vst.msk [vmem:[%s264 + $0x184] sm:$0xf] %vm4205, %v4174
      %4304 = vst.msk [vmem:[%s264 + $0x188] sm:$0xf] %vm4205, %v4175
      %4305 = vst.msk [vmem:[%s264 + $0x18c] sm:$0xf] %vm4205, %v4176
      %4306 = vst.msk [vmem:[%s264 + $0x190] sm:$0xf] %vm4205, %v4177
      %4307 = vst.msk [vmem:[%s264 + $0x194] sm:$0xf] %vm4205, %v4178
      %4308 = vst.msk [vmem:[%s264 + $0x198] sm:$0xf] %vm4205, %v4179
      %4309 = vst.msk [vmem:[%s264 + $0x19c] sm:$0xf] %vm4205, %v4180
      %4310 = vst.msk [vmem:[%s264 + $0x1a0] sm:$0xf] %vm4205, %v4181
      %4311 = vst.msk [vmem:[%s264 + $0x1a4] sm:$0xf] %vm4205, %v4182
      %4312 = vst.msk [vmem:[%s264 + $0x1a8] sm:$0xf] %vm4205, %v4183
      %4313 = vst.msk [vmem:[%s264 + $0x1ac] sm:$0xf] %vm4205, %v4184
      %4314 = vst.msk [vmem:[%s264 + $0x1b0] sm:$0xf] %vm4205, %v4185
      %4315 = vst.msk [vmem:[%s264 + $0x1b4] sm:$0xf] %vm4205, %v4186
      %4316 = vst.msk [vmem:[%s264 + $0x1b8] sm:$0xf] %vm4205, %v4187
      %4317 = vst.msk [vmem:[%s264 + $0x1bc] sm:$0xf] %vm4205, %v4188
      %4318 = vst.msk [vmem:[%s264 + $0x1c0] sm:$0xf] %vm4205, %v4189
      %4319 = vst.msk [vmem:[%s264 + $0x1c4] sm:$0xf] %vm4205, %v4190
      %4320 = vst.msk [vmem:[%s264 + $0x1c8] sm:$0xf] %vm4205, %v4191
      %4321 = vst.msk [vmem:[%s264 + $0x1cc] sm:$0xf] %vm4205, %v4192
      %4322 = vst.msk [vmem:[%s264 + $0x1d0] sm:$0xf] %vm4205, %v4193
      %4323 = vst.msk [vmem:[%s264 + $0x1d4] sm:$0xf] %vm4205, %v4194
      %4324 = vst.msk [vmem:[%s264 + $0x1d8] sm:$0xf] %vm4205, %v4195
      %4325 = vst.msk [vmem:[%s264 + $0x1dc] sm:$0xf] %vm4205, %v4196
      %4326 = vst.msk [vmem:[%s264 + $0x1e0] sm:$0xf] %vm4205, %v4197
      %4327 = vst.msk [vmem:[%s264 + $0x1e4] sm:$0xf] %vm4205, %v4198
      %4328 = vst.msk [vmem:[%s264 + $0x1e8] sm:$0xf] %vm4205, %v4199
      %4329 = vst.msk [vmem:[%s264 + $0x1ec] sm:$0xf] %vm4205, %v4200
      %4330 = vst.msk [vmem:[%s264 + $0x1f0] sm:$0xf] %vm4205, %v4201
      %4331 = vst.msk [vmem:[%s264 + $0x1f4] sm:$0xf] %vm4205, %v4202
      %4332 = vst.msk [vmem:[%s264 + $0x1f8] sm:$0xf] %vm4205, %v4203
      %4333 = vst.msk [vmem:[%s264 + $0x1fc] sm:$0xf] %vm4205, %v4204
      %s4334 = smul.u32 128, %s19
      %p4335 = scmp.lt.s32.totalorder %s4334, 255
      %s4336 = scalar_select %p4335, %s4334, 255
      %p4337 = scmp.lt.s32.totalorder %s20, 0
      %s4338 = scalar_select %p4337, %s20, 0
      %s4339 = sadd.s32 %s4338, %s4336
      %s4340 = smul.addr %s4339, 4
      %s4341 = scalar_lea.vmem %s4, %s4340
      // Predicated region
      $region37: #{matmul_bias_act.1} parent=35 // pred_check
        %p4342 = pneg %p151
      $region38: #{matmul_bias_act.1} parent=35 // pred_check_branch
        %4344 = sbr.rel (%p4342) target = $region40
      $region39: #{matmul_bias_act.1} parent=35 // pred_region
        %s4345 = smul.u32 128, %s19
      $region40: #{matmul_bias_act.1} parent=35 // pred_fallthru
        _
    $region36: #{matmul_bias_act.1} parent=5 // pred_fallthru
      _
    %p4346 = scmp.le.s32.totalorder 2, %s10
    // Predicated region
    $region41: #{matmul_bias_act.1} parent=5 // pred_check
      %p4347 = pneg %p4346
    $region42: #{matmul_bias_act.1} parent=5 // pred_check_branch
      %4349 = sbr.rel (%p4347) target = $region44
    $region43: #{matmul_bias_act.1} parent=5 // pred_region
      %s4350 = ssub.s32 %s10, 2
      // Predicated region
      $region45: #{matmul_bias_act.1} parent=43 // pred_check
        %p4351 = pneg %p157
      $region46: #{matmul_bias_act.1} parent=43 // pred_check_branch
        %4353 = sbr.rel (%p4351) target = $region48
      $region47: #{matmul_bias_act.1} parent=43 // pred_region
        %s4354 = smul.u32 128, %s21
        %p4355 = scmp.lt.s32.totalorder %s4354, 255
        %s4356 = scalar_select %p4355, %s4354, 255
        %p4357 = scmp.lt.s32.totalorder %s22, 0
        %s4358 = scalar_select %p4357, %s22, 0
        %s4359 = sadd.s32 %s4358, %s4356
        %s4360 = smul.addr %s4359, 4
        %s4361 = scalar_lea.vmem %s4, %s4360
      $region48: #{matmul_bias_act.1} parent=43 // pred_fallthru
        _
    $region44: #{matmul_bias_act.1} parent=5 // pred_fallthru
      _
  $region6: #{matmul_bias_act.1} parent=0 // loop_footer
    %s14 = sadd.s32 1, %s10
  $region7: #{matmul_bias_act.1} parent=0 // loop_footer_branch
    %9 = sbr.rel target = $region3
  $region8: #{matmul_bias_act.1} parent=0 // loop_exit
    _

</llo_original>
